<compile_context>
chip_gen: v7x
topology: tpu7x:2x2x1
jax: 0.10.0
libtpu: 0.0.40
codegen_flags: <defaults>
</compile_context>

<pallas_src>
import math

import jax
import jax.numpy as jnp
import numpy as np
from jax import lax
from jax.experimental import pallas as pl
from jax.experimental.pallas import tpu as pltpu

OUT_CH = 64
NUM_HEADS = 4
HEAD_DIM = OUT_CH // NUM_HEADS
GROUPS = 8
CG = OUT_CH // GROUPS
EPS = 1e-5
DOWN = 4

# MXU operand dtype for attention matmuls / token-map intermediates.
# Accumulation is always f32 and softmax math stays f32.
MM_DTYPE = jnp.bfloat16


def _cparams(sems, need_bytes=0):
    """Compiler params; bump scoped-VMEM only when the working set needs it.

    v5e/v6e default scoped limit is 32 MiB vs 128 MiB physical (review #7).
    TODO(synk): clamp against pltpu.get_tpu_info() for v7x's 64 MiB VMEM.
    """
    if need_bytes > 28 * 1024 * 1024:
        return pltpu.CompilerParams(
            dimension_semantics=sems,
            vmem_limit_bytes=min(int(need_bytes) + (8 << 20), 96 << 20))
    return pltpu.CompilerParams(dimension_semantics=sems)


# --------------------------------------------------------------------------
# Kernel 1: bilinear /4 downsample + 3x3 conv (with folded MHA projections)
# --------------------------------------------------------------------------

def _downsample_conv_kernel(cp_ref, mc_ref, dh_ref, dwt_ref,
                            wq_ref, bq_ref, wkv_ref, bkv_ref,
                            q_ref, kv_ref, pad_scr, col3_scr, col2_scr):
    """Emits projected Q (64, L) and fused K|V (128, L) token maps (bf16)."""
    dh = dh_ref[...]                      # (Hd, H)   row-downsample matrix
    dwt = dwt_ref[...]                    # (W, Wd)   col-downsample matrix (T)
    hd, hfull = dh_ref.shape
    wd = dwt_ref.shape[1]

    # Zero only the 1-wide borders of the padded scratch (review #13);
    # interiors are fully overwritten by each branch below.
    zrow = jnp.zeros((pad_scr.shape[0], 1, pad_scr.shape[2]), jnp.float32)
    zcol = jnp.zeros((pad_scr.shape[0], pad_scr.shape[1], 1), jnp.float32)
    pad_scr[:, 0:1, :] = zrow
    pad_scr[:, hd + 1:hd + 2, :] = zrow
    pad_scr[:, :, 0:1] = zcol
    pad_scr[:, :, wd + 1:wd + 2] = zcol

    def branch(x_ref, w_ref, b_ref, out_ref):
        cin = x_ref.shape[1] // hfull
        # ---- bilinear /4 downsample ----
        # column pass batched over all channels in ONE matmul (review #9)
        xcol = jnp.dot(x_ref[0], dwt,
                       preferred_element_type=jnp.float32)        # (cin*H, Wd)
        # row pass per channel -> interior of the padded map
        for c in range(cin):
            xdown = jnp.dot(dh, xcol[c * hfull:(c + 1) * hfull, :],
                            preferred_element_type=jnp.float32)   # (Hd, Wd)
            pad_scr[c, 1:hd + 1, 1:wd + 1] = xdown
        # ---- im2col (review #8): one window copy per tap, then Hd
        #      lane-dense row flattens (no 9*Hd tiny misaligned copies) ----
        for kh in range(3):
            for kw in range(3):
                tap = kh * 3 + kw
                col3_scr[tap * cin:(tap + 1) * cin, :, :] = (
                    pad_scr[0:cin, kh:kh + hd, kw:kw + wd])
        k = cin * 9
        for h in range(hd):
            col2_scr[0:k, h * wd:(h + 1) * wd] = col3_scr[0:k, h, :]
        # ---- conv (+ folded attention projection) as one matmul:
        #      (Cout, K) @ (K, L) -> (Cout, L), channel-major, bf16 out ----
        out_ref[0] = (jnp.dot(w_ref[...], col2_scr[0:k, :],
                              preferred_element_type=jnp.float32)
                      + b_ref[...]).astype(out_ref.dtype)

    branch(cp_ref, wq_ref, bq_ref, q_ref)      # precip -> projected Q tokens
    branch(mc_ref, wkv_ref, bkv_ref, kv_ref)   # meteo  -> fused K|V tokens


def downsample_conv(cp, mc, params):
    B, cpc, H, W = cp.shape
    cmc = mc.shape[1]
    Hd, Wd = H // DOWN, W // DOWN
    L = Hd * Wd
    cmax = max(cpc, cmc)
    # Free contiguous reshapes: (B, cin, H, W) -> (B, cin*H, W) so the batched
    # column-pass matmul needs no in-kernel reshape.
    cp2 = cp.reshape(B, cpc * H, W)
    mc2 = mc.reshape(B, cmc * H, W)

    need = (2 * (cpc + cmc) * H * W * 4
            + 2 * 3 * OUT_CH * L * 2
            + (cmax * (Hd + 2) * (Wd + 2) + 9 * cmax * Hd * Wd
               + 9 * cmax * L) * 4)

    out_shape = (jax.ShapeDtypeStruct((B, OUT_CH, L), MM_DTYPE),
                 jax.ShapeDtypeStruct((B, 2 * OUT_CH, L), MM_DTYPE))
    return pl.pallas_call(
        _downsample_conv_kernel,
        out_shape=out_shape,
        grid=(B,),
        in_specs=[
            pl.BlockSpec((1, cpc * H, W), lambda b: (b, 0, 0)),
            pl.BlockSpec((1, cmc * H, W), lambda b: (b, 0, 0)),
            pl.BlockSpec((Hd, H), lambda b: (0, 0)),
            pl.BlockSpec((W, Wd), lambda b: (0, 0)),
            pl.BlockSpec((OUT_CH, cpc * 9), lambda b: (0, 0)),
            pl.BlockSpec((OUT_CH, 1), lambda b: (0, 0)),
            pl.BlockSpec((2 * OUT_CH, cmc * 9), lambda b: (0, 0)),
            pl.BlockSpec((2 * OUT_CH, 1), lambda b: (0, 0)),
        ],
        out_specs=[
            pl.BlockSpec((1, OUT_CH, L), lambda b: (b, 0, 0)),
            pl.BlockSpec((1, 2 * OUT_CH, L), lambda b: (b, 0, 0)),
        ],
        scratch_shapes=[
            pltpu.VMEM((cmax, Hd + 2, Wd + 2), jnp.float32),   # padded maps
            pltpu.VMEM((cmax * 9, Hd, Wd), jnp.float32),       # tap windows
            pltpu.VMEM((cmax * 9, L), jnp.float32),            # im2col (K, L)
        ],
        compiler_params=_cparams(("parallel",), need),
    )(cp2, mc2, params['dh'], params['dwt'],
      params['wq_fold'], params['bq_fold'],
      params['wkv_fold'], params['bkv_fold'])


# --------------------------------------------------------------------------
# Kernel 2: multi-head cross-attention (projections already folded upstream)
# --------------------------------------------------------------------------

def _cross_attn_kernel(q_ref, kv_ref, wo_ref, bo_ref, o_ref, ctx_scr):
    """One (batch, query-chunk) grid step; channel-major (C, tokens) layout."""
    L = kv_ref.shape[2]
    ones_row = jnp.ones((1, L), dtype=MM_DTYPE)   # for lane-oriented row sums

    for h in range(NUM_HEADS):
        r0 = h * HEAD_DIM
        r1 = (h + 1) * HEAD_DIM
        qh = q_ref[0, r0:r1, :]                          # (hd, TQ) bf16, pre-scaled
        kh = kv_ref[0, r0:r1, :]                         # (hd, L)  bf16
        vh = kv_ref[0, OUT_CH + r0:OUT_CH + r1, :]       # (hd, L)  bf16
        # scores (TQ, L) = qh^T @ kh ; softmax math stays f32
        s = lax.dot_general(qh, kh, (((0,), (0,)), ((), ())),
                            preferred_element_type=jnp.float32)
        p = jnp.exp(s - jnp.max(s, axis=-1, keepdims=True)).astype(MM_DTYPE)
        # unnormalized context, channel-major (hd, TQ) = vh @ p^T   (review #4)
        ctx = lax.dot_general(vh, p, (((1,), (1,)), ((), ())),
                              preferred_element_type=jnp.float32)
        # row sums, lane-oriented (1, TQ), via a tiny MXU matmul   (review #3)
        rs = lax.dot_general(ones_row, p, (((1,), (1,)), ((), ())),
                             preferred_element_type=jnp.float32)
        ctx_scr[r0:r1, :] = (ctx * pl.reciprocal(rs, approx=True)
                             ).astype(ctx_scr.dtype)

    # out_proj: (64, TQ) = Wo @ ctx (channel-major), single matmul.
    o_ref[0] = (jnp.dot(wo_ref[...], ctx_scr[...],
                        preferred_element_type=jnp.float32)
                + bo_ref[...]).astype(o_ref.dtype)


def cross_attention(q_cm, kv_cm, params):
    B, C, L = q_cm.shape
    # VMEM-aware query-chunk size (review #6): keep the (TQ, L) f32 score +
    # prob buffers bounded (~16 MiB) and TQ a multiple of 128 for large L.
    if L <= 1024:
        tq = L
    else:
        tq = min(1024, max(128, ((2 * 1024 * 1024) // L) // 128 * 128))
    nq = pl.cdiv(L, tq)

    need = (2 * C * tq * 2 + 2 * 2 * C * L * 2 + 2 * C * tq * 4
            + 2 * tq * L * 4 + C * tq * 2 + C * C * 2)

    return pl.pallas_call(
        _cross_attn_kernel,
        out_shape=jax.ShapeDtypeStruct((B, C, L), jnp.float32),
        grid=(B, nq),
        in_specs=[
            pl.BlockSpec((1, C, tq), lambda b, qi: (b, 0, qi)),      # Q chunk
            pl.BlockSpec((1, 2 * C, L), lambda b, qi: (b, 0, 0)),    # fused K|V
            pl.BlockSpec((C, C), lambda b, qi: (0, 0)),              # Wo (bf16)
            pl.BlockSpec((C, 1), lambda b, qi: (0, 0)),              # bo
        ],
        out_specs=pl.BlockSpec((1, C, tq), lambda b, qi: (b, 0, qi)),
        scratch_shapes=[pltpu.VMEM((C, tq), MM_DTYPE)],              # head ctx
        compiler_params=_cparams(("parallel", "arbitrary"), need),
    )(q_cm, kv_cm, params['wo'], params['bo'])


# --------------------------------------------------------------------------
# Kernel 3: bilinear x4 upsample + GroupNorm(8), one (batch, group) per step
# --------------------------------------------------------------------------

def _upsample_groupnorm_kernel(x_ref, ah_ref, awt_ref, gamma_ref, beta_ref,
                               o_ref):
    """x_ref: (1, CG*Hd, Wd) one group's channels; o_ref: (1, CG*H, W)."""
    ah = ah_ref[...]                      # (H, Hd)
    awt = awt_ref[...]                    # (Wd, W)
    hfull, hd = ah_ref.shape
    wfull = awt_ref.shape[1]
    g = pl.program_id(1)

    # Column upsample for the whole group's channels in one matmul.
    t = jnp.dot(x_ref[0], awt, preferred_element_type=jnp.float32)  # (CG*Hd, W)

    # Row upsample per channel; single pass accumulates sum / sum-of-squares
    # (review #12) while writing the un-normalized result to the output block.
    total = jnp.zeros((), jnp.float32)
    total_sq = jnp.zeros((), jnp.float32)
    for c in range(CG):
        y = jnp.dot(ah, t[c * hd:(c + 1) * hd, :],
                    preferred_element_type=jnp.float32)             # (H, W)
        o_ref[0, c * hfull:(c + 1) * hfull, :] = y
        total = total + jnp.sum(y)
        total_sq = total_sq + jnp.sum(y * y)

    n = jnp.float32(CG * hfull * wfull)
    mean = total / n
    var = total_sq / n - mean * mean                                 # biased
    inv = lax.rsqrt(var + EPS)

    # Per-channel affine from SMEM scalars (review #11).
    for c in range(CG):
        gam = gamma_ref[g * CG + c]
        bet = beta_ref[g * CG + c]
        scale = inv * gam
        shift = bet - mean * scale
        r0 = c * hfull
        r1 = (c + 1) * hfull
        o_ref[0, r0:r1, :] = o_ref[0, r0:r1, :] * scale + shift


def upsample_groupnorm(attn_cm, params, H, W):
    B, C, L = attn_cm.shape
    Hd, Wd = H // DOWN, W // DOWN
    x2 = attn_cm.reshape(B, C * Hd, Wd)          # free contiguous reshape

    need = (2 * CG * Hd * Wd * 4 + 2 * CG * H * W * 4
            + CG * Hd * W * 4 + (H * Hd + Wd * W) * 4)

    out = pl.pallas_call(
        _upsample_groupnorm_kernel,
        out_shape=jax.ShapeDtypeStruct((B, C * H, W), jnp.float32),
        grid=(B, GROUPS),
        in_specs=[
            pl.BlockSpec((1, CG * Hd, Wd), lambda b, g: (b, g, 0)),
            pl.BlockSpec((H, Hd), lambda b, g: (0, 0)),
            pl.BlockSpec((Wd, W), lambda b, g: (0, 0)),
            pl.BlockSpec(memory_space=pltpu.MemorySpace.SMEM),       # gamma
            pl.BlockSpec(memory_space=pltpu.MemorySpace.SMEM),       # beta
        ],
        out_specs=pl.BlockSpec((1, CG * H, W), lambda b, g: (b, g, 0)),
        compiler_params=_cparams(("parallel", "parallel"), need),
    )(x2, params['ah'], params['awt'], params['gn_gamma'], params['gn_beta'])
    return out.reshape(B, C, H, W)               # free contiguous reshape


# --------------------------------------------------------------------------
# Forward pass
# --------------------------------------------------------------------------

def meteo_attention_forward(coarse_precip, meteo_conditions, params):
    B, _, H, W = coarse_precip.shape
    q_cm, kv_cm = downsample_conv(coarse_precip, meteo_conditions, params)
    attn_cm = cross_attention(q_cm, kv_cm, params)       # (B, 64, L) f32
    return upsample_groupnorm(attn_cm, params, H, W)


# --------------------------------------------------------------------------
# Deterministic parameter initialization (same shapes as the PyTorch module)
# --------------------------------------------------------------------------

def interp_matrix(out_size, in_size):
    """1-D PyTorch bilinear (align_corners=False) interpolation matrix."""
    scale = in_size / out_size
    A = np.zeros((out_size, in_size), dtype=np.float32)
    for j in range(out_size):
        s = (j + 0.5) * scale - 0.5
        s = max(s, 0.0)
        i0 = int(np.floor(s))
        i1 = min(i0 + 1, in_size - 1)
        w1 = s - i0
        A[j, i0] += 1.0 - w1
        A[j, i1] += w1
    return A


def init_params(key, H, W, precip_channels=1, meteo_channels=6):
    keys = jax.random.split(key, 10)

    def rnd(k, shape, scale=0.1):
        return scale * jax.random.normal(k, shape, dtype=jnp.float32)

    Hd, Wd = H // DOWN, W // DOWN
    q_scale = 1.0 / math.sqrt(HEAD_DIM)

    precip_w = rnd(keys[0], (OUT_CH, precip_channels, 3, 3))
    precip_b = rnd(keys[1], (OUT_CH,))
    meteo_w = rnd(keys[2], (OUT_CH, meteo_channels, 3, 3))
    meteo_b = rnd(keys[3], (OUT_CH,))
    in_proj_w = rnd(keys[4], (3 * OUT_CH, OUT_CH))    # MHA in_proj_weight
    in_proj_b = rnd(keys[5], (3 * OUT_CH,))           # MHA in_proj_bias
    out_proj_w = rnd(keys[6], (OUT_CH, OUT_CH))       # MHA out_proj.weight
    out_proj_b = rnd(keys[7], (OUT_CH,))              # MHA out_proj.bias
    gn_w = 1.0 + rnd(keys[8], (OUT_CH,))              # GroupNorm weight
    gn_b = rnd(keys[9], (OUT_CH,))                    # GroupNorm bias

    # Conv weights in tap-major im2col layout: column index (kh*3+kw)*cin + c.
    pw_col = precip_w.transpose(0, 2, 3, 1).reshape(OUT_CH, precip_channels * 9)
    mw_col = meteo_w.transpose(0, 2, 3, 1).reshape(OUT_CH, meteo_channels * 9)

    wq = in_proj_w[0:OUT_CH] * q_scale                 # pre-scaled query proj
    bq = in_proj_b[0:OUT_CH] * q_scale
    wkv = in_proj_w[OUT_CH:3 * OUT_CH]                 # fused K|V proj
    bkv = in_proj_b[OUT_CH:3 * OUT_CH]

    # Fold the attention input projections into the conv weights (review #1):
    #   q  = Wq  @ (Wp @ P + bp) + bq  = (Wq @ Wp) @ P + (Wq @ bp + bq)
    #   kv = Wkv @ (Wm @ P + bm) + bkv = (Wkv @ Wm) @ P + (Wkv @ bm + bkv)
    wq_fold = wq @ pw_col                               # (64, 9*cpc)
    bq_fold = wq @ precip_b + bq                        # (64,)
    wkv_fold = wkv @ mw_col                             # (128, 9*cmc)
    bkv_fold = wkv @ meteo_b + bkv                      # (128,)

    params = {
        'wq_fold': wq_fold,
        'bq_fold': bq_fold.reshape(OUT_CH, 1),
        'wkv_fold': wkv_fold,
        'bkv_fold': bkv_fold.reshape(2 * OUT_CH, 1),
        'wo': out_proj_w.astype(MM_DTYPE),              # bf16 (review #10)
        'bo': out_proj_b.reshape(OUT_CH, 1),
        'gn_gamma': gn_w,                                # SMEM scalars
        'gn_beta': gn_b,
        # Bilinear resampling matrices (align_corners=False).
        'dh': jnp.asarray(interp_matrix(Hd, H)),         # (Hd, H)
        'dwt': jnp.asarray(interp_matrix(Wd, W).T),      # (W, Wd)
        'ah': jnp.asarray(interp_matrix(H, Hd)),         # (H, Hd)
        'awt': jnp.asarray(interp_matrix(W, Wd).T),      # (Wd, W)
    }
    return params


if __name__ == "__main__":
    key = jax.random.PRNGKey(0)
    k1, k2, kp = jax.random.split(key, 3)
    B, H, W = 2, 16, 16
    coarse_precip = jax.random.normal(k1, (B, 1, H, W), dtype=jnp.float32)
    meteo_conditions = jax.random.normal(k2, (B, 6, H, W), dtype=jnp.float32)
    params = init_params(kp, H, W)

    out = meteo_attention_forward(coarse_precip, meteo_conditions, params)
    out = jax.block_until_ready(out)
    assert out.shape == (B, OUT_CH, H, W), out.shape
    assert bool(jnp.all(jnp.isfinite(out)))
    print("KERNEL_OK")
</pallas_src>

<mosaic_0001>
module attributes {stable_mosaic.version = 11 : i64} {
  func.func @_downsample_conv_kernel(%arg0: i32, %arg1: memref<1x16x16xf32, #tpu.memory_space<vmem>>, %arg2: memref<1x96x16xf32, #tpu.memory_space<vmem>>, %arg3: memref<4x16xf32, #tpu.memory_space<vmem>>, %arg4: memref<16x4xf32, #tpu.memory_space<vmem>>, %arg5: memref<64x9xf32, #tpu.memory_space<vmem>>, %arg6: memref<64x1xf32, #tpu.memory_space<vmem>>, %arg7: memref<128x54xf32, #tpu.memory_space<vmem>>, %arg8: memref<128x1xf32, #tpu.memory_space<vmem>>, %arg9: memref<1x64x16xbf16, #tpu.memory_space<vmem>>, %arg10: memref<1x128x16xbf16, #tpu.memory_space<vmem>>, %arg11: memref<6x6x6xf32, #tpu.memory_space<vmem>>, %arg12: memref<54x4x4xf32, #tpu.memory_space<vmem>>, %arg13: memref<54x16xf32, #tpu.memory_space<vmem>>) attributes {dimension_semantics = [#tpu.dimension_semantics<parallel>], iteration_bounds = array<i64: 2>, scalar_prefetch = 0 : i64, scratch_operands = 3 : i64, tpu.core_type = #tpu.core_type<tc>, window_params = [{transform_indices = @transform_0, window_bounds = array<i64: 1, 16, 16>}, {transform_indices = @transform_1, window_bounds = array<i64: 1, 96, 16>}, {pipeline_mode = #tpu.pipeline_mode<synchronous>, transform_indices = @transform_2, window_bounds = array<i64: 4, 16>}, {pipeline_mode = #tpu.pipeline_mode<synchronous>, transform_indices = @transform_3, window_bounds = array<i64: 16, 4>}, {pipeline_mode = #tpu.pipeline_mode<synchronous>, transform_indices = @transform_4, window_bounds = array<i64: 64, 9>}, {pipeline_mode = #tpu.pipeline_mode<synchronous>, transform_indices = @transform_5, window_bounds = array<i64: 64, 1>}, {pipeline_mode = #tpu.pipeline_mode<synchronous>, transform_indices = @transform_6, window_bounds = array<i64: 128, 54>}, {pipeline_mode = #tpu.pipeline_mode<synchronous>, transform_indices = @transform_7, window_bounds = array<i64: 128, 1>}, {transform_indices = @transform_8, window_bounds = array<i64: 1, 64, 16>}, {transform_indices = @transform_9, window_bounds = array<i64: 1, 128, 16>}]} {
    %c0 = arith.constant 0 : index
    %c0_0 = arith.constant 0 : index
    %0 = vector.load %arg3[%c0, %c0_0] : memref<4x16xf32, #tpu.memory_space<vmem>>, vector<4x16xf32>
    %c0_1 = arith.constant 0 : index
    %c0_2 = arith.constant 0 : index
    %1 = vector.load %arg4[%c0_1, %c0_2] : memref<16x4xf32, #tpu.memory_space<vmem>>, vector<16x4xf32>
    %cst = arith.constant 0.000000e+00 : f32
    %2 = vector.broadcast %cst : f32 to vector<6x1x6xf32>
    %cst_3 = arith.constant 0.000000e+00 : f32
    %3 = vector.broadcast %cst_3 : f32 to vector<6x6x1xf32>
    %c0_4 = arith.constant 0 : index
    %c0_5 = arith.constant 0 : index
    %c0_6 = arith.constant 0 : index
    %4 = vector.load %arg11[%c0_4, %c0_5, %c0_6] : memref<6x6x6xf32, #tpu.memory_space<vmem>>, vector<6x1x6xf32>
    tpu.vector_store %arg11[%c0_4, %c0_5, %c0_6], %2 {strides = array<i32>} : memref<6x6x6xf32, #tpu.memory_space<vmem>>, vector<6x1x6xf32>,
    %c0_7 = arith.constant 0 : index
    %c5 = arith.constant 5 : index
    %c0_8 = arith.constant 0 : index
    %5 = vector.load %arg11[%c0_7, %c5, %c0_8] : memref<6x6x6xf32, #tpu.memory_space<vmem>>, vector<6x1x6xf32>
    tpu.vector_store %arg11[%c0_7, %c5, %c0_8], %2 {strides = array<i32>} : memref<6x6x6xf32, #tpu.memory_space<vmem>>, vector<6x1x6xf32>,
    %c0_9 = arith.constant 0 : index
    %c0_10 = arith.constant 0 : index
    %c0_11 = arith.constant 0 : index
    %6 = vector.load %arg11[%c0_9, %c0_10, %c0_11] : memref<6x6x6xf32, #tpu.memory_space<vmem>>, vector<6x6x1xf32>
    tpu.vector_store %arg11[%c0_9, %c0_10, %c0_11], %3 {strides = array<i32>} : memref<6x6x6xf32, #tpu.memory_space<vmem>>, vector<6x6x1xf32>,
    %c0_12 = arith.constant 0 : index
    %c0_13 = arith.constant 0 : index
    %c5_14 = arith.constant 5 : index
    %7 = vector.load %arg11[%c0_12, %c0_13, %c5_14] : memref<6x6x6xf32, #tpu.memory_space<vmem>>, vector<6x6x1xf32>
    tpu.vector_store %arg11[%c0_12, %c0_13, %c5_14], %3 {strides = array<i32>} : memref<6x6x6xf32, #tpu.memory_space<vmem>>, vector<6x6x1xf32>,
    %c0_15 = arith.constant 0 : index
    %c0_16 = arith.constant 0 : index
    %c0_17 = arith.constant 0 : index
    %8 = vector.load %arg1[%c0_15, %c0_16, %c0_17] : memref<1x16x16xf32, #tpu.memory_space<vmem>>, vector<1x16x16xf32>
    %9 = vector.shape_cast %8 : vector<1x16x16xf32> to vector<16x16xf32>
    %cst_18 = arith.constant dense<0.000000e+00> : vector<16x4xf32>
    %10 = tpu.matmul %9, %1, %cst_18 {dimension_numbers = #tpu.dot_dimension_numbers<[1], [0], [0], [1], [0, 0, 1, 1], [], []>} : vector<16x16xf32>, vector<16x4xf32>, vector<16x4xf32> -> vector<16x4xf32>
    %cst_19 = arith.constant dense<0.000000e+00> : vector<4x4xf32>
    %11 = tpu.matmul %0, %10, %cst_19 {dimension_numbers = #tpu.dot_dimension_numbers<[1], [0], [0], [1], [0, 0, 1, 1], [], []>} : vector<4x16xf32>, vector<16x4xf32>, vector<4x4xf32> -> vector<4x4xf32>
    %c0_20 = arith.constant 0 : index
    %c1 = arith.constant 1 : index
    %c1_21 = arith.constant 1 : index
    %12 = vector.load %arg11[%c0_20, %c1, %c1_21] : memref<6x6x6xf32, #tpu.memory_space<vmem>>, vector<1x4x4xf32>
    %13 = vector.shape_cast %12 : vector<1x4x4xf32> to vector<4x4xf32>
    %14 = vector.shape_cast %11 : vector<4x4xf32> to vector<1x4x4xf32>
    tpu.vector_store %arg11[%c0_20, %c1, %c1_21], %14 {strides = array<i32>} : memref<6x6x6xf32, #tpu.memory_space<vmem>>, vector<1x4x4xf32>,
    %c0_22 = arith.constant 0 : index
    %c0_23 = arith.constant 0 : index
    %c0_24 = arith.constant 0 : index
    %15 = vector.load %arg11[%c0_22, %c0_23, %c0_24] : memref<6x6x6xf32, #tpu.memory_space<vmem>>, vector<1x4x4xf32>
    %c0_25 = arith.constant 0 : index
    %c0_26 = arith.constant 0 : index
    %c0_27 = arith.constant 0 : index
    %16 = vector.load %arg12[%c0_25, %c0_26, %c0_27] : memref<54x4x4xf32, #tpu.memory_space<vmem>>, vector<1x4x4xf32>
    tpu.vector_store %arg12[%c0_25, %c0_26, %c0_27], %15 {strides = array<i32>} : memref<54x4x4xf32, #tpu.memory_space<vmem>>, vector<1x4x4xf32>,
    %c0_28 = arith.constant 0 : index
    %c0_29 = arith.constant 0 : index
    %c1_30 = arith.constant 1 : index
    %17 = vector.load %arg11[%c0_28, %c0_29, %c1_30] : memref<6x6x6xf32, #tpu.memory_space<vmem>>, vector<1x4x4xf32>
    %c1_31 = arith.constant 1 : index
    %c0_32 = arith.constant 0 : index
    %c0_33 = arith.constant 0 : index
    %18 = vector.load %arg12[%c1_31, %c0_32, %c0_33] : memref<54x4x4xf32, #tpu.memory_space<vmem>>, vector<1x4x4xf32>
    tpu.vector_store %arg12[%c1_31, %c0_32, %c0_33], %17 {strides = array<i32>} : memref<54x4x4xf32, #tpu.memory_space<vmem>>, vector<1x4x4xf32>,
    %c0_34 = arith.constant 0 : index
    %c0_35 = arith.constant 0 : index
    %c2 = arith.constant 2 : index
    %19 = vector.load %arg11[%c0_34, %c0_35, %c2] : memref<6x6x6xf32, #tpu.memory_space<vmem>>, vector<1x4x4xf32>
    %c2_36 = arith.constant 2 : index
    %c0_37 = arith.constant 0 : index
    %c0_38 = arith.constant 0 : index
    %20 = vector.load %arg12[%c2_36, %c0_37, %c0_38] : memref<54x4x4xf32, #tpu.memory_space<vmem>>, vector<1x4x4xf32>
    tpu.vector_store %arg12[%c2_36, %c0_37, %c0_38], %19 {strides = array<i32>} : memref<54x4x4xf32, #tpu.memory_space<vmem>>, vector<1x4x4xf32>,
    %c0_39 = arith.constant 0 : index
    %c1_40 = arith.constant 1 : index
    %c0_41 = arith.constant 0 : index
    %21 = vector.load %arg11[%c0_39, %c1_40, %c0_41] : memref<6x6x6xf32, #tpu.memory_space<vmem>>, vector<1x4x4xf32>
    %c3 = arith.constant 3 : index
    %c0_42 = arith.constant 0 : index
    %c0_43 = arith.constant 0 : index
    %22 = vector.load %arg12[%c3, %c0_42, %c0_43] : memref<54x4x4xf32, #tpu.memory_space<vmem>>, vector<1x4x4xf32>
    tpu.vector_store %arg12[%c3, %c0_42, %c0_43], %21 {strides = array<i32>} : memref<54x4x4xf32, #tpu.memory_space<vmem>>, vector<1x4x4xf32>,
    %c0_44 = arith.constant 0 : index
    %c1_45 = arith.constant 1 : index
    %c1_46 = arith.constant 1 : index
    %23 = vector.load %arg11[%c0_44, %c1_45, %c1_46] : memref<6x6x6xf32, #tpu.memory_space<vmem>>, vector<1x4x4xf32>
    %c4 = arith.constant 4 : index
    %c0_47 = arith.constant 0 : index
    %c0_48 = arith.constant 0 : index
    %24 = vector.load %arg12[%c4, %c0_47, %c0_48] : memref<54x4x4xf32, #tpu.memory_space<vmem>>, vector<1x4x4xf32>
    tpu.vector_store %arg12[%c4, %c0_47, %c0_48], %23 {strides = array<i32>} : memref<54x4x4xf32, #tpu.memory_space<vmem>>, vector<1x4x4xf32>,
    %c0_49 = arith.constant 0 : index
    %c1_50 = arith.constant 1 : index
    %c2_51 = arith.constant 2 : index
    %25 = vector.load %arg11[%c0_49, %c1_50, %c2_51] : memref<6x6x6xf32, #tpu.memory_space<vmem>>, vector<1x4x4xf32>
    %c5_52 = arith.constant 5 : index
    %c0_53 = arith.constant 0 : index
    %c0_54 = arith.constant 0 : index
    %26 = vector.load %arg12[%c5_52, %c0_53, %c0_54] : memref<54x4x4xf32, #tpu.memory_space<vmem>>, vector<1x4x4xf32>
    tpu.vector_store %arg12[%c5_52, %c0_53, %c0_54], %25 {strides = array<i32>} : memref<54x4x4xf32, #tpu.memory_space<vmem>>, vector<1x4x4xf32>,
    %c0_55 = arith.constant 0 : index
    %c2_56 = arith.constant 2 : index
    %c0_57 = arith.constant 0 : index
    %27 = vector.load %arg11[%c0_55, %c2_56, %c0_57] : memref<6x6x6xf32, #tpu.memory_space<vmem>>, vector<1x4x4xf32>
    %c6 = arith.constant 6 : index
    %c0_58 = arith.constant 0 : index
    %c0_59 = arith.constant 0 : index
    %28 = vector.load %arg12[%c6, %c0_58, %c0_59] : memref<54x4x4xf32, #tpu.memory_space<vmem>>, vector<1x4x4xf32>
    tpu.vector_store %arg12[%c6, %c0_58, %c0_59], %27 {strides = array<i32>} : memref<54x4x4xf32, #tpu.memory_space<vmem>>, vector<1x4x4xf32>,
    %c0_60 = arith.constant 0 : index
    %c2_61 = arith.constant 2 : index
    %c1_62 = arith.constant 1 : index
    %29 = vector.load %arg11[%c0_60, %c2_61, %c1_62] : memref<6x6x6xf32, #tpu.memory_space<vmem>>, vector<1x4x4xf32>
    %c7 = arith.constant 7 : index
    %c0_63 = arith.constant 0 : index
    %c0_64 = arith.constant 0 : index
    %30 = vector.load %arg12[%c7, %c0_63, %c0_64] : memref<54x4x4xf32, #tpu.memory_space<vmem>>, vector<1x4x4xf32>
    tpu.vector_store %arg12[%c7, %c0_63, %c0_64], %29 {strides = array<i32>} : memref<54x4x4xf32, #tpu.memory_space<vmem>>, vector<1x4x4xf32>,
    %c0_65 = arith.constant 0 : index
    %c2_66 = arith.constant 2 : index
    %c2_67 = arith.constant 2 : index
    %31 = vector.load %arg11[%c0_65, %c2_66, %c2_67] : memref<6x6x6xf32, #tpu.memory_space<vmem>>, vector<1x4x4xf32>
    %c8 = arith.constant 8 : index
    %c0_68 = arith.constant 0 : index
    %c0_69 = arith.constant 0 : index
    %32 = vector.load %arg12[%c8, %c0_68, %c0_69] : memref<54x4x4xf32, #tpu.memory_space<vmem>>, vector<1x4x4xf32>
    tpu.vector_store %arg12[%c8, %c0_68, %c0_69], %31 {strides = array<i32>} : memref<54x4x4xf32, #tpu.memory_space<vmem>>, vector<1x4x4xf32>,
    %c0_70 = arith.constant 0 : index
    %c0_71 = arith.constant 0 : index
    %c0_72 = arith.constant 0 : index
    %33 = vector.load %arg12[%c0_70, %c0_71, %c0_72] : memref<54x4x4xf32, #tpu.memory_space<vmem>>, vector<9x1x4xf32>
    %34 = vector.shape_cast %33 : vector<9x1x4xf32> to vector<9x4xf32>
    %c0_73 = arith.constant 0 : index
    %c0_74 = arith.constant 0 : index
    %35 = vector.load %arg13[%c0_73, %c0_74] : memref<54x16xf32, #tpu.memory_space<vmem>>, vector<9x4xf32>
    tpu.vector_store %arg13[%c0_73, %c0_74], %34 {strides = array<i32>} : memref<54x16xf32, #tpu.memory_space<vmem>>, vector<9x4xf32>,
    %c0_75 = arith.constant 0 : index
    %c1_76 = arith.constant 1 : index
    %c0_77 = arith.constant 0 : index
    %36 = vector.load %arg12[%c0_75, %c1_76, %c0_77] : memref<54x4x4xf32, #tpu.memory_space<vmem>>, vector<9x1x4xf32>
    %37 = vector.shape_cast %36 : vector<9x1x4xf32> to vector<9x4xf32>
    %c0_78 = arith.constant 0 : index
    %c4_79 = arith.constant 4 : index
    %38 = vector.load %arg13[%c0_78, %c4_79] : memref<54x16xf32, #tpu.memory_space<vmem>>, vector<9x4xf32>
    tpu.vector_store %arg13[%c0_78, %c4_79], %37 {strides = array<i32>} : memref<54x16xf32, #tpu.memory_space<vmem>>, vector<9x4xf32>,
    %c0_80 = arith.constant 0 : index
    %c2_81 = arith.constant 2 : index
    %c0_82 = arith.constant 0 : index
    %39 = vector.load %arg12[%c0_80, %c2_81, %c0_82] : memref<54x4x4xf32, #tpu.memory_space<vmem>>, vector<9x1x4xf32>
    %40 = vector.shape_cast %39 : vector<9x1x4xf32> to vector<9x4xf32>
    %c0_83 = arith.constant 0 : index
    %c8_84 = arith.constant 8 : index
    %41 = vector.load %arg13[%c0_83, %c8_84] : memref<54x16xf32, #tpu.memory_space<vmem>>, vector<9x4xf32>
    tpu.vector_store %arg13[%c0_83, %c8_84], %40 {strides = array<i32>} : memref<54x16xf32, #tpu.memory_space<vmem>>, vector<9x4xf32>,
    %c0_85 = arith.constant 0 : index
    %c3_86 = arith.constant 3 : index
    %c0_87 = arith.constant 0 : index
    %42 = vector.load %arg12[%c0_85, %c3_86, %c0_87] : memref<54x4x4xf32, #tpu.memory_space<vmem>>, vector<9x1x4xf32>
    %43 = vector.shape_cast %42 : vector<9x1x4xf32> to vector<9x4xf32>
    %c0_88 = arith.constant 0 : index
    %c12 = arith.constant 12 : index
    %44 = vector.load %arg13[%c0_88, %c12] : memref<54x16xf32, #tpu.memory_space<vmem>>, vector<9x4xf32>
    tpu.vector_store %arg13[%c0_88, %c12], %43 {strides = array<i32>} : memref<54x16xf32, #tpu.memory_space<vmem>>, vector<9x4xf32>,
    %c0_89 = arith.constant 0 : index
    %c0_90 = arith.constant 0 : index
    %45 = vector.load %arg5[%c0_89, %c0_90] : memref<64x9xf32, #tpu.memory_space<vmem>>, vector<64x9xf32>
    %c0_91 = arith.constant 0 : index
    %c0_92 = arith.constant 0 : index
    %46 = vector.load %arg13[%c0_91, %c0_92] : memref<54x16xf32, #tpu.memory_space<vmem>>, vector<9x16xf32>
    %cst_93 = arith.constant dense<0.000000e+00> : vector<64x16xf32>
    %47 = tpu.matmul %45, %46, %cst_93 {dimension_numbers = #tpu.dot_dimension_numbers<[1], [0], [0], [1], [0, 0, 1, 1], [], []>} : vector<64x9xf32>, vector<9x16xf32>, vector<64x16xf32> -> vector<64x16xf32>
    %c0_94 = arith.constant 0 : index
    %c0_95 = arith.constant 0 : index
    %48 = vector.load %arg6[%c0_94, %c0_95] : memref<64x1xf32, #tpu.memory_space<vmem>>, vector<64x1xf32>
    %49 = vector.broadcast %48 : vector<64x1xf32> to vector<64x16xf32>
    %50 = arith.addf %47, %49 : vector<64x16xf32>
    %51 = arith.truncf %50 : vector<64x16xf32> to vector<64x16xbf16>
    %c0_96 = arith.constant 0 : index
    %c0_97 = arith.constant 0 : index
    %c0_98 = arith.constant 0 : index
    %52 = vector.load %arg9[%c0_96, %c0_97, %c0_98] : memref<1x64x16xbf16, #tpu.memory_space<vmem>>, vector<1x64x16xbf16>
    %53 = vector.shape_cast %52 : vector<1x64x16xbf16> to vector<64x16xbf16>
    %54 = vector.shape_cast %51 : vector<64x16xbf16> to vector<1x64x16xbf16>
    tpu.vector_store %arg9[%c0_96, %c0_97, %c0_98], %54 {strides = array<i32>} : memref<1x64x16xbf16, #tpu.memory_space<vmem>>, vector<1x64x16xbf16>,
    %c0_99 = arith.constant 0 : index
    %c0_100 = arith.constant 0 : index
    %c0_101 = arith.constant 0 : index
    %55 = vector.load %arg2[%c0_99, %c0_100, %c0_101] : memref<1x96x16xf32, #tpu.memory_space<vmem>>, vector<1x96x16xf32>
    %56 = vector.shape_cast %55 : vector<1x96x16xf32> to vector<96x16xf32>
    %cst_102 = arith.constant dense<0.000000e+00> : vector<96x4xf32>
    %57 = tpu.matmul %56, %1, %cst_102 {dimension_numbers = #tpu.dot_dimension_numbers<[1], [0], [0], [1], [0, 0, 1, 1], [], []>} : vector<96x16xf32>, vector<16x4xf32>, vector<96x4xf32> -> vector<96x4xf32>
    %58 = vector.extract_strided_slice %57 {offsets = [0, 0], sizes = [16, 4], strides = [1, 1]} : vector<96x4xf32> to vector<16x4xf32>
    %cst_103 = arith.constant dense<0.000000e+00> : vector<4x4xf32>
    %59 = tpu.matmul %0, %58, %cst_103 {dimension_numbers = #tpu.dot_dimension_numbers<[1], [0], [0], [1], [0, 0, 1, 1], [], []>} : vector<4x16xf32>, vector<16x4xf32>, vector<4x4xf32> -> vector<4x4xf32>
    %c0_104 = arith.constant 0 : index
    %c1_105 = arith.constant 1 : index
    %c1_106 = arith.constant 1 : index
    %60 = vector.load %arg11[%c0_104, %c1_105, %c1_106] : memref<6x6x6xf32, #tpu.memory_space<vmem>>, vector<1x4x4xf32>
    %61 = vector.shape_cast %60 : vector<1x4x4xf32> to vector<4x4xf32>
    %62 = vector.shape_cast %59 : vector<4x4xf32> to vector<1x4x4xf32>
    tpu.vector_store %arg11[%c0_104, %c1_105, %c1_106], %62 {strides = array<i32>} : memref<6x6x6xf32, #tpu.memory_space<vmem>>, vector<1x4x4xf32>,
    %63 = vector.extract_strided_slice %57 {offsets = [16, 0], sizes = [16, 4], strides = [1, 1]} : vector<96x4xf32> to vector<16x4xf32>
    %cst_107 = arith.constant dense<0.000000e+00> : vector<4x4xf32>
    %64 = tpu.matmul %0, %63, %cst_107 {dimension_numbers = #tpu.dot_dimension_numbers<[1], [0], [0], [1], [0, 0, 1, 1], [], []>} : vector<4x16xf32>, vector<16x4xf32>, vector<4x4xf32> -> vector<4x4xf32>
    %c1_108 = arith.constant 1 : index
    %c1_109 = arith.constant 1 : index
    %c1_110 = arith.constant 1 : index
    %65 = vector.load %arg11[%c1_108, %c1_109, %c1_110] : memref<6x6x6xf32, #tpu.memory_space<vmem>>, vector<1x4x4xf32>
    %66 = vector.shape_cast %65 : vector<1x4x4xf32> to vector<4x4xf32>
    %67 = vector.shape_cast %64 : vector<4x4xf32> to vector<1x4x4xf32>
    tpu.vector_store %arg11[%c1_108, %c1_109, %c1_110], %67 {strides = array<i32>} : memref<6x6x6xf32, #tpu.memory_space<vmem>>, vector<1x4x4xf32>,
    %68 = vector.extract_strided_slice %57 {offsets = [32, 0], sizes = [16, 4], strides = [1, 1]} : vector<96x4xf32> to vector<16x4xf32>
    %cst_111 = arith.constant dense<0.000000e+00> : vector<4x4xf32>
    %69 = tpu.matmul %0, %68, %cst_111 {dimension_numbers = #tpu.dot_dimension_numbers<[1], [0], [0], [1], [0, 0, 1, 1], [], []>} : vector<4x16xf32>, vector<16x4xf32>, vector<4x4xf32> -> vector<4x4xf32>
    %c2_112 = arith.constant 2 : index
    %c1_113 = arith.constant 1 : index
    %c1_114 = arith.constant 1 : index
    %70 = vector.load %arg11[%c2_112, %c1_113, %c1_114] : memref<6x6x6xf32, #tpu.memory_space<vmem>>, vector<1x4x4xf32>
    %71 = vector.shape_cast %70 : vector<1x4x4xf32> to vector<4x4xf32>
    %72 = vector.shape_cast %69 : vector<4x4xf32> to vector<1x4x4xf32>
    tpu.vector_store %arg11[%c2_112, %c1_113, %c1_114], %72 {strides = array<i32>} : memref<6x6x6xf32, #tpu.memory_space<vmem>>, vector<1x4x4xf32>,
    %73 = vector.extract_strided_slice %57 {offsets = [48, 0], sizes = [16, 4], strides = [1, 1]} : vector<96x4xf32> to vector<16x4xf32>
    %cst_115 = arith.constant dense<0.000000e+00> : vector<4x4xf32>
    %74 = tpu.matmul %0, %73, %cst_115 {dimension_numbers = #tpu.dot_dimension_numbers<[1], [0], [0], [1], [0, 0, 1, 1], [], []>} : vector<4x16xf32>, vector<16x4xf32>, vector<4x4xf32> -> vector<4x4xf32>
    %c3_116 = arith.constant 3 : index
    %c1_117 = arith.constant 1 : index
    %c1_118 = arith.constant 1 : index
    %75 = vector.load %arg11[%c3_116, %c1_117, %c1_118] : memref<6x6x6xf32, #tpu.memory_space<vmem>>, vector<1x4x4xf32>
    %76 = vector.shape_cast %75 : vector<1x4x4xf32> to vector<4x4xf32>
    %77 = vector.shape_cast %74 : vector<4x4xf32> to vector<1x4x4xf32>
    tpu.vector_store %arg11[%c3_116, %c1_117, %c1_118], %77 {strides = array<i32>} : memref<6x6x6xf32, #tpu.memory_space<vmem>>, vector<1x4x4xf32>,
    %78 = vector.extract_strided_slice %57 {offsets = [64, 0], sizes = [16, 4], strides = [1, 1]} : vector<96x4xf32> to vector<16x4xf32>
    %cst_119 = arith.constant dense<0.000000e+00> : vector<4x4xf32>
    %79 = tpu.matmul %0, %78, %cst_119 {dimension_numbers = #tpu.dot_dimension_numbers<[1], [0], [0], [1], [0, 0, 1, 1], [], []>} : vector<4x16xf32>, vector<16x4xf32>, vector<4x4xf32> -> vector<4x4xf32>
    %c4_120 = arith.constant 4 : index
    %c1_121 = arith.constant 1 : index
    %c1_122 = arith.constant 1 : index
    %80 = vector.load %arg11[%c4_120, %c1_121, %c1_122] : memref<6x6x6xf32, #tpu.memory_space<vmem>>, vector<1x4x4xf32>
    %81 = vector.shape_cast %80 : vector<1x4x4xf32> to vector<4x4xf32>
    %82 = vector.shape_cast %79 : vector<4x4xf32> to vector<1x4x4xf32>
    tpu.vector_store %arg11[%c4_120, %c1_121, %c1_122], %82 {strides = array<i32>} : memref<6x6x6xf32, #tpu.memory_space<vmem>>, vector<1x4x4xf32>,
    %83 = vector.extract_strided_slice %57 {offsets = [80, 0], sizes = [16, 4], strides = [1, 1]} : vector<96x4xf32> to vector<16x4xf32>
    %cst_123 = arith.constant dense<0.000000e+00> : vector<4x4xf32>
    %84 = tpu.matmul %0, %83, %cst_123 {dimension_numbers = #tpu.dot_dimension_numbers<[1], [0], [0], [1], [0, 0, 1, 1], [], []>} : vector<4x16xf32>, vector<16x4xf32>, vector<4x4xf32> -> vector<4x4xf32>
    %c5_124 = arith.constant 5 : index
    %c1_125 = arith.constant 1 : index
    %c1_126 = arith.constant 1 : index
    %85 = vector.load %arg11[%c5_124, %c1_125, %c1_126] : memref<6x6x6xf32, #tpu.memory_space<vmem>>, vector<1x4x4xf32>
    %86 = vector.shape_cast %85 : vector<1x4x4xf32> to vector<4x4xf32>
    %87 = vector.shape_cast %84 : vector<4x4xf32> to vector<1x4x4xf32>
    tpu.vector_store %arg11[%c5_124, %c1_125, %c1_126], %87 {strides = array<i32>} : memref<6x6x6xf32, #tpu.memory_space<vmem>>, vector<1x4x4xf32>,
    %c0_127 = arith.constant 0 : index
    %c0_128 = arith.constant 0 : index
    %c0_129 = arith.constant 0 : index
    %88 = vector.load %arg11[%c0_127, %c0_128, %c0_129] : memref<6x6x6xf32, #tpu.memory_space<vmem>>, vector<6x4x4xf32>
    %c0_130 = arith.constant 0 : index
    %c0_131 = arith.constant 0 : index
    %c0_132 = arith.constant 0 : index
    %89 = vector.load %arg12[%c0_130, %c0_131, %c0_132] : memref<54x4x4xf32, #tpu.memory_space<vmem>>, vector<6x4x4xf32>
    tpu.vector_store %arg12[%c0_130, %c0_131, %c0_132], %88 {strides = array<i32>} : memref<54x4x4xf32, #tpu.memory_space<vmem>>, vector<6x4x4xf32>,
    %c0_133 = arith.constant 0 : index
    %c0_134 = arith.constant 0 : index
    %c1_135 = arith.constant 1 : index
    %90 = vector.load %arg11[%c0_133, %c0_134, %c1_135] : memref<6x6x6xf32, #tpu.memory_space<vmem>>, vector<6x4x4xf32>
    %c6_136 = arith.constant 6 : index
    %c0_137 = arith.constant 0 : index
    %c0_138 = arith.constant 0 : index
    %91 = vector.load %arg12[%c6_136, %c0_137, %c0_138] : memref<54x4x4xf32, #tpu.memory_space<vmem>>, vector<6x4x4xf32>
    tpu.vector_store %arg12[%c6_136, %c0_137, %c0_138], %90 {strides = array<i32>} : memref<54x4x4xf32, #tpu.memory_space<vmem>>, vector<6x4x4xf32>,
    %c0_139 = arith.constant 0 : index
    %c0_140 = arith.constant 0 : index
    %c2_141 = arith.constant 2 : index
    %92 = vector.load %arg11[%c0_139, %c0_140, %c2_141] : memref<6x6x6xf32, #tpu.memory_space<vmem>>, vector<6x4x4xf32>
    %c12_142 = arith.constant 12 : index
    %c0_143 = arith.constant 0 : index
    %c0_144 = arith.constant 0 : index
    %93 = vector.load %arg12[%c12_142, %c0_143, %c0_144] : memref<54x4x4xf32, #tpu.memory_space<vmem>>, vector<6x4x4xf32>
    tpu.vector_store %arg12[%c12_142, %c0_143, %c0_144], %92 {strides = array<i32>} : memref<54x4x4xf32, #tpu.memory_space<vmem>>, vector<6x4x4xf32>,
    %c0_145 = arith.constant 0 : index
    %c1_146 = arith.constant 1 : index
    %c0_147 = arith.constant 0 : index
    %94 = vector.load %arg11[%c0_145, %c1_146, %c0_147] : memref<6x6x6xf32, #tpu.memory_space<vmem>>, vector<6x4x4xf32>
    %c18 = arith.constant 18 : index
    %c0_148 = arith.constant 0 : index
    %c0_149 = arith.constant 0 : index
    %95 = vector.load %arg12[%c18, %c0_148, %c0_149] : memref<54x4x4xf32, #tpu.memory_space<vmem>>, vector<6x4x4xf32>
    tpu.vector_store %arg12[%c18, %c0_148, %c0_149], %94 {strides = array<i32>} : memref<54x4x4xf32, #tpu.memory_space<vmem>>, vector<6x4x4xf32>,
    %c0_150 = arith.constant 0 : index
    %c1_151 = arith.constant 1 : index
    %c1_152 = arith.constant 1 : index
    %96 = vector.load %arg11[%c0_150, %c1_151, %c1_152] : memref<6x6x6xf32, #tpu.memory_space<vmem>>, vector<6x4x4xf32>
    %c24 = arith.constant 24 : index
    %c0_153 = arith.constant 0 : index
    %c0_154 = arith.constant 0 : index
    %97 = vector.load %arg12[%c24, %c0_153, %c0_154] : memref<54x4x4xf32, #tpu.memory_space<vmem>>, vector<6x4x4xf32>
    tpu.vector_store %arg12[%c24, %c0_153, %c0_154], %96 {strides = array<i32>} : memref<54x4x4xf32, #tpu.memory_space<vmem>>, vector<6x4x4xf32>,
    %c0_155 = arith.constant 0 : index
    %c1_156 = arith.constant 1 : index
    %c2_157 = arith.constant 2 : index
    %98 = vector.load %arg11[%c0_155, %c1_156, %c2_157] : memref<6x6x6xf32, #tpu.memory_space<vmem>>, vector<6x4x4xf32>
    %c30 = arith.constant 30 : index
    %c0_158 = arith.constant 0 : index
    %c0_159 = arith.constant 0 : index
    %99 = vector.load %arg12[%c30, %c0_158, %c0_159] : memref<54x4x4xf32, #tpu.memory_space<vmem>>, vector<6x4x4xf32>
    tpu.vector_store %arg12[%c30, %c0_158, %c0_159], %98 {strides = array<i32>} : memref<54x4x4xf32, #tpu.memory_space<vmem>>, vector<6x4x4xf32>,
    %c0_160 = arith.constant 0 : index
    %c2_161 = arith.constant 2 : index
    %c0_162 = arith.constant 0 : index
    %100 = vector.load %arg11[%c0_160, %c2_161, %c0_162] : memref<6x6x6xf32, #tpu.memory_space<vmem>>, vector<6x4x4xf32>
    %c36 = arith.constant 36 : index
    %c0_163 = arith.constant 0 : index
    %c0_164 = arith.constant 0 : index
    %101 = vector.load %arg12[%c36, %c0_163, %c0_164] : memref<54x4x4xf32, #tpu.memory_space<vmem>>, vector<6x4x4xf32>
    tpu.vector_store %arg12[%c36, %c0_163, %c0_164], %100 {strides = array<i32>} : memref<54x4x4xf32, #tpu.memory_space<vmem>>, vector<6x4x4xf32>,
    %c0_165 = arith.constant 0 : index
    %c2_166 = arith.constant 2 : index
    %c1_167 = arith.constant 1 : index
    %102 = vector.load %arg11[%c0_165, %c2_166, %c1_167] : memref<6x6x6xf32, #tpu.memory_space<vmem>>, vector<6x4x4xf32>
    %c42 = arith.constant 42 : index
    %c0_168 = arith.constant 0 : index
    %c0_169 = arith.constant 0 : index
    %103 = vector.load %arg12[%c42, %c0_168, %c0_169] : memref<54x4x4xf32, #tpu.memory_space<vmem>>, vector<6x4x4xf32>
    tpu.vector_store %arg12[%c42, %c0_168, %c0_169], %102 {strides = array<i32>} : memref<54x4x4xf32, #tpu.memory_space<vmem>>, vector<6x4x4xf32>,
    %c0_170 = arith.constant 0 : index
    %c2_171 = arith.constant 2 : index
    %c2_172 = arith.constant 2 : index
    %104 = vector.load %arg11[%c0_170, %c2_171, %c2_172] : memref<6x6x6xf32, #tpu.memory_space<vmem>>, vector<6x4x4xf32>
    %c48 = arith.constant 48 : index
    %c0_173 = arith.constant 0 : index
    %c0_174 = arith.constant 0 : index
    %105 = vector.load %arg12[%c48, %c0_173, %c0_174] : memref<54x4x4xf32, #tpu.memory_space<vmem>>, vector<6x4x4xf32>
    tpu.vector_store %arg12[%c48, %c0_173, %c0_174], %104 {strides = array<i32>} : memref<54x4x4xf32, #tpu.memory_space<vmem>>, vector<6x4x4xf32>,
    %c0_175 = arith.constant 0 : index
    %c0_176 = arith.constant 0 : index
    %c0_177 = arith.constant 0 : index
    %106 = vector.load %arg12[%c0_175, %c0_176, %c0_177] : memref<54x4x4xf32, #tpu.memory_space<vmem>>, vector<54x1x4xf32>
    %107 = vector.shape_cast %106 : vector<54x1x4xf32> to vector<54x4xf32>
    %c0_178 = arith.constant 0 : index
    %c0_179 = arith.constant 0 : index
    %108 = vector.load %arg13[%c0_178, %c0_179] : memref<54x16xf32, #tpu.memory_space<vmem>>, vector<54x4xf32>
    tpu.vector_store %arg13[%c0_178, %c0_179], %107 {strides = array<i32>} : memref<54x16xf32, #tpu.memory_space<vmem>>, vector<54x4xf32>,
    %c0_180 = arith.constant 0 : index
    %c1_181 = arith.constant 1 : index
    %c0_182 = arith.constant 0 : index
    %109 = vector.load %arg12[%c0_180, %c1_181, %c0_182] : memref<54x4x4xf32, #tpu.memory_space<vmem>>, vector<54x1x4xf32>
    %110 = vector.shape_cast %109 : vector<54x1x4xf32> to vector<54x4xf32>
    %c0_183 = arith.constant 0 : index
    %c4_184 = arith.constant 4 : index
    %111 = vector.load %arg13[%c0_183, %c4_184] : memref<54x16xf32, #tpu.memory_space<vmem>>, vector<54x4xf32>
    tpu.vector_store %arg13[%c0_183, %c4_184], %110 {strides = array<i32>} : memref<54x16xf32, #tpu.memory_space<vmem>>, vector<54x4xf32>,
    %c0_185 = arith.constant 0 : index
    %c2_186 = arith.constant 2 : index
    %c0_187 = arith.constant 0 : index
    %112 = vector.load %arg12[%c0_185, %c2_186, %c0_187] : memref<54x4x4xf32, #tpu.memory_space<vmem>>, vector<54x1x4xf32>
    %113 = vector.shape_cast %112 : vector<54x1x4xf32> to vector<54x4xf32>
    %c0_188 = arith.constant 0 : index
    %c8_189 = arith.constant 8 : index
    %114 = vector.load %arg13[%c0_188, %c8_189] : memref<54x16xf32, #tpu.memory_space<vmem>>, vector<54x4xf32>
    tpu.vector_store %arg13[%c0_188, %c8_189], %113 {strides = array<i32>} : memref<54x16xf32, #tpu.memory_space<vmem>>, vector<54x4xf32>,
    %c0_190 = arith.constant 0 : index
    %c3_191 = arith.constant 3 : index
    %c0_192 = arith.constant 0 : index
    %115 = vector.load %arg12[%c0_190, %c3_191, %c0_192] : memref<54x4x4xf32, #tpu.memory_space<vmem>>, vector<54x1x4xf32>
    %116 = vector.shape_cast %115 : vector<54x1x4xf32> to vector<54x4xf32>
    %c0_193 = arith.constant 0 : index
    %c12_194 = arith.constant 12 : index
    %117 = vector.load %arg13[%c0_193, %c12_194] : memref<54x16xf32, #tpu.memory_space<vmem>>, vector<54x4xf32>
    tpu.vector_store %arg13[%c0_193, %c12_194], %116 {strides = array<i32>} : memref<54x16xf32, #tpu.memory_space<vmem>>, vector<54x4xf32>,
    %c0_195 = arith.constant 0 : index
    %c0_196 = arith.constant 0 : index
    %118 = vector.load %arg7[%c0_195, %c0_196] : memref<128x54xf32, #tpu.memory_space<vmem>>, vector<128x54xf32>
    %c0_197 = arith.constant 0 : index
    %c0_198 = arith.constant 0 : index
    %119 = vector.load %arg13[%c0_197, %c0_198] : memref<54x16xf32, #tpu.memory_space<vmem>>, vector<54x16xf32>
    %cst_199 = arith.constant dense<0.000000e+00> : vector<128x16xf32>
    %120 = tpu.matmul %118, %119, %cst_199 {dimension_numbers = #tpu.dot_dimension_numbers<[1], [0], [0], [1], [0, 0, 1, 1], [], []>} : vector<128x54xf32>, vector<54x16xf32>, vector<128x16xf32> -> vector<128x16xf32>
    %c0_200 = arith.constant 0 : index
    %c0_201 = arith.constant 0 : index
    %121 = vector.load %arg8[%c0_200, %c0_201] : memref<128x1xf32, #tpu.memory_space<vmem>>, vector<128x1xf32>
    %122 = vector.broadcast %121 : vector<128x1xf32> to vector<128x16xf32>
    %123 = arith.addf %120, %122 : vector<128x16xf32>
    %124 = arith.truncf %123 : vector<128x16xf32> to vector<128x16xbf16>
    %c0_202 = arith.constant 0 : index
    %c0_203 = arith.constant 0 : index
    %c0_204 = arith.constant 0 : index
    %125 = vector.load %arg10[%c0_202, %c0_203, %c0_204] : memref<1x128x16xbf16, #tpu.memory_space<vmem>>, vector<1x128x16xbf16>
    %126 = vector.shape_cast %125 : vector<1x128x16xbf16> to vector<128x16xbf16>
    %127 = vector.shape_cast %124 : vector<128x16xbf16> to vector<1x128x16xbf16>
    tpu.vector_store %arg10[%c0_202, %c0_203, %c0_204], %127 {strides = array<i32>} : memref<1x128x16xbf16, #tpu.memory_space<vmem>>, vector<1x128x16xbf16>,
    return
  }
  func.func @transform_0(%arg0: i32) -> (i32, i32, i32) {
    %c0_i32 = arith.constant 0 : i32
    %c0_i32_0 = arith.constant 0 : i32
    %c0_i32_1 = arith.constant 0 : i32
    return %arg0, %c0_i32, %c0_i32_0 : i32, i32, i32
  }
  func.func @transform_1(%arg0: i32) -> (i32, i32, i32) {
    %c0_i32 = arith.constant 0 : i32
    %c0_i32_0 = arith.constant 0 : i32
    %c0_i32_1 = arith.constant 0 : i32
    return %arg0, %c0_i32, %c0_i32_0 : i32, i32, i32
  }
  func.func @transform_2(%arg0: i32) -> (i32, i32) {
    %c0_i32 = arith.constant 0 : i32
    %c0_i32_0 = arith.constant 0 : i32
    %c0_i32_1 = arith.constant 0 : i32
    return %c0_i32, %c0_i32_0 : i32, i32
  }
  func.func @transform_3(%arg0: i32) -> (i32, i32) {
    %c0_i32 = arith.constant 0 : i32
    %c0_i32_0 = arith.constant 0 : i32
    %c0_i32_1 = arith.constant 0 : i32
    return %c0_i32, %c0_i32_0 : i32, i32
  }
  func.func @transform_4(%arg0: i32) -> (i32, i32) {
    %c0_i32 = arith.constant 0 : i32
    %c0_i32_0 = arith.constant 0 : i32
    %c0_i32_1 = arith.constant 0 : i32
    return %c0_i32, %c0_i32_0 : i32, i32
  }
  func.func @transform_5(%arg0: i32) -> (i32, i32) {
    %c0_i32 = arith.constant 0 : i32
    %c0_i32_0 = arith.constant 0 : i32
    %c0_i32_1 = arith.constant 0 : i32
    return %c0_i32, %c0_i32_0 : i32, i32
  }
  func.func @transform_6(%arg0: i32) -> (i32, i32) {
    %c0_i32 = arith.constant 0 : i32
    %c0_i32_0 = arith.constant 0 : i32
    %c0_i32_1 = arith.constant 0 : i32
    return %c0_i32, %c0_i32_0 : i32, i32
  }
  func.func @transform_7(%arg0: i32) -> (i32, i32) {
    %c0_i32 = arith.constant 0 : i32
    %c0_i32_0 = arith.constant 0 : i32
    %c0_i32_1 = arith.constant 0 : i32
    return %c0_i32, %c0_i32_0 : i32, i32
  }
  func.func @transform_8(%arg0: i32) -> (i32, i32, i32) {
    %c0_i32 = arith.constant 0 : i32
    %c0_i32_0 = arith.constant 0 : i32
    %c0_i32_1 = arith.constant 0 : i32
    return %arg0, %c0_i32, %c0_i32_0 : i32, i32, i32
  }
  func.func @transform_9(%arg0: i32) -> (i32, i32, i32) {
    %c0_i32 = arith.constant 0 : i32
    %c0_i32_0 = arith.constant 0 : i32
    %c0_i32_1 = arith.constant 0 : i32
    return %arg0, %c0_i32, %c0_i32_0 : i32, i32, i32
  }
}

</mosaic_0001>

<llo_original>
// kernel: tpu_custom_call.1
$region0: #{tpu_custom_call.1}
  #allocation0 [shape = 'u32[]', space=smem, size = 0x4, offset = 0x4, fixed_abs, tag = 'smem constant byte address 0x4 - core index']
  #allocation1 [shape = 'u32[144,128]{1,0:T(1,128)}', space=vmem, size = 0x12000, scoped, tag = 'internal scratch']
  #allocation2 [shape = 'f32[6,6,6]{2,1,0:T(8,128)}', space=vmem, size = 0x6000, scoped, tag = 'scratch operand']
  #allocation3 [shape = 'f32[54,4,4]{2,1,0:T(4,128)}', space=vmem, size = 0x1b000, scoped, tag = 'scratch operand']
  #allocation4 [shape = 'f32[54,16]{1,0:T(8,128)}', space=vmem, size = 0x7000, scoped, tag = 'scratch operand']
  %s0 = inlined_call_operand.vmem [shape: f32[2,16,16], index: 0, kind: input, shape index: {}]
  %s1 = inlined_call_operand.vmem [shape: f32[2,96,16], index: 1, kind: input, shape index: {}]
  %s2 = inlined_call_operand.vmem [shape: f32[4,16], index: 2, kind: input, shape index: {}]
  %s3 = inlined_call_operand.vmem [shape: f32[16,4], index: 3, kind: input, shape index: {}]
  %s4 = inlined_call_operand.vmem [shape: f32[64,9], index: 4, kind: input, shape index: {}]
  %s5 = inlined_call_operand.vmem [shape: f32[64,1], index: 5, kind: input, shape index: {}]
  %s6 = inlined_call_operand.vmem [shape: f32[128,54], index: 6, kind: input, shape index: {}]
  %s7 = inlined_call_operand.vmem [shape: f32[128,1], index: 7, kind: input, shape index: {}]
  %s8 = inlined_call_operand.vmem [shape: bf16[2,64,16], index: 8, kind: output, shape index: {0}]
  %s9 = inlined_call_operand.vmem [shape: bf16[2,128,16], index: 9, kind: output, shape index: {1}]
  %10 = xla_tuple %s8, %s9
  %s11 = sld [smem:[#allocation0]]
  $region73: #{tpu_custom_call.1} parent=0
    _
  %s13 = ssub.s32 1, %s11
  %s14 = scalar_select 0, %s13, %s11
  loop: start=0, step=1, limit=4
  $region2: #{tpu_custom_call.1} parent=0 // loop_pre_header
    _
  $region3: #{tpu_custom_call.1} parent=0 // loop_header
    %s16 = sphi 0, %s20
    %p17 = scmp.ge.s32.totalorder %s16, 4
    %s26 = sphi 0, %s28
    %s29 = sphi 0, %s26
    %s30 = sphi 0, %s29
    %s46 = sphi 0, %s30
    %s52 = sphi 0, %s54
    %s55 = sphi 0, %s52
    %s56 = sphi 0, %s55
    %s72 = sphi 0, %s56
    %s76 = sphi 0, %s76
    %s78 = sphi 0, %s76
    %s79 = sphi 0, %s78
    %s93 = sphi 0, %s79
    %s97 = sphi 0, %s97
    %s99 = sphi 0, %s97
    %s100 = sphi 0, %s99
    %s114 = sphi 0, %s100
    %s118 = sphi 0, %s118
    %s120 = sphi 0, %s118
    %s121 = sphi 0, %s120
    %s135 = sphi 0, %s121
    %s139 = sphi 0, %s139
    %s141 = sphi 0, %s139
    %s142 = sphi 0, %s141
    %s156 = sphi 0, %s142
    %s160 = sphi 0, %s160
    %s162 = sphi 0, %s160
    %s163 = sphi 0, %s162
    %s177 = sphi 0, %s163
    %s181 = sphi 0, %s181
    %s183 = sphi 0, %s181
    %s184 = sphi 0, %s183
    %s198 = sphi 0, %s184
    %s204 = sphi 0, %s206
    %s207 = sphi 0, %s204
    %s208 = sphi 0, %s207
    %s224 = sphi 0, %s208
    %s230 = sphi 0, %s232
    %s233 = sphi 0, %s230
    %s234 = sphi 0, %s233
    %s250 = sphi 0, %s234
  $region4: #{tpu_custom_call.1} parent=0 // loop_header_branch
    %19 = sbr.rel (%p17) target = $region8
  $region5: #{tpu_custom_call.1} parent=0 // loop_body
    %s21 = ssub.s32 %s16, 1
    %s22 = ssub.s32 %s16, 2
    %s23 = sadd.s32 %s16, 1
    %s24 = ssub.s32 %s16, %s23
    %p25 = scmp.eq.s32.totalorder %s24, 0
    %s27 = sadd.s32 %s26, 1
    %s28 = scalar_select %p25, %s26, %s27
    %p31 = pneg %p25
    %p32 = scmp.eq.s32.totalorder %s16, 1
    %p33 = por %p31, %p32
    %p34 = scmp.ne.s32.totalorder %s26, %s29
    %p35 = scmp.eq.s32.totalorder %s16, 0
    %p36 = por %p34, %p35
    %p37 = scmp.ne.s32.totalorder %s26, %s29
    %p38 = scmp.eq.s32.totalorder %s21, 1
    %p39 = por %p37, %p38
    %p40 = scmp.ne.s32.totalorder %s29, %s30
    %p41 = scmp.eq.s32.totalorder %s21, 0
    %p42 = por %p40, %p41
    %p43 = scmp.ne.s32.totalorder %s29, %s30
    %p44 = scmp.eq.s32.totalorder %s22, 1
    %p45 = por %p43, %p44
    %p47 = scmp.ne.s32.totalorder %s30, %s46
    %p48 = scmp.eq.s32.totalorder %s22, 0
    %p49 = por %p47, %p48
    %s50 = ssub.s32 %s16, %s23
    %p51 = scmp.eq.s32.totalorder %s50, 0
    %s53 = sadd.s32 %s52, 1
    %s54 = scalar_select %p51, %s52, %s53
    %p57 = pneg %p51
    %p58 = scmp.eq.s32.totalorder %s16, 1
    %p59 = por %p57, %p58
    %p60 = scmp.ne.s32.totalorder %s52, %s55
    %p61 = scmp.eq.s32.totalorder %s16, 0
    %p62 = por %p60, %p61
    %p63 = scmp.ne.s32.totalorder %s52, %s55
    %p64 = scmp.eq.s32.totalorder %s21, 1
    %p65 = por %p63, %p64
    %p66 = scmp.ne.s32.totalorder %s55, %s56
    %p67 = scmp.eq.s32.totalorder %s21, 0
    %p68 = por %p66, %p67
    %p69 = scmp.ne.s32.totalorder %s55, %s56
    %p70 = scmp.eq.s32.totalorder %s22, 1
    %p71 = por %p69, %p70
    %p73 = scmp.ne.s32.totalorder %s56, %s72
    %p74 = scmp.eq.s32.totalorder %s22, 0
    %p75 = por %p73, %p74
    %s77 = sadd.s32 %s76, 1
    %p80 = scmp.eq.s32.totalorder %s16, 1
    %p81 = scmp.ne.s32.totalorder %s76, %s78
    %p82 = scmp.eq.s32.totalorder %s16, 0
    %p83 = por %p81, %p82
    %p84 = scmp.ne.s32.totalorder %s76, %s78
    %p85 = scmp.eq.s32.totalorder %s21, 1
    %p86 = por %p84, %p85
    %p87 = scmp.ne.s32.totalorder %s78, %s79
    %p88 = scmp.eq.s32.totalorder %s21, 0
    %p89 = por %p87, %p88
    %p90 = scmp.ne.s32.totalorder %s78, %s79
    %p91 = scmp.eq.s32.totalorder %s22, 1
    %p92 = por %p90, %p91
    %p94 = scmp.ne.s32.totalorder %s79, %s93
    %p95 = scmp.eq.s32.totalorder %s22, 0
    %p96 = por %p94, %p95
    %s98 = sadd.s32 %s97, 1
    %p101 = scmp.eq.s32.totalorder %s16, 1
    %p102 = scmp.ne.s32.totalorder %s97, %s99
    %p103 = scmp.eq.s32.totalorder %s16, 0
    %p104 = por %p102, %p103
    %p105 = scmp.ne.s32.totalorder %s97, %s99
    %p106 = scmp.eq.s32.totalorder %s21, 1
    %p107 = por %p105, %p106
    %p108 = scmp.ne.s32.totalorder %s99, %s100
    %p109 = scmp.eq.s32.totalorder %s21, 0
    %p110 = por %p108, %p109
    %p111 = scmp.ne.s32.totalorder %s99, %s100
    %p112 = scmp.eq.s32.totalorder %s22, 1
    %p113 = por %p111, %p112
    %p115 = scmp.ne.s32.totalorder %s100, %s114
    %p116 = scmp.eq.s32.totalorder %s22, 0
    %p117 = por %p115, %p116
    %s119 = sadd.s32 %s118, 1
    %p122 = scmp.eq.s32.totalorder %s16, 1
    %p123 = scmp.ne.s32.totalorder %s118, %s120
    %p124 = scmp.eq.s32.totalorder %s16, 0
    %p125 = por %p123, %p124
    %p126 = scmp.ne.s32.totalorder %s118, %s120
    %p127 = scmp.eq.s32.totalorder %s21, 1
    %p128 = por %p126, %p127
    %p129 = scmp.ne.s32.totalorder %s120, %s121
    %p130 = scmp.eq.s32.totalorder %s21, 0
    %p131 = por %p129, %p130
    %p132 = scmp.ne.s32.totalorder %s120, %s121
    %p133 = scmp.eq.s32.totalorder %s22, 1
    %p134 = por %p132, %p133
    %p136 = scmp.ne.s32.totalorder %s121, %s135
    %p137 = scmp.eq.s32.totalorder %s22, 0
    %p138 = por %p136, %p137
    %s140 = sadd.s32 %s139, 1
    %p143 = scmp.eq.s32.totalorder %s16, 1
    %p144 = scmp.ne.s32.totalorder %s139, %s141
    %p145 = scmp.eq.s32.totalorder %s16, 0
    %p146 = por %p144, %p145
    %p147 = scmp.ne.s32.totalorder %s139, %s141
    %p148 = scmp.eq.s32.totalorder %s21, 1
    %p149 = por %p147, %p148
    %p150 = scmp.ne.s32.totalorder %s141, %s142
    %p151 = scmp.eq.s32.totalorder %s21, 0
    %p152 = por %p150, %p151
    %p153 = scmp.ne.s32.totalorder %s141, %s142
    %p154 = scmp.eq.s32.totalorder %s22, 1
    %p155 = por %p153, %p154
    %p157 = scmp.ne.s32.totalorder %s142, %s156
    %p158 = scmp.eq.s32.totalorder %s22, 0
    %p159 = por %p157, %p158
    %s161 = sadd.s32 %s160, 1
    %p164 = scmp.eq.s32.totalorder %s16, 1
    %p165 = scmp.ne.s32.totalorder %s160, %s162
    %p166 = scmp.eq.s32.totalorder %s16, 0
    %p167 = por %p165, %p166
    %p168 = scmp.ne.s32.totalorder %s160, %s162
    %p169 = scmp.eq.s32.totalorder %s21, 1
    %p170 = por %p168, %p169
    %p171 = scmp.ne.s32.totalorder %s162, %s163
    %p172 = scmp.eq.s32.totalorder %s21, 0
    %p173 = por %p171, %p172
    %p174 = scmp.ne.s32.totalorder %s162, %s163
    %p175 = scmp.eq.s32.totalorder %s22, 1
    %p176 = por %p174, %p175
    %p178 = scmp.ne.s32.totalorder %s163, %s177
    %p179 = scmp.eq.s32.totalorder %s22, 0
    %p180 = por %p178, %p179
    %s182 = sadd.s32 %s181, 1
    %p185 = scmp.eq.s32.totalorder %s16, 1
    %p186 = scmp.ne.s32.totalorder %s181, %s183
    %p187 = scmp.eq.s32.totalorder %s16, 0
    %p188 = por %p186, %p187
    %p189 = scmp.ne.s32.totalorder %s181, %s183
    %p190 = scmp.eq.s32.totalorder %s21, 1
    %p191 = por %p189, %p190
    %p192 = scmp.ne.s32.totalorder %s183, %s184
    %p193 = scmp.eq.s32.totalorder %s21, 0
    %p194 = por %p192, %p193
    %p195 = scmp.ne.s32.totalorder %s183, %s184
    %p196 = scmp.eq.s32.totalorder %s22, 1
    %p197 = por %p195, %p196
    %p199 = scmp.ne.s32.totalorder %s184, %s198
    %p200 = scmp.eq.s32.totalorder %s22, 0
    %p201 = por %p199, %p200
    %s202 = ssub.s32 %s16, %s23
    %p203 = scmp.eq.s32.totalorder %s202, 0
    %s205 = sadd.s32 %s204, 1
    %s206 = scalar_select %p203, %s204, %s205
    %p209 = pneg %p203
    %p210 = scmp.eq.s32.totalorder %s16, 1
    %p211 = por %p209, %p210
    %p212 = scmp.ne.s32.totalorder %s204, %s207
    %p213 = scmp.eq.s32.totalorder %s16, 0
    %p214 = por %p212, %p213
    %p215 = scmp.ne.s32.totalorder %s204, %s207
    %p216 = scmp.eq.s32.totalorder %s21, 1
    %p217 = por %p215, %p216
    %p218 = scmp.ne.s32.totalorder %s207, %s208
    %p219 = scmp.eq.s32.totalorder %s21, 0
    %p220 = por %p218, %p219
    %p221 = scmp.ne.s32.totalorder %s207, %s208
    %p222 = scmp.eq.s32.totalorder %s22, 1
    %p223 = por %p221, %p222
    %p225 = scmp.ne.s32.totalorder %s208, %s224
    %p226 = scmp.eq.s32.totalorder %s22, 0
    %p227 = por %p225, %p226
    %s228 = ssub.s32 %s16, %s23
    %p229 = scmp.eq.s32.totalorder %s228, 0
    %s231 = sadd.s32 %s230, 1
    %s232 = scalar_select %p229, %s230, %s231
    %p235 = pneg %p229
    %p236 = scmp.eq.s32.totalorder %s16, 1
    %p237 = por %p235, %p236
    %p238 = scmp.ne.s32.totalorder %s230, %s233
    %p239 = scmp.eq.s32.totalorder %s16, 0
    %p240 = por %p238, %p239
    %p241 = scmp.ne.s32.totalorder %s230, %s233
    %p242 = scmp.eq.s32.totalorder %s21, 1
    %p243 = por %p241, %p242
    %p244 = scmp.ne.s32.totalorder %s233, %s234
    %p245 = scmp.eq.s32.totalorder %s21, 0
    %p246 = por %p244, %p245
    %p247 = scmp.ne.s32.totalorder %s233, %s234
    %p248 = scmp.eq.s32.totalorder %s22, 1
    %p249 = por %p247, %p248
    %p251 = scmp.ne.s32.totalorder %s234, %s250
    %p252 = scmp.eq.s32.totalorder %s22, 0
    %p253 = por %p251, %p252
    %p254 = scmp.le.s32.totalorder 1, %s16
    %p255 = scmp.lt.s32.totalorder %s16, 3
    %p256 = pnand %p254, %p255
    %p257 = pneg %p256
    // Predicated region
    $region9: #{tpu_custom_call.1} parent=5 // pred_check
      _
    $region10: #{tpu_custom_call.1} parent=5 // pred_check_branch
      %259 = sbr.rel (%p256) target = $region12
    $region11: #{tpu_custom_call.1} parent=5 // pred_region
      %s260 = ssub.s32 %s16, 1
      // Predicated region
      $region13: #{tpu_custom_call.1} parent=11 // pred_check
        %p261 = pneg %p89
      $region14: #{tpu_custom_call.1} parent=11 // pred_check_branch
        %263 = sbr.rel (%p261) target = $region16
      $region15: #{tpu_custom_call.1} parent=11 // pred_region
        _
      $region16: #{tpu_custom_call.1} parent=11 // pred_fallthru
        _
      // Predicated region
      $region17: #{tpu_custom_call.1} parent=11 // pred_check
        %p264 = pneg %p110
      $region18: #{tpu_custom_call.1} parent=11 // pred_check_branch
        %266 = sbr.rel (%p264) target = $region20
      $region19: #{tpu_custom_call.1} parent=11 // pred_region
        _
      $region20: #{tpu_custom_call.1} parent=11 // pred_fallthru
        _
      // Predicated region
      $region21: #{tpu_custom_call.1} parent=11 // pred_check
        %p267 = pneg %p131
      $region22: #{tpu_custom_call.1} parent=11 // pred_check_branch
        %269 = sbr.rel (%p267) target = $region24
      $region23: #{tpu_custom_call.1} parent=11 // pred_region
        _
      $region24: #{tpu_custom_call.1} parent=11 // pred_fallthru
        _
      // Predicated region
      $region25: #{tpu_custom_call.1} parent=11 // pred_check
        %p270 = pneg %p152
      $region26: #{tpu_custom_call.1} parent=11 // pred_check_branch
        %272 = sbr.rel (%p270) target = $region28
      $region27: #{tpu_custom_call.1} parent=11 // pred_region
        _
      $region28: #{tpu_custom_call.1} parent=11 // pred_fallthru
        _
      // Predicated region
      $region29: #{tpu_custom_call.1} parent=11 // pred_check
        %p273 = pneg %p173
      $region30: #{tpu_custom_call.1} parent=11 // pred_check_branch
        %275 = sbr.rel (%p273) target = $region32
      $region31: #{tpu_custom_call.1} parent=11 // pred_region
        _
      $region32: #{tpu_custom_call.1} parent=11 // pred_fallthru
        _
      // Predicated region
      $region33: #{tpu_custom_call.1} parent=11 // pred_check
        %p276 = pneg %p194
      $region34: #{tpu_custom_call.1} parent=11 // pred_check_branch
        %278 = sbr.rel (%p276) target = $region36
      $region35: #{tpu_custom_call.1} parent=11 // pred_region
        _
      $region36: #{tpu_custom_call.1} parent=11 // pred_fallthru
        _
    $region12: #{tpu_custom_call.1} parent=5 // pred_fallthru
      _
    %p279 = scmp.lt.s32.totalorder %s16, 2
    // Predicated region
    $region37: #{tpu_custom_call.1} parent=5 // pred_check
      %p280 = pneg %p279
    $region38: #{tpu_custom_call.1} parent=5 // pred_check_branch
      %282 = sbr.rel (%p280) target = $region40
    $region39: #{tpu_custom_call.1} parent=5 // pred_region
      // Predicated region
      $region41: #{tpu_custom_call.1} parent=39 // pred_check
        %p283 = pneg %p36
      $region42: #{tpu_custom_call.1} parent=39 // pred_check_branch
        %285 = sbr.rel (%p283) target = $region44
      $region43: #{tpu_custom_call.1} parent=39 // pred_region
        %p286 = scmp.lt.s32.totalorder %s16, 1
        %s287 = scalar_select %p286, %s16, 1
        %s288 = smul.addr %s287, 2
        %s289 = smul.addr %s288, 8
        %s290 = scalar_lea.vmem %s0, %s289
      $region44: #{tpu_custom_call.1} parent=39 // pred_fallthru
        _
      // Predicated region
      $region45: #{tpu_custom_call.1} parent=39 // pred_check
        %p291 = pneg %p62
      $region46: #{tpu_custom_call.1} parent=39 // pred_check_branch
        %293 = sbr.rel (%p291) target = $region48
      $region47: #{tpu_custom_call.1} parent=39 // pred_region
        %p294 = scmp.lt.s32.totalorder %s16, 1
        %s295 = scalar_select %p294, %s16, 1
        %s296 = smul.addr %s295, 12
        %s297 = smul.addr %s296, 8
        %s298 = scalar_lea.vmem %s1, %s297
      $region48: #{tpu_custom_call.1} parent=39 // pred_fallthru
        _
    $region40: #{tpu_custom_call.1} parent=5 // pred_fallthru
      _
    %p299 = scmp.le.s32.totalorder 1, %s16
    %p300 = scmp.lt.s32.totalorder %s16, 3
    %p301 = pnand %p299, %p300
    %p302 = pneg %p301
    // Predicated region
    $region49: #{tpu_custom_call.1} parent=5 // pred_check
      _
    $region50: #{tpu_custom_call.1} parent=5 // pred_check_branch
      %304 = sbr.rel (%p301) target = $region52
    $region51: #{tpu_custom_call.1} parent=5 // pred_region
      %s305 = ssub.s32 %s16, 1
      %p306 = scmp.lt.s32.totalorder %s21, 1
      %s307 = scalar_select %p306, %s21, 1
      %s308 = smul.addr %s307, 2
      %s309 = smul.addr %s308, 8
      %s310 = scalar_lea.vmem %s0, %s309
      %p311 = pneg %p42
      %p312 = pneg %p39
      %p313 = scmp.lt.s32.totalorder %s21, 1
      %s314 = scalar_select %p313, %s21, 1
      %s315 = smul.addr %s314, 12
      %s316 = smul.addr %s315, 8
      %s317 = scalar_lea.vmem %s1, %s316
      %p318 = pneg %p68
      %p319 = pneg %p65
      %p320 = pneg %p89
      %p321 = pneg %p86
      %p322 = pneg %p110
      %p323 = pneg %p107
      %p324 = pneg %p131
      %p325 = pneg %p128
      %p326 = pneg %p152
      %p327 = pneg %p149
      %p328 = pneg %p173
      %p329 = pneg %p170
      %p330 = pneg %p194
      %p331 = pneg %p191
      %p332 = pneg %p220
      %p333 = pneg %p217
      %p334 = scmp.lt.s32.totalorder %s21, 1
      %s335 = scalar_select %p334, %s21, 1
      %s336 = smul.addr %s335, 8
      %s337 = smul.addr %s336, 4
      %s338 = scalar_lea.vmem %s8, %s337
      %p339 = pneg %p246
      %p340 = pneg %p243
      %p341 = scmp.lt.s32.totalorder %s21, 1
      %s342 = scalar_select %p341, %s21, 1
      %s343 = smul.addr %s342, 16
      %s344 = smul.addr %s343, 4
      %s345 = scalar_lea.vmem %s9, %s344
      %p346 = scmp.lt.s32.totalorder %s21, 1
      %s347 = scalar_select %p346, %s21, 1
      %s348 = smul.addr %s347, 2
      %s349 = smul.addr %s348, 8
      %s350 = scalar_lea.vmem %s0, %s349
      %p351 = scmp.lt.s32.totalorder %s21, 1
      %s352 = scalar_select %p351, %s21, 1
      %s353 = smul.addr %s352, 12
      %s354 = smul.addr %s353, 8
      %s355 = scalar_lea.vmem %s1, %s354
      %p356 = scmp.lt.s32.totalorder %s21, 1
      %s357 = scalar_select %p356, %s21, 1
      %s358 = smul.addr %s357, 8
      %s359 = smul.addr %s358, 4
      %s360 = scalar_lea.vmem %s8, %s359
      %p361 = scmp.lt.s32.totalorder %s21, 1
      %s362 = scalar_select %p361, %s21, 1
      %s363 = smul.addr %s362, 16
      %s364 = smul.addr %s363, 4
      %s365 = scalar_lea.vmem %s9, %s364
      %v366 = vld [vmem:[%s2] sm:$0xf]
      %v367 = vld [vmem:[%s3] sm:$0xff]
      %v368 = vld [vmem:[%s3 + $0x8] sm:$0xff]
      %vm369 = vcmask 40960
      %370 = vst.msk [vmem:[#allocation2] sm:$0x1] %vm369, 0.0
      %371 = vst.msk [vmem:[#allocation2 + $0x8] sm:$0x1] %vm369, 0.0
      %372 = vst.msk [vmem:[#allocation2 + $0x10] sm:$0x1] %vm369, 0.0
      %373 = vst.msk [vmem:[#allocation2 + $0x18] sm:$0x1] %vm369, 0.0
      %374 = vst.msk [vmem:[#allocation2 + $0x20] sm:$0x1] %vm369, 0.0
      %375 = vst.msk [vmem:[#allocation2 + $0x28] sm:$0x1] %vm369, 0.0
      %376 = vst.msk [vmem:[#allocation2 + $0x5] sm:$0x1] %vm369, 0.0
      %377 = vst.msk [vmem:[#allocation2 + $0xd] sm:$0x1] %vm369, 0.0
      %378 = vst.msk [vmem:[#allocation2 + $0x15] sm:$0x1] %vm369, 0.0
      %379 = vst.msk [vmem:[#allocation2 + $0x1d] sm:$0x1] %vm369, 0.0
      %380 = vst.msk [vmem:[#allocation2 + $0x25] sm:$0x1] %vm369, 0.0
      %381 = vst.msk [vmem:[#allocation2 + $0x2d] sm:$0x1] %vm369, 0.0
      %vm382 = vcmask 5120
      %383 = vst.msk [vmem:[#allocation2] sm:$0x3f] %vm382, 0.0
      %384 = vst.msk [vmem:[#allocation2 + $0x8] sm:$0x3f] %vm382, 0.0
      %385 = vst.msk [vmem:[#allocation2 + $0x10] sm:$0x3f] %vm382, 0.0
      %386 = vst.msk [vmem:[#allocation2 + $0x18] sm:$0x3f] %vm382, 0.0
      %387 = vst.msk [vmem:[#allocation2 + $0x20] sm:$0x3f] %vm382, 0.0
      %388 = vst.msk [vmem:[#allocation2 + $0x28] sm:$0x3f] %vm382, 0.0
      %vm389 = vcmask 46120
      %390 = vst.msk [vmem:[#allocation2] sm:$0x3f] %vm389, 0.0
      %391 = vst.msk [vmem:[#allocation2 + $0x8] sm:$0x3f] %vm389, 0.0
      %392 = vst.msk [vmem:[#allocation2 + $0x10] sm:$0x3f] %vm389, 0.0
      %393 = vst.msk [vmem:[#allocation2 + $0x18] sm:$0x3f] %vm389, 0.0
      %394 = vst.msk [vmem:[#allocation2 + $0x20] sm:$0x3f] %vm389, 0.0
      %395 = vst.msk [vmem:[#allocation2 + $0x28] sm:$0x3f] %vm389, 0.0
      %v396 = vld [vmem:[%s350] sm:$0xff]
      %v397 = vld [vmem:[%s350 + $0x8] sm:$0xff]
      %vm398 = vcmask 130048
      %v400 = vsel %vm398, %v396, 0
      %v403 = vsel %vm398, %v397, 0
      %405 = vmatprep.subr.mxu0 0.0
      %406 = vmatpush1.msra.mxu0 %v367
      %407 = vmatprep.subr.mxu0 0.0
      %408 = vmatpush1.msra.mxu0 %v368
      %409 = vmatprep.subr.mxu0 0.0
      %410 = vmatpush1.msra.mxu0 0.0
      %411 = vmatprep.subr.mxu0 0.0
      %412 = vmatpush1.msra.mxu0 0.0
      %413 = vmatprep.subr.mxu0 0.0
      %414 = vmatpush1.msra.mxu0 0.0
      %415 = vmatprep.subr.mxu0 0.0
      %416 = vmatpush1.msra.mxu0 0.0
      %417 = vmatprep.subr.mxu0 0.0
      %418 = vmatpush1.msra.mxu0 0.0
      %419 = vmatprep.subr.mxu0 0.0
      %420 = vmatpush1.msra.mxu0 0.0
      %421 = vmatprep.subr.mxu0 0.0
      %422 = vmatpush1.msra.mxu0 0.0
      %423 = vmatprep.subr.mxu0 0.0
      %424 = vmatpush1.msra.mxu0 0.0
      %425 = vmatprep.subr.mxu0 0.0
      %426 = vmatpush1.msra.mxu0 0.0
      %427 = vmatprep.subr.mxu0 0.0
      %428 = vmatpush1.msra.mxu0 0.0
      %429 = vmatprep.subr.mxu0 0.0
      %430 = vmatpush1.msra.mxu0 0.0
      %431 = vmatprep.subr.mxu0 0.0
      %432 = vmatpush1.msra.mxu0 0.0
      %433 = vmatprep.subr.mxu0 0.0
      %434 = vmatpush1.msra.mxu0 0.0
      %435 = vmatprep.subr.mxu0 0.0
      %436 = vmatpush1.msra.mxu0 0.0
      %437 = vmatprep.subr.mxu0 0.0
      %438 = vmatpush1.msra.mxu0 0.0
      %439 = vmatprep.subr.mxu0 0.0
      %440 = vmatpush1.msra.mxu0 0.0
      %441 = vmatprep.subr.mxu0 0.0
      %442 = vmatpush1.msra.mxu0 0.0
      %443 = vmatprep.subr.mxu0 0.0
      %444 = vmatpush1.msra.mxu0 0.0
      %445 = vmatprep.subr.mxu0 0.0
      %446 = vmatpush1.msra.mxu0 0.0
      %447 = vmatprep.subr.mxu0 0.0
      %448 = vmatpush1.msra.mxu0 0.0
      %449 = vmatprep.subr.mxu0 0.0
      %450 = vmatpush1.msra.mxu0 0.0
      %451 = vmatprep.subr.mxu0 0.0
      %452 = vmatpush1.msra.mxu0 0.0
      %453 = vmatprep.subr.mxu0 0.0
      %454 = vmatpush1.msra.mxu0 0.0
      %455 = vmatprep.subr.mxu0 0.0
      %456 = vmatpush1.msra.mxu0 0.0
      %457 = vmatprep.subr.mxu0 0.0
      %458 = vmatpush1.msra.mxu0 0.0
      %459 = vmatprep.subr.mxu0 0.0
      %460 = vmatpush1.msra.mxu0 0.0
      %461 = vmatprep.subr.mxu0 0.0
      %462 = vmatpush1.msra.mxu0 0.0
      %463 = vmatprep.subr.mxu0 0.0
      %464 = vmatpush1.msra.mxu0 0.0
      %465 = vmatprep.subr.mxu0 0.0
      %466 = vmatpush1.msra.mxu0 0.0
      %467 = vmatprep.subr.mxu0 0.0
      %468 = vmatpush1.msra.mxu0 0.0
      %469 = vmatprep.mubr.f32.mxu0 0.0
      %470 = vmatmul.mubr.f32.gmra.mrb[0].mxu0 %v400
      %v471 = vpop.f32.mrb[0].mxu0
      %v472 = vadd.f32 0.0, %v471
      %v473 = vpop.f32.mrb[0].mxu0
      %474 = vmatprep.mubr.f32.mxu0 0.0
      %475 = vmatmul.mubr.f32.gmra.mrb[0].mxu0 %v403
      %v476 = vpop.f32.mrb[0].mxu0
      %v477 = vadd.f32 0.0, %v476
      %v478 = vpop.f32.mrb[0].mxu0
      %479 = vdwg.mxu0
      %v481 = vsel %vm398, %v366, 0
      %483 = vmatprep.subr.mxu0 0.0
      %484 = vmatpush1.msra.mxu0 %v472
      %485 = vmatprep.subr.mxu0 0.0
      %486 = vmatpush1.msra.mxu0 %v477
      %487 = vmatprep.subr.mxu0 0.0
      %488 = vmatpush1.msra.mxu0 0.0
      %489 = vmatprep.subr.mxu0 0.0
      %490 = vmatpush1.msra.mxu0 0.0
      %491 = vmatprep.subr.mxu0 0.0
      %492 = vmatpush1.msra.mxu0 0.0
      %493 = vmatprep.subr.mxu0 0.0
      %494 = vmatpush1.msra.mxu0 0.0
      %495 = vmatprep.subr.mxu0 0.0
      %496 = vmatpush1.msra.mxu0 0.0
      %497 = vmatprep.subr.mxu0 0.0
      %498 = vmatpush1.msra.mxu0 0.0
      %499 = vmatprep.subr.mxu0 0.0
      %500 = vmatpush1.msra.mxu0 0.0
      %501 = vmatprep.subr.mxu0 0.0
      %502 = vmatpush1.msra.mxu0 0.0
      %503 = vmatprep.subr.mxu0 0.0
      %504 = vmatpush1.msra.mxu0 0.0
      %505 = vmatprep.subr.mxu0 0.0
      %506 = vmatpush1.msra.mxu0 0.0
      %507 = vmatprep.subr.mxu0 0.0
      %508 = vmatpush1.msra.mxu0 0.0
      %509 = vmatprep.subr.mxu0 0.0
      %510 = vmatpush1.msra.mxu0 0.0
      %511 = vmatprep.subr.mxu0 0.0
      %512 = vmatpush1.msra.mxu0 0.0
      %513 = vmatprep.subr.mxu0 0.0
      %514 = vmatpush1.msra.mxu0 0.0
      %515 = vmatprep.subr.mxu0 0.0
      %516 = vmatpush1.msra.mxu0 0.0
      %517 = vmatprep.subr.mxu0 0.0
      %518 = vmatpush1.msra.mxu0 0.0
      %519 = vmatprep.subr.mxu0 0.0
      %520 = vmatpush1.msra.mxu0 0.0
      %521 = vmatprep.subr.mxu0 0.0
      %522 = vmatpush1.msra.mxu0 0.0
      %523 = vmatprep.subr.mxu0 0.0
      %524 = vmatpush1.msra.mxu0 0.0
      %525 = vmatprep.subr.mxu0 0.0
      %526 = vmatpush1.msra.mxu0 0.0
      %527 = vmatprep.subr.mxu0 0.0
      %528 = vmatpush1.msra.mxu0 0.0
      %529 = vmatprep.subr.mxu0 0.0
      %530 = vmatpush1.msra.mxu0 0.0
      %531 = vmatprep.subr.mxu0 0.0
      %532 = vmatpush1.msra.mxu0 0.0
      %533 = vmatprep.subr.mxu0 0.0
      %534 = vmatpush1.msra.mxu0 0.0
      %535 = vmatprep.subr.mxu0 0.0
      %536 = vmatpush1.msra.mxu0 0.0
      %537 = vmatprep.subr.mxu0 0.0
      %538 = vmatpush1.msra.mxu0 0.0
      %539 = vmatprep.subr.mxu0 0.0
      %540 = vmatpush1.msra.mxu0 0.0
      %541 = vmatprep.subr.mxu0 0.0
      %542 = vmatpush1.msra.mxu0 0.0
      %543 = vmatprep.subr.mxu0 0.0
      %544 = vmatpush1.msra.mxu0 0.0
      %545 = vmatprep.subr.mxu0 0.0
      %546 = vmatpush1.msra.mxu0 0.0
      %547 = vmatprep.mubr.f32.mxu0 0.0
      %548 = vmatmul.mubr.f32.gmra.mrb[0].mxu0 %v481
      %v549 = vpop.f32.mrb[0].mxu0
      %v550 = vadd.f32 0.0, %v549
      %v551 = vpop.f32.mrb[0].mxu0
      %552 = vdwg.mxu0
      %554 = vrot.lane.b32.xlu0 %v550, 1
      %v555 = vpop.permute.xlu0 %554
      %vm557 = vcmask 35848
      %558 = vst.msk [vmem:[#allocation2 + $0x1] sm:$0xf] %vm557, %v555
      %v559 = vld [vmem:[#allocation2] sm:$0xf]
      %vm560 = vcmask 27648
      %561 = vst.msk [vmem:[#allocation3] sm:$0xf] %vm560, %v559
      %v562 = vld [vmem:[#allocation2] sm:$0xf]
      %564 = vrot.lane.b32.xlu0 %v562, 127
      %v565 = vpop.permute.xlu0 %564
      %s567 = scalar_lea.vmem [#allocation3], 4
      %568 = vst.msk [vmem:[%s567] sm:$0xf] %vm560, %v565
      %v569 = vld [vmem:[#allocation2] sm:$0xf]
      %571 = vrot.lane.b32.xlu0 %v569, 126
      %v572 = vpop.permute.xlu0 %571
      %s574 = scalar_lea.vmem [#allocation3], 8
      %575 = vst.msk [vmem:[%s574] sm:$0xf] %vm560, %v572
      %v576 = vld [vmem:[#allocation2 + $0x1] sm:$0xf]
      %s577 = scalar_lea.vmem [#allocation3], 12
      %578 = vst.msk [vmem:[%s577] sm:$0xf] %vm560, %v576
      %v579 = vld [vmem:[#allocation2 + $0x1] sm:$0xf]
      %581 = vrot.lane.b32.xlu0 %v579, 127
      %v582 = vpop.permute.xlu0 %581
      %s584 = scalar_lea.vmem [#allocation3], 16
      %585 = vst.msk [vmem:[%s584] sm:$0xf] %vm560, %v582
      %v586 = vld [vmem:[#allocation2 + $0x1] sm:$0xf]
      %588 = vrot.lane.b32.xlu0 %v586, 126
      %v589 = vpop.permute.xlu0 %588
      %s591 = scalar_lea.vmem [#allocation3], 20
      %592 = vst.msk [vmem:[%s591] sm:$0xf] %vm560, %v589
      %v593 = vld [vmem:[#allocation2 + $0x2] sm:$0xf]
      %s594 = scalar_lea.vmem [#allocation3], 24
      %595 = vst.msk [vmem:[%s594] sm:$0xf] %vm560, %v593
      %v596 = vld [vmem:[#allocation2 + $0x2] sm:$0xf]
      %598 = vrot.lane.b32.xlu0 %v596, 127
      %v599 = vpop.permute.xlu0 %598
      %s601 = scalar_lea.vmem [#allocation3], 28
      %602 = vst.msk [vmem:[%s601] sm:$0xf] %vm560, %v599
      %v603 = vld [vmem:[#allocation2 + $0x2] sm:$0xf]
      %605 = vrot.lane.b32.xlu0 %v603, 126
      %v606 = vpop.permute.xlu0 %605
      %s608 = scalar_lea.vmem [#allocation3], 32
      %609 = vst.msk [vmem:[%s608] sm:$0xf] %vm560, %v606
      %v610 = vld [vmem:[#allocation3] sm:$0x1]
      %v611 = vld [vmem:[#allocation3 + $0x4] sm:$0x1]
      %v612 = vld [vmem:[#allocation3 + $0x8] sm:$0x1]
      %v613 = vld [vmem:[#allocation3 + $0xc] sm:$0x1]
      %v614 = vld [vmem:[#allocation3 + $0x10] sm:$0x1]
      %v615 = vld [vmem:[#allocation3 + $0x14] sm:$0x1]
      %v616 = vld [vmem:[#allocation3 + $0x18] sm:$0x1]
      %v617 = vld [vmem:[#allocation3 + $0x1c] sm:$0x1]
      %v618 = vld [vmem:[#allocation3 + $0x20] sm:$0x1]
      %v628 = vrot.slane %v611, 7
      %vm629 = vcmask 1041409
      %v630 = vsel %vm629, %v628, %v610
      %v631 = vrot.slane %v612, 6
      %vm632 = vcmask 1042434
      %v633 = vsel %vm632, %v631, %v630
      %v634 = vrot.slane %v613, 5
      %vm635 = vcmask 1043459
      %v636 = vsel %vm635, %v634, %v633
      %v637 = vrot.slane %v614, 4
      %vm638 = vcmask 1044484
      %v639 = vsel %vm638, %v637, %v636
      %v640 = vrot.slane %v615, 3
      %vm641 = vcmask 1045509
      %v642 = vsel %vm641, %v640, %v639
      %v643 = vrot.slane %v616, 2
      %vm644 = vcmask 1046534
      %v645 = vsel %vm644, %v643, %v642
      %v646 = vrot.slane %v617, 1
      %vm647 = vcmask 1047559
      %v648 = vsel %vm647, %v646, %v645
      %vm651 = vcmask 31744
      %652 = vst.msk [vmem:[#allocation4] sm:$0xff] %vm651, %v648
      %vm653 = vcmask 24576
      %654 = vst.msk [vmem:[#allocation4 + $0x8] sm:$0x1] %vm653, %v618
      %v655 = vld [vmem:[#allocation3 + $0x1] sm:$0x1]
      %v656 = vld [vmem:[#allocation3 + $0x5] sm:$0x1]
      %v657 = vld [vmem:[#allocation3 + $0x9] sm:$0x1]
      %v658 = vld [vmem:[#allocation3 + $0xd] sm:$0x1]
      %v659 = vld [vmem:[#allocation3 + $0x11] sm:$0x1]
      %v660 = vld [vmem:[#allocation3 + $0x15] sm:$0x1]
      %v661 = vld [vmem:[#allocation3 + $0x19] sm:$0x1]
      %v662 = vld [vmem:[#allocation3 + $0x1d] sm:$0x1]
      %v663 = vld [vmem:[#allocation3 + $0x21] sm:$0x1]
      %v673 = vrot.slane %v656, 7
      %v674 = vsel %vm629, %v673, %v655
      %v675 = vrot.slane %v657, 6
      %v676 = vsel %vm632, %v675, %v674
      %v677 = vrot.slane %v658, 5
      %v678 = vsel %vm635, %v677, %v676
      %v679 = vrot.slane %v659, 4
      %v680 = vsel %vm638, %v679, %v678
      %v681 = vrot.slane %v660, 3
      %v682 = vsel %vm641, %v681, %v680
      %v683 = vrot.slane %v661, 2
      %v684 = vsel %vm644, %v683, %v682
      %v685 = vrot.slane %v662, 1
      %v686 = vsel %vm647, %v685, %v684
      %687 = vrot.lane.b32.xlu0 %v686, 4
      %v688 = vpop.permute.xlu0 %687
      %689 = vrot.lane.b32.xlu0 %v663, 4
      %v690 = vpop.permute.xlu0 %689
      %vm693 = vcmask 64544
      %694 = vst.msk [vmem:[#allocation4] sm:$0xff] %vm693, %v688
      %vm695 = vcmask 57376
      %696 = vst.msk [vmem:[#allocation4 + $0x8] sm:$0x1] %vm695, %v690
      %v697 = vld [vmem:[#allocation3 + $0x2] sm:$0x1]
      %v698 = vld [vmem:[#allocation3 + $0x6] sm:$0x1]
      %v699 = vld [vmem:[#allocation3 + $0xa] sm:$0x1]
      %v700 = vld [vmem:[#allocation3 + $0xe] sm:$0x1]
      %v701 = vld [vmem:[#allocation3 + $0x12] sm:$0x1]
      %v702 = vld [vmem:[#allocation3 + $0x16] sm:$0x1]
      %v703 = vld [vmem:[#allocation3 + $0x1a] sm:$0x1]
      %v704 = vld [vmem:[#allocation3 + $0x1e] sm:$0x1]
      %v705 = vld [vmem:[#allocation3 + $0x22] sm:$0x1]
      %v715 = vrot.slane %v698, 7
      %v716 = vsel %vm629, %v715, %v697
      %v717 = vrot.slane %v699, 6
      %v718 = vsel %vm632, %v717, %v716
      %v719 = vrot.slane %v700, 5
      %v720 = vsel %vm635, %v719, %v718
      %v721 = vrot.slane %v701, 4
      %v722 = vsel %vm638, %v721, %v720
      %v723 = vrot.slane %v702, 3
      %v724 = vsel %vm641, %v723, %v722
      %v725 = vrot.slane %v703, 2
      %v726 = vsel %vm644, %v725, %v724
      %v727 = vrot.slane %v704, 1
      %v728 = vsel %vm647, %v727, %v726
      %729 = vrot.lane.b32.xlu0 %v728, 8
      %v730 = vpop.permute.xlu0 %729
      %731 = vrot.lane.b32.xlu0 %v705, 8
      %v732 = vpop.permute.xlu0 %731
      %vm735 = vcmask 97344
      %736 = vst.msk [vmem:[#allocation4] sm:$0xff] %vm735, %v730
      %vm737 = vcmask 90176
      %738 = vst.msk [vmem:[#allocation4 + $0x8] sm:$0x1] %vm737, %v732
      %v739 = vld [vmem:[#allocation3 + $0x3] sm:$0x1]
      %v740 = vld [vmem:[#allocation3 + $0x7] sm:$0x1]
      %v741 = vld [vmem:[#allocation3 + $0xb] sm:$0x1]
      %v742 = vld [vmem:[#allocation3 + $0xf] sm:$0x1]
      %v743 = vld [vmem:[#allocation3 + $0x13] sm:$0x1]
      %v744 = vld [vmem:[#allocation3 + $0x17] sm:$0x1]
      %v745 = vld [vmem:[#allocation3 + $0x1b] sm:$0x1]
      %v746 = vld [vmem:[#allocation3 + $0x1f] sm:$0x1]
      %v747 = vld [vmem:[#allocation3 + $0x23] sm:$0x1]
      %v757 = vrot.slane %v740, 7
      %v758 = vsel %vm629, %v757, %v739
      %v759 = vrot.slane %v741, 6
      %v760 = vsel %vm632, %v759, %v758
      %v761 = vrot.slane %v742, 5
      %v762 = vsel %vm635, %v761, %v760
      %v763 = vrot.slane %v743, 4
      %v764 = vsel %vm638, %v763, %v762
      %v765 = vrot.slane %v744, 3
      %v766 = vsel %vm641, %v765, %v764
      %v767 = vrot.slane %v745, 2
      %v768 = vsel %vm644, %v767, %v766
      %v769 = vrot.slane %v746, 1
      %v770 = vsel %vm647, %v769, %v768
      %771 = vrot.lane.b32.xlu0 %v770, 12
      %v772 = vpop.permute.xlu0 %771
      %773 = vrot.lane.b32.xlu0 %v747, 12
      %v774 = vpop.permute.xlu0 %773
      %vm777 = vcmask 130144
      %778 = vst.msk [vmem:[#allocation4] sm:$0xff] %vm777, %v772
      %vm779 = vcmask 122976
      %780 = vst.msk [vmem:[#allocation4 + $0x8] sm:$0x1] %vm779, %v774
      %v781 = vld [vmem:[%s4] sm:$0xff]
      %v782 = vld [vmem:[%s4 + $0x8] sm:$0xff]
      %v783 = vld [vmem:[%s4 + $0x10] sm:$0xff]
      %v784 = vld [vmem:[%s4 + $0x18] sm:$0xff]
      %v785 = vld [vmem:[%s4 + $0x20] sm:$0xff]
      %v786 = vld [vmem:[%s4 + $0x28] sm:$0xff]
      %v787 = vld [vmem:[%s4 + $0x30] sm:$0xff]
      %v788 = vld [vmem:[%s4 + $0x38] sm:$0xff]
      %v789 = vld [vmem:[#allocation4] sm:$0xff]
      %v790 = vld [vmem:[#allocation4 + $0x8] sm:$0x1]
      %v791 = vld [vmem:[%s5] sm:$0xff]
      %v792 = vld [vmem:[%s5 + $0x8] sm:$0xff]
      %v793 = vld [vmem:[%s5 + $0x10] sm:$0xff]
      %v794 = vld [vmem:[%s5 + $0x18] sm:$0xff]
      %v795 = vld [vmem:[%s5 + $0x20] sm:$0xff]
      %v796 = vld [vmem:[%s5 + $0x28] sm:$0xff]
      %v797 = vld [vmem:[%s5 + $0x30] sm:$0xff]
      %v798 = vld [vmem:[%s5 + $0x38] sm:$0xff]
      %800 = vset.pattern.permute.xlu0 0
      %801 = vperm.xlu0 %800, %v791
      %v802 = vpop.permute.xlu0 %801
      %805 = vset.pattern.permute.xlu0 0
      %806 = vperm.xlu0 %805, %v792
      %v807 = vpop.permute.xlu0 %806
      %810 = vset.pattern.permute.xlu0 0
      %811 = vperm.xlu0 %810, %v793
      %v812 = vpop.permute.xlu0 %811
      %815 = vset.pattern.permute.xlu0 0
      %816 = vperm.xlu0 %815, %v794
      %v817 = vpop.permute.xlu0 %816
      %820 = vset.pattern.permute.xlu0 0
      %821 = vperm.xlu0 %820, %v795
      %v822 = vpop.permute.xlu0 %821
      %825 = vset.pattern.permute.xlu0 0
      %826 = vperm.xlu0 %825, %v796
      %v827 = vpop.permute.xlu0 %826
      %830 = vset.pattern.permute.xlu0 0
      %831 = vperm.xlu0 %830, %v797
      %v832 = vpop.permute.xlu0 %831
      %835 = vset.pattern.permute.xlu0 0
      %836 = vperm.xlu0 %835, %v798
      %v837 = vpop.permute.xlu0 %836
      %vm839 = vcmask 72704
      %v841 = vsel %vm839, %v781, 0
      %v844 = vsel %vm839, %v782, 0
      %v847 = vsel %vm839, %v783, 0
      %v850 = vsel %vm839, %v784, 0
      %v853 = vsel %vm839, %v785, 0
      %v856 = vsel %vm839, %v786, 0
      %v859 = vsel %vm839, %v787, 0
      %v862 = vsel %vm839, %v788, 0
      %vm864 = vcmask 1040384
      %v866 = vsel %vm864, %v790, 0
      %868 = vmatprep.subr.mxu0 0.0
      %869 = vmatpush1.msra.mxu0 %v789
      %870 = vmatprep.subr.mxu0 0.0
      %871 = vmatpush1.msra.mxu0 %v866
      %872 = vmatprep.subr.mxu0 0.0
      %873 = vmatpush1.msra.mxu0 0.0
      %874 = vmatprep.subr.mxu0 0.0
      %875 = vmatpush1.msra.mxu0 0.0
      %876 = vmatprep.subr.mxu0 0.0
      %877 = vmatpush1.msra.mxu0 0.0
      %878 = vmatprep.subr.mxu0 0.0
      %879 = vmatpush1.msra.mxu0 0.0
      %880 = vmatprep.subr.mxu0 0.0
      %881 = vmatpush1.msra.mxu0 0.0
      %882 = vmatprep.subr.mxu0 0.0
      %883 = vmatpush1.msra.mxu0 0.0
      %884 = vmatprep.subr.mxu0 0.0
      %885 = vmatpush1.msra.mxu0 0.0
      %886 = vmatprep.subr.mxu0 0.0
      %887 = vmatpush1.msra.mxu0 0.0
      %888 = vmatprep.subr.mxu0 0.0
      %889 = vmatpush1.msra.mxu0 0.0
      %890 = vmatprep.subr.mxu0 0.0
      %891 = vmatpush1.msra.mxu0 0.0
      %892 = vmatprep.subr.mxu0 0.0
      %893 = vmatpush1.msra.mxu0 0.0
      %894 = vmatprep.subr.mxu0 0.0
      %895 = vmatpush1.msra.mxu0 0.0
      %896 = vmatprep.subr.mxu0 0.0
      %897 = vmatpush1.msra.mxu0 0.0
      %898 = vmatprep.subr.mxu0 0.0
      %899 = vmatpush1.msra.mxu0 0.0
      %900 = vmatprep.subr.mxu0 0.0
      %901 = vmatpush1.msra.mxu0 0.0
      %902 = vmatprep.subr.mxu0 0.0
      %903 = vmatpush1.msra.mxu0 0.0
      %904 = vmatprep.subr.mxu0 0.0
      %905 = vmatpush1.msra.mxu0 0.0
      %906 = vmatprep.subr.mxu0 0.0
      %907 = vmatpush1.msra.mxu0 0.0
      %908 = vmatprep.subr.mxu0 0.0
      %909 = vmatpush1.msra.mxu0 0.0
      %910 = vmatprep.subr.mxu0 0.0
      %911 = vmatpush1.msra.mxu0 0.0
      %912 = vmatprep.subr.mxu0 0.0
      %913 = vmatpush1.msra.mxu0 0.0
      %914 = vmatprep.subr.mxu0 0.0
      %915 = vmatpush1.msra.mxu0 0.0
      %916 = vmatprep.subr.mxu0 0.0
      %917 = vmatpush1.msra.mxu0 0.0
      %918 = vmatprep.subr.mxu0 0.0
      %919 = vmatpush1.msra.mxu0 0.0
      %920 = vmatprep.subr.mxu0 0.0
      %921 = vmatpush1.msra.mxu0 0.0
      %922 = vmatprep.subr.mxu0 0.0
      %923 = vmatpush1.msra.mxu0 0.0
      %924 = vmatprep.subr.mxu0 0.0
      %925 = vmatpush1.msra.mxu0 0.0
      %926 = vmatprep.subr.mxu0 0.0
      %927 = vmatpush1.msra.mxu0 0.0
      %928 = vmatprep.subr.mxu0 0.0
      %929 = vmatpush1.msra.mxu0 0.0
      %930 = vmatprep.subr.mxu0 0.0
      %931 = vmatpush1.msra.mxu0 0.0
      %932 = vmatprep.mubr.f32.mxu0 0.0
      %933 = vmatmul.mubr.f32.gmra.mrb[0].mxu0 %v841
      %v934 = vpop.f32.mrb[0].mxu0
      %v935 = vadd.f32 %v802, %v934
      %v936 = vpop.f32.mrb[0].mxu0
      %937 = vmatprep.mubr.f32.mxu0 0.0
      %938 = vmatmul.mubr.f32.gmra.mrb[0].mxu0 %v844
      %v939 = vpop.f32.mrb[0].mxu0
      %v940 = vadd.f32 %v807, %v939
      %v941 = vpop.f32.mrb[0].mxu0
      %942 = vmatprep.mubr.f32.mxu0 0.0
      %943 = vmatmul.mubr.f32.gmra.mrb[0].mxu0 %v847
      %v944 = vpop.f32.mrb[0].mxu0
      %v945 = vadd.f32 %v812, %v944
      %v946 = vpop.f32.mrb[0].mxu0
      %947 = vmatprep.mubr.f32.mxu0 0.0
      %948 = vmatmul.mubr.f32.gmra.mrb[0].mxu0 %v850
      %v949 = vpop.f32.mrb[0].mxu0
      %v950 = vadd.f32 %v817, %v949
      %v951 = vpop.f32.mrb[0].mxu0
      %952 = vmatprep.mubr.f32.mxu0 0.0
      %953 = vmatmul.mubr.f32.gmra.mrb[0].mxu0 %v853
      %v954 = vpop.f32.mrb[0].mxu0
      %v955 = vadd.f32 %v822, %v954
      %v956 = vpop.f32.mrb[0].mxu0
      %957 = vmatprep.mubr.f32.mxu0 0.0
      %958 = vmatmul.mubr.f32.gmra.mrb[0].mxu0 %v856
      %v959 = vpop.f32.mrb[0].mxu0
      %v960 = vadd.f32 %v827, %v959
      %v961 = vpop.f32.mrb[0].mxu0
      %962 = vmatprep.mubr.f32.mxu0 0.0
      %963 = vmatmul.mubr.f32.gmra.mrb[0].mxu0 %v859
      %v964 = vpop.f32.mrb[0].mxu0
      %v965 = vadd.f32 %v832, %v964
      %v966 = vpop.f32.mrb[0].mxu0
      %967 = vmatprep.mubr.f32.mxu0 0.0
      %968 = vmatmul.mubr.f32.gmra.mrb[0].mxu0 %v862
      %v969 = vpop.f32.mrb[0].mxu0
      %v970 = vadd.f32 %v837, %v969
      %v971 = vpop.f32.mrb[0].mxu0
      %972 = vdwg.mxu0
      %v973 = vpack.c.bf16 %v940, %v935
      %v974 = vpack.c.bf16 %v950, %v945
      %v975 = vpack.c.bf16 %v960, %v955
      %v976 = vpack.c.bf16 %v970, %v965
      %v981 = vunpack.c.l.b16 %v973
      %v982 = vunpack.c.h.b16 %v973
      %v983 = vunpack.c.l.b16 %v974
      %v984 = vunpack.c.h.b16 %v974
      %v985 = vunpack.c.l.b16 %v975
      %v986 = vunpack.c.h.b16 %v975
      %v987 = vunpack.c.l.b16 %v976
      %v988 = vunpack.c.h.b16 %v976
      %v989 = vpack.c.b16 %v981, %v981
      %v990 = vpack.c.b16 %v982, %v982
      %v991 = vpack.c.b16 %v983, %v983
      %v992 = vpack.c.b16 %v984, %v984
      %v993 = vpack.c.b16 %v985, %v985
      %v994 = vpack.c.b16 %v986, %v986
      %v995 = vpack.c.b16 %v987, %v987
      %v996 = vpack.c.b16 %v988, %v988
      %vm1005 = vcmask 125952
      %1006 = vst.msk [vmem:[%s360] sm:$0xf] %vm1005, %v989
      %1007 = vst.msk [vmem:[%s360 + $0x4] sm:$0xf] %vm1005, %v990
      %1008 = vst.msk [vmem:[%s360 + $0x8] sm:$0xf] %vm1005, %v991
      %1009 = vst.msk [vmem:[%s360 + $0xc] sm:$0xf] %vm1005, %v992
      %1010 = vst.msk [vmem:[%s360 + $0x10] sm:$0xf] %vm1005, %v993
      %1011 = vst.msk [vmem:[%s360 + $0x14] sm:$0xf] %vm1005, %v994
      %1012 = vst.msk [vmem:[%s360 + $0x18] sm:$0xf] %vm1005, %v995
      %1013 = vst.msk [vmem:[%s360 + $0x1c] sm:$0xf] %vm1005, %v996
      %v1014 = vld [vmem:[%s355] sm:$0xff]
      %v1015 = vld [vmem:[%s355 + $0x8] sm:$0xff]
      %v1016 = vld [vmem:[%s355 + $0x10] sm:$0xff]
      %v1017 = vld [vmem:[%s355 + $0x18] sm:$0xff]
      %v1018 = vld [vmem:[%s355 + $0x20] sm:$0xff]
      %v1019 = vld [vmem:[%s355 + $0x28] sm:$0xff]
      %v1020 = vld [vmem:[%s355 + $0x30] sm:$0xff]
      %v1021 = vld [vmem:[%s355 + $0x38] sm:$0xff]
      %v1022 = vld [vmem:[%s355 + $0x40] sm:$0xff]
      %v1023 = vld [vmem:[%s355 + $0x48] sm:$0xff]
      %v1024 = vld [vmem:[%s355 + $0x50] sm:$0xff]
      %v1025 = vld [vmem:[%s355 + $0x58] sm:$0xff]
      %v1027 = vsel %vm398, %v1014, 0
      %v1030 = vsel %vm398, %v1015, 0
      %v1033 = vsel %vm398, %v1016, 0
      %v1036 = vsel %vm398, %v1017, 0
      %v1039 = vsel %vm398, %v1018, 0
      %v1042 = vsel %vm398, %v1019, 0
      %v1045 = vsel %vm398, %v1020, 0
      %v1048 = vsel %vm398, %v1021, 0
      %v1051 = vsel %vm398, %v1022, 0
      %v1054 = vsel %vm398, %v1023, 0
      %v1057 = vsel %vm398, %v1024, 0
      %v1060 = vsel %vm398, %v1025, 0
      %1062 = vmatprep.subr.mxu0 0.0
      %1063 = vmatpush1.msra.mxu0 %v367
      %1064 = vmatprep.subr.mxu0 0.0
      %1065 = vmatpush1.msra.mxu0 %v368
      %1066 = vmatprep.subr.mxu0 0.0
      %1067 = vmatpush1.msra.mxu0 0.0
      %1068 = vmatprep.subr.mxu0 0.0
      %1069 = vmatpush1.msra.mxu0 0.0
      %1070 = vmatprep.subr.mxu0 0.0
      %1071 = vmatpush1.msra.mxu0 0.0
      %1072 = vmatprep.subr.mxu0 0.0
      %1073 = vmatpush1.msra.mxu0 0.0
      %1074 = vmatprep.subr.mxu0 0.0
      %1075 = vmatpush1.msra.mxu0 0.0
      %1076 = vmatprep.subr.mxu0 0.0
      %1077 = vmatpush1.msra.mxu0 0.0
      %1078 = vmatprep.subr.mxu0 0.0
      %1079 = vmatpush1.msra.mxu0 0.0
      %1080 = vmatprep.subr.mxu0 0.0
      %1081 = vmatpush1.msra.mxu0 0.0
      %1082 = vmatprep.subr.mxu0 0.0
      %1083 = vmatpush1.msra.mxu0 0.0
      %1084 = vmatprep.subr.mxu0 0.0
      %1085 = vmatpush1.msra.mxu0 0.0
      %1086 = vmatprep.subr.mxu0 0.0
      %1087 = vmatpush1.msra.mxu0 0.0
      %1088 = vmatprep.subr.mxu0 0.0
      %1089 = vmatpush1.msra.mxu0 0.0
      %1090 = vmatprep.subr.mxu0 0.0
      %1091 = vmatpush1.msra.mxu0 0.0
      %1092 = vmatprep.subr.mxu0 0.0
      %1093 = vmatpush1.msra.mxu0 0.0
      %1094 = vmatprep.subr.mxu0 0.0
      %1095 = vmatpush1.msra.mxu0 0.0
      %1096 = vmatprep.subr.mxu0 0.0
      %1097 = vmatpush1.msra.mxu0 0.0
      %1098 = vmatprep.subr.mxu0 0.0
      %1099 = vmatpush1.msra.mxu0 0.0
      %1100 = vmatprep.subr.mxu0 0.0
      %1101 = vmatpush1.msra.mxu0 0.0
      %1102 = vmatprep.subr.mxu0 0.0
      %1103 = vmatpush1.msra.mxu0 0.0
      %1104 = vmatprep.subr.mxu0 0.0
      %1105 = vmatpush1.msra.mxu0 0.0
      %1106 = vmatprep.subr.mxu0 0.0
      %1107 = vmatpush1.msra.mxu0 0.0
      %1108 = vmatprep.subr.mxu0 0.0
      %1109 = vmatpush1.msra.mxu0 0.0
      %1110 = vmatprep.subr.mxu0 0.0
      %1111 = vmatpush1.msra.mxu0 0.0
      %1112 = vmatprep.subr.mxu0 0.0
      %1113 = vmatpush1.msra.mxu0 0.0
      %1114 = vmatprep.subr.mxu0 0.0
      %1115 = vmatpush1.msra.mxu0 0.0
      %1116 = vmatprep.subr.mxu0 0.0
      %1117 = vmatpush1.msra.mxu0 0.0
      %1118 = vmatprep.subr.mxu0 0.0
      %1119 = vmatpush1.msra.mxu0 0.0
      %1120 = vmatprep.subr.mxu0 0.0
      %1121 = vmatpush1.msra.mxu0 0.0
      %1122 = vmatprep.subr.mxu0 0.0
      %1123 = vmatpush1.msra.mxu0 0.0
      %1124 = vmatprep.subr.mxu0 0.0
      %1125 = vmatpush1.msra.mxu0 0.0
      %1126 = vmatprep.mubr.f32.mxu0 0.0
      %1127 = vmatmul.mubr.f32.gmra.mrb[0].mxu0 %v1027
      %v1128 = vpop.f32.mrb[0].mxu0
      %v1129 = vadd.f32 0.0, %v1128
      %v1130 = vpop.f32.mrb[0].mxu0
      %1131 = vmatprep.mubr.f32.mxu0 0.0
      %1132 = vmatmul.mubr.f32.gmra.mrb[0].mxu0 %v1030
      %v1133 = vpop.f32.mrb[0].mxu0
      %v1134 = vadd.f32 0.0, %v1133
      %v1135 = vpop.f32.mrb[0].mxu0
      %1136 = vmatprep.mubr.f32.mxu0 0.0
      %1137 = vmatmul.mubr.f32.gmra.mrb[0].mxu0 %v1033
      %v1138 = vpop.f32.mrb[0].mxu0
      %v1139 = vadd.f32 0.0, %v1138
      %v1140 = vpop.f32.mrb[0].mxu0
      %1141 = vmatprep.mubr.f32.mxu0 0.0
      %1142 = vmatmul.mubr.f32.gmra.mrb[0].mxu0 %v1036
      %v1143 = vpop.f32.mrb[0].mxu0
      %v1144 = vadd.f32 0.0, %v1143
      %v1145 = vpop.f32.mrb[0].mxu0
      %1146 = vmatprep.mubr.f32.mxu0 0.0
      %1147 = vmatmul.mubr.f32.gmra.mrb[0].mxu0 %v1039
      %v1148 = vpop.f32.mrb[0].mxu0
      %v1149 = vadd.f32 0.0, %v1148
      %v1150 = vpop.f32.mrb[0].mxu0
      %1151 = vmatprep.mubr.f32.mxu0 0.0
      %1152 = vmatmul.mubr.f32.gmra.mrb[0].mxu0 %v1042
      %v1153 = vpop.f32.mrb[0].mxu0
      %v1154 = vadd.f32 0.0, %v1153
      %v1155 = vpop.f32.mrb[0].mxu0
      %1156 = vmatprep.mubr.f32.mxu0 0.0
      %1157 = vmatmul.mubr.f32.gmra.mrb[0].mxu0 %v1045
      %v1158 = vpop.f32.mrb[0].mxu0
      %v1159 = vadd.f32 0.0, %v1158
      %v1160 = vpop.f32.mrb[0].mxu0
      %1161 = vmatprep.mubr.f32.mxu0 0.0
      %1162 = vmatmul.mubr.f32.gmra.mrb[0].mxu0 %v1048
      %v1163 = vpop.f32.mrb[0].mxu0
      %v1164 = vadd.f32 0.0, %v1163
      %v1165 = vpop.f32.mrb[0].mxu0
      %1166 = vmatprep.mubr.f32.mxu0 0.0
      %1167 = vmatmul.mubr.f32.gmra.mrb[0].mxu0 %v1051
      %v1168 = vpop.f32.mrb[0].mxu0
      %v1169 = vadd.f32 0.0, %v1168
      %v1170 = vpop.f32.mrb[0].mxu0
      %1171 = vmatprep.mubr.f32.mxu0 0.0
      %1172 = vmatmul.mubr.f32.gmra.mrb[0].mxu0 %v1054
      %v1173 = vpop.f32.mrb[0].mxu0
      %v1174 = vadd.f32 0.0, %v1173
      %v1175 = vpop.f32.mrb[0].mxu0
      %1176 = vmatprep.mubr.f32.mxu0 0.0
      %1177 = vmatmul.mubr.f32.gmra.mrb[0].mxu0 %v1057
      %v1178 = vpop.f32.mrb[0].mxu0
      %v1179 = vadd.f32 0.0, %v1178
      %v1180 = vpop.f32.mrb[0].mxu0
      %1181 = vmatprep.mubr.f32.mxu0 0.0
      %1182 = vmatmul.mubr.f32.gmra.mrb[0].mxu0 %v1060
      %v1183 = vpop.f32.mrb[0].mxu0
      %v1184 = vadd.f32 0.0, %v1183
      %v1185 = vpop.f32.mrb[0].mxu0
      %1186 = vdwg.mxu0
      %1187 = vmatprep.subr.mxu0 0.0
      %1188 = vmatpush1.msra.mxu0 %v1129
      %1189 = vmatprep.subr.mxu0 0.0
      %1190 = vmatpush1.msra.mxu0 %v1134
      %1191 = vmatprep.subr.mxu0 0.0
      %1192 = vmatpush1.msra.mxu0 0.0
      %1193 = vmatprep.subr.mxu0 0.0
      %1194 = vmatpush1.msra.mxu0 0.0
      %1195 = vmatprep.subr.mxu0 0.0
      %1196 = vmatpush1.msra.mxu0 0.0
      %1197 = vmatprep.subr.mxu0 0.0
      %1198 = vmatpush1.msra.mxu0 0.0
      %1199 = vmatprep.subr.mxu0 0.0
      %1200 = vmatpush1.msra.mxu0 0.0
      %1201 = vmatprep.subr.mxu0 0.0
      %1202 = vmatpush1.msra.mxu0 0.0
      %1203 = vmatprep.subr.mxu0 0.0
      %1204 = vmatpush1.msra.mxu0 0.0
      %1205 = vmatprep.subr.mxu0 0.0
      %1206 = vmatpush1.msra.mxu0 0.0
      %1207 = vmatprep.subr.mxu0 0.0
      %1208 = vmatpush1.msra.mxu0 0.0
      %1209 = vmatprep.subr.mxu0 0.0
      %1210 = vmatpush1.msra.mxu0 0.0
      %1211 = vmatprep.subr.mxu0 0.0
      %1212 = vmatpush1.msra.mxu0 0.0
      %1213 = vmatprep.subr.mxu0 0.0
      %1214 = vmatpush1.msra.mxu0 0.0
      %1215 = vmatprep.subr.mxu0 0.0
      %1216 = vmatpush1.msra.mxu0 0.0
      %1217 = vmatprep.subr.mxu0 0.0
      %1218 = vmatpush1.msra.mxu0 0.0
      %1219 = vmatprep.subr.mxu0 0.0
      %1220 = vmatpush1.msra.mxu0 0.0
      %1221 = vmatprep.subr.mxu0 0.0
      %1222 = vmatpush1.msra.mxu0 0.0
      %1223 = vmatprep.subr.mxu0 0.0
      %1224 = vmatpush1.msra.mxu0 0.0
      %1225 = vmatprep.subr.mxu0 0.0
      %1226 = vmatpush1.msra.mxu0 0.0
      %1227 = vmatprep.subr.mxu0 0.0
      %1228 = vmatpush1.msra.mxu0 0.0
      %1229 = vmatprep.subr.mxu0 0.0
      %1230 = vmatpush1.msra.mxu0 0.0
      %1231 = vmatprep.subr.mxu0 0.0
      %1232 = vmatpush1.msra.mxu0 0.0
      %1233 = vmatprep.subr.mxu0 0.0
      %1234 = vmatpush1.msra.mxu0 0.0
      %1235 = vmatprep.subr.mxu0 0.0
      %1236 = vmatpush1.msra.mxu0 0.0
      %1237 = vmatprep.subr.mxu0 0.0
      %1238 = vmatpush1.msra.mxu0 0.0
      %1239 = vmatprep.subr.mxu0 0.0
      %1240 = vmatpush1.msra.mxu0 0.0
      %1241 = vmatprep.subr.mxu0 0.0
      %1242 = vmatpush1.msra.mxu0 0.0
      %1243 = vmatprep.subr.mxu0 0.0
      %1244 = vmatpush1.msra.mxu0 0.0
      %1245 = vmatprep.subr.mxu0 0.0
      %1246 = vmatpush1.msra.mxu0 0.0
      %1247 = vmatprep.subr.mxu0 0.0
      %1248 = vmatpush1.msra.mxu0 0.0
      %1249 = vmatprep.subr.mxu0 0.0
      %1250 = vmatpush1.msra.mxu0 0.0
      %1251 = vmatprep.mubr.f32.mxu0 0.0
      %1252 = vmatmul.mubr.f32.gmra.mrb[0].mxu0 %v481
      %v1253 = vpop.f32.mrb[0].mxu0
      %v1254 = vadd.f32 0.0, %v1253
      %v1255 = vpop.f32.mrb[0].mxu0
      %1256 = vdwg.mxu0
      %1258 = vrot.lane.b32.xlu0 %v1254, 1
      %v1259 = vpop.permute.xlu0 %1258
      %1261 = vst.msk [vmem:[#allocation2 + $0x1] sm:$0xf] %vm557, %v1259
      %1262 = vmatprep.subr.mxu0 0.0
      %1263 = vmatpush1.msra.mxu0 %v1139
      %1264 = vmatprep.subr.mxu0 0.0
      %1265 = vmatpush1.msra.mxu0 %v1144
      %1266 = vmatprep.subr.mxu0 0.0
      %1267 = vmatpush1.msra.mxu0 0.0
      %1268 = vmatprep.subr.mxu0 0.0
      %1269 = vmatpush1.msra.mxu0 0.0
      %1270 = vmatprep.subr.mxu0 0.0
      %1271 = vmatpush1.msra.mxu0 0.0
      %1272 = vmatprep.subr.mxu0 0.0
      %1273 = vmatpush1.msra.mxu0 0.0
      %1274 = vmatprep.subr.mxu0 0.0
      %1275 = vmatpush1.msra.mxu0 0.0
      %1276 = vmatprep.subr.mxu0 0.0
      %1277 = vmatpush1.msra.mxu0 0.0
      %1278 = vmatprep.subr.mxu0 0.0
      %1279 = vmatpush1.msra.mxu0 0.0
      %1280 = vmatprep.subr.mxu0 0.0
      %1281 = vmatpush1.msra.mxu0 0.0
      %1282 = vmatprep.subr.mxu0 0.0
      %1283 = vmatpush1.msra.mxu0 0.0
      %1284 = vmatprep.subr.mxu0 0.0
      %1285 = vmatpush1.msra.mxu0 0.0
      %1286 = vmatprep.subr.mxu0 0.0
      %1287 = vmatpush1.msra.mxu0 0.0
      %1288 = vmatprep.subr.mxu0 0.0
      %1289 = vmatpush1.msra.mxu0 0.0
      %1290 = vmatprep.subr.mxu0 0.0
      %1291 = vmatpush1.msra.mxu0 0.0
      %1292 = vmatprep.subr.mxu0 0.0
      %1293 = vmatpush1.msra.mxu0 0.0
      %1294 = vmatprep.subr.mxu0 0.0
      %1295 = vmatpush1.msra.mxu0 0.0
      %1296 = vmatprep.subr.mxu0 0.0
      %1297 = vmatpush1.msra.mxu0 0.0
      %1298 = vmatprep.subr.mxu0 0.0
      %1299 = vmatpush1.msra.mxu0 0.0
      %1300 = vmatprep.subr.mxu0 0.0
      %1301 = vmatpush1.msra.mxu0 0.0
      %1302 = vmatprep.subr.mxu0 0.0
      %1303 = vmatpush1.msra.mxu0 0.0
      %1304 = vmatprep.subr.mxu0 0.0
      %1305 = vmatpush1.msra.mxu0 0.0
      %1306 = vmatprep.subr.mxu0 0.0
      %1307 = vmatpush1.msra.mxu0 0.0
      %1308 = vmatprep.subr.mxu0 0.0
      %1309 = vmatpush1.msra.mxu0 0.0
      %1310 = vmatprep.subr.mxu0 0.0
      %1311 = vmatpush1.msra.mxu0 0.0
      %1312 = vmatprep.subr.mxu0 0.0
      %1313 = vmatpush1.msra.mxu0 0.0
      %1314 = vmatprep.subr.mxu0 0.0
      %1315 = vmatpush1.msra.mxu0 0.0
      %1316 = vmatprep.subr.mxu0 0.0
      %1317 = vmatpush1.msra.mxu0 0.0
      %1318 = vmatprep.subr.mxu0 0.0
      %1319 = vmatpush1.msra.mxu0 0.0
      %1320 = vmatprep.subr.mxu0 0.0
      %1321 = vmatpush1.msra.mxu0 0.0
      %1322 = vmatprep.subr.mxu0 0.0
      %1323 = vmatpush1.msra.mxu0 0.0
      %1324 = vmatprep.subr.mxu0 0.0
      %1325 = vmatpush1.msra.mxu0 0.0
      %1326 = vmatprep.mubr.f32.mxu0 0.0
      %1327 = vmatmul.mubr.f32.gmra.mrb[0].mxu0 %v481
      %v1328 = vpop.f32.mrb[0].mxu0
      %v1329 = vadd.f32 0.0, %v1328
      %v1330 = vpop.f32.mrb[0].mxu0
      %1331 = vdwg.mxu0
      %1333 = vrot.lane.b32.xlu0 %v1329, 1
      %v1334 = vpop.permute.xlu0 %1333
      %s1336 = scalar_lea.vmem [#allocation2], 8
      %1337 = vst.msk [vmem:[%s1336 + $0x1] sm:$0xf] %vm557, %v1334
      %1338 = vmatprep.subr.mxu0 0.0
      %1339 = vmatpush1.msra.mxu0 %v1149
      %1340 = vmatprep.subr.mxu0 0.0
      %1341 = vmatpush1.msra.mxu0 %v1154
      %1342 = vmatprep.subr.mxu0 0.0
      %1343 = vmatpush1.msra.mxu0 0.0
      %1344 = vmatprep.subr.mxu0 0.0
      %1345 = vmatpush1.msra.mxu0 0.0
      %1346 = vmatprep.subr.mxu0 0.0
      %1347 = vmatpush1.msra.mxu0 0.0
      %1348 = vmatprep.subr.mxu0 0.0
      %1349 = vmatpush1.msra.mxu0 0.0
      %1350 = vmatprep.subr.mxu0 0.0
      %1351 = vmatpush1.msra.mxu0 0.0
      %1352 = vmatprep.subr.mxu0 0.0
      %1353 = vmatpush1.msra.mxu0 0.0
      %1354 = vmatprep.subr.mxu0 0.0
      %1355 = vmatpush1.msra.mxu0 0.0
      %1356 = vmatprep.subr.mxu0 0.0
      %1357 = vmatpush1.msra.mxu0 0.0
      %1358 = vmatprep.subr.mxu0 0.0
      %1359 = vmatpush1.msra.mxu0 0.0
      %1360 = vmatprep.subr.mxu0 0.0
      %1361 = vmatpush1.msra.mxu0 0.0
      %1362 = vmatprep.subr.mxu0 0.0
      %1363 = vmatpush1.msra.mxu0 0.0
      %1364 = vmatprep.subr.mxu0 0.0
      %1365 = vmatpush1.msra.mxu0 0.0
      %1366 = vmatprep.subr.mxu0 0.0
      %1367 = vmatpush1.msra.mxu0 0.0
      %1368 = vmatprep.subr.mxu0 0.0
      %1369 = vmatpush1.msra.mxu0 0.0
      %1370 = vmatprep.subr.mxu0 0.0
      %1371 = vmatpush1.msra.mxu0 0.0
      %1372 = vmatprep.subr.mxu0 0.0
      %1373 = vmatpush1.msra.mxu0 0.0
      %1374 = vmatprep.subr.mxu0 0.0
      %1375 = vmatpush1.msra.mxu0 0.0
      %1376 = vmatprep.subr.mxu0 0.0
      %1377 = vmatpush1.msra.mxu0 0.0
      %1378 = vmatprep.subr.mxu0 0.0
      %1379 = vmatpush1.msra.mxu0 0.0
      %1380 = vmatprep.subr.mxu0 0.0
      %1381 = vmatpush1.msra.mxu0 0.0
      %1382 = vmatprep.subr.mxu0 0.0
      %1383 = vmatpush1.msra.mxu0 0.0
      %1384 = vmatprep.subr.mxu0 0.0
      %1385 = vmatpush1.msra.mxu0 0.0
      %1386 = vmatprep.subr.mxu0 0.0
      %1387 = vmatpush1.msra.mxu0 0.0
      %1388 = vmatprep.subr.mxu0 0.0
      %1389 = vmatpush1.msra.mxu0 0.0
      %1390 = vmatprep.subr.mxu0 0.0
      %1391 = vmatpush1.msra.mxu0 0.0
      %1392 = vmatprep.subr.mxu0 0.0
      %1393 = vmatpush1.msra.mxu0 0.0
      %1394 = vmatprep.subr.mxu0 0.0
      %1395 = vmatpush1.msra.mxu0 0.0
      %1396 = vmatprep.subr.mxu0 0.0
      %1397 = vmatpush1.msra.mxu0 0.0
      %1398 = vmatprep.subr.mxu0 0.0
      %1399 = vmatpush1.msra.mxu0 0.0
      %1400 = vmatprep.subr.mxu0 0.0
      %1401 = vmatpush1.msra.mxu0 0.0
      %1402 = vmatprep.mubr.f32.mxu0 0.0
      %1403 = vmatmul.mubr.f32.gmra.mrb[0].mxu0 %v481
      %v1404 = vpop.f32.mrb[0].mxu0
      %v1405 = vadd.f32 0.0, %v1404
      %v1406 = vpop.f32.mrb[0].mxu0
      %1407 = vdwg.mxu0
      %1409 = vrot.lane.b32.xlu0 %v1405, 1
      %v1410 = vpop.permute.xlu0 %1409
      %s1412 = scalar_lea.vmem [#allocation2], 16
      %1413 = vst.msk [vmem:[%s1412 + $0x1] sm:$0xf] %vm557, %v1410
      %1414 = vmatprep.subr.mxu0 0.0
      %1415 = vmatpush1.msra.mxu0 %v1159
      %1416 = vmatprep.subr.mxu0 0.0
      %1417 = vmatpush1.msra.mxu0 %v1164
      %1418 = vmatprep.subr.mxu0 0.0
      %1419 = vmatpush1.msra.mxu0 0.0
      %1420 = vmatprep.subr.mxu0 0.0
      %1421 = vmatpush1.msra.mxu0 0.0
      %1422 = vmatprep.subr.mxu0 0.0
      %1423 = vmatpush1.msra.mxu0 0.0
      %1424 = vmatprep.subr.mxu0 0.0
      %1425 = vmatpush1.msra.mxu0 0.0
      %1426 = vmatprep.subr.mxu0 0.0
      %1427 = vmatpush1.msra.mxu0 0.0
      %1428 = vmatprep.subr.mxu0 0.0
      %1429 = vmatpush1.msra.mxu0 0.0
      %1430 = vmatprep.subr.mxu0 0.0
      %1431 = vmatpush1.msra.mxu0 0.0
      %1432 = vmatprep.subr.mxu0 0.0
      %1433 = vmatpush1.msra.mxu0 0.0
      %1434 = vmatprep.subr.mxu0 0.0
      %1435 = vmatpush1.msra.mxu0 0.0
      %1436 = vmatprep.subr.mxu0 0.0
      %1437 = vmatpush1.msra.mxu0 0.0
      %1438 = vmatprep.subr.mxu0 0.0
      %1439 = vmatpush1.msra.mxu0 0.0
      %1440 = vmatprep.subr.mxu0 0.0
      %1441 = vmatpush1.msra.mxu0 0.0
      %1442 = vmatprep.subr.mxu0 0.0
      %1443 = vmatpush1.msra.mxu0 0.0
      %1444 = vmatprep.subr.mxu0 0.0
      %1445 = vmatpush1.msra.mxu0 0.0
      %1446 = vmatprep.subr.mxu0 0.0
      %1447 = vmatpush1.msra.mxu0 0.0
      %1448 = vmatprep.subr.mxu0 0.0
      %1449 = vmatpush1.msra.mxu0 0.0
      %1450 = vmatprep.subr.mxu0 0.0
      %1451 = vmatpush1.msra.mxu0 0.0
      %1452 = vmatprep.subr.mxu0 0.0
      %1453 = vmatpush1.msra.mxu0 0.0
      %1454 = vmatprep.subr.mxu0 0.0
      %1455 = vmatpush1.msra.mxu0 0.0
      %1456 = vmatprep.subr.mxu0 0.0
      %1457 = vmatpush1.msra.mxu0 0.0
      %1458 = vmatprep.subr.mxu0 0.0
      %1459 = vmatpush1.msra.mxu0 0.0
      %1460 = vmatprep.subr.mxu0 0.0
      %1461 = vmatpush1.msra.mxu0 0.0
      %1462 = vmatprep.subr.mxu0 0.0
      %1463 = vmatpush1.msra.mxu0 0.0
      %1464 = vmatprep.subr.mxu0 0.0
      %1465 = vmatpush1.msra.mxu0 0.0
      %1466 = vmatprep.subr.mxu0 0.0
      %1467 = vmatpush1.msra.mxu0 0.0
      %1468 = vmatprep.subr.mxu0 0.0
      %1469 = vmatpush1.msra.mxu0 0.0
      %1470 = vmatprep.subr.mxu0 0.0
      %1471 = vmatpush1.msra.mxu0 0.0
      %1472 = vmatprep.subr.mxu0 0.0
      %1473 = vmatpush1.msra.mxu0 0.0
      %1474 = vmatprep.subr.mxu0 0.0
      %1475 = vmatpush1.msra.mxu0 0.0
      %1476 = vmatprep.subr.mxu0 0.0
      %1477 = vmatpush1.msra.mxu0 0.0
      %1478 = vmatprep.mubr.f32.mxu0 0.0
      %1479 = vmatmul.mubr.f32.gmra.mrb[0].mxu0 %v481
      %v1480 = vpop.f32.mrb[0].mxu0
      %v1481 = vadd.f32 0.0, %v1480
      %v1482 = vpop.f32.mrb[0].mxu0
      %1483 = vdwg.mxu0
      %1485 = vrot.lane.b32.xlu0 %v1481, 1
      %v1486 = vpop.permute.xlu0 %1485
      %s1488 = scalar_lea.vmem [#allocation2], 24
      %1489 = vst.msk [vmem:[%s1488 + $0x1] sm:$0xf] %vm557, %v1486
      %1490 = vmatprep.subr.mxu0 0.0
      %1491 = vmatpush1.msra.mxu0 %v1169
      %1492 = vmatprep.subr.mxu0 0.0
      %1493 = vmatpush1.msra.mxu0 %v1174
      %1494 = vmatprep.subr.mxu0 0.0
      %1495 = vmatpush1.msra.mxu0 0.0
      %1496 = vmatprep.subr.mxu0 0.0
      %1497 = vmatpush1.msra.mxu0 0.0
      %1498 = vmatprep.subr.mxu0 0.0
      %1499 = vmatpush1.msra.mxu0 0.0
      %1500 = vmatprep.subr.mxu0 0.0
      %1501 = vmatpush1.msra.mxu0 0.0
      %1502 = vmatprep.subr.mxu0 0.0
      %1503 = vmatpush1.msra.mxu0 0.0
      %1504 = vmatprep.subr.mxu0 0.0
      %1505 = vmatpush1.msra.mxu0 0.0
      %1506 = vmatprep.subr.mxu0 0.0
      %1507 = vmatpush1.msra.mxu0 0.0
      %1508 = vmatprep.subr.mxu0 0.0
      %1509 = vmatpush1.msra.mxu0 0.0
      %1510 = vmatprep.subr.mxu0 0.0
      %1511 = vmatpush1.msra.mxu0 0.0
      %1512 = vmatprep.subr.mxu0 0.0
      %1513 = vmatpush1.msra.mxu0 0.0
      %1514 = vmatprep.subr.mxu0 0.0
      %1515 = vmatpush1.msra.mxu0 0.0
      %1516 = vmatprep.subr.mxu0 0.0
      %1517 = vmatpush1.msra.mxu0 0.0
      %1518 = vmatprep.subr.mxu0 0.0
      %1519 = vmatpush1.msra.mxu0 0.0
      %1520 = vmatprep.subr.mxu0 0.0
      %1521 = vmatpush1.msra.mxu0 0.0
      %1522 = vmatprep.subr.mxu0 0.0
      %1523 = vmatpush1.msra.mxu0 0.0
      %1524 = vmatprep.subr.mxu0 0.0
      %1525 = vmatpush1.msra.mxu0 0.0
      %1526 = vmatprep.subr.mxu0 0.0
      %1527 = vmatpush1.msra.mxu0 0.0
      %1528 = vmatprep.subr.mxu0 0.0
      %1529 = vmatpush1.msra.mxu0 0.0
      %1530 = vmatprep.subr.mxu0 0.0
      %1531 = vmatpush1.msra.mxu0 0.0
      %1532 = vmatprep.subr.mxu0 0.0
      %1533 = vmatpush1.msra.mxu0 0.0
      %1534 = vmatprep.subr.mxu0 0.0
      %1535 = vmatpush1.msra.mxu0 0.0
      %1536 = vmatprep.subr.mxu0 0.0
      %1537 = vmatpush1.msra.mxu0 0.0
      %1538 = vmatprep.subr.mxu0 0.0
      %1539 = vmatpush1.msra.mxu0 0.0
      %1540 = vmatprep.subr.mxu0 0.0
      %1541 = vmatpush1.msra.mxu0 0.0
      %1542 = vmatprep.subr.mxu0 0.0
      %1543 = vmatpush1.msra.mxu0 0.0
      %1544 = vmatprep.subr.mxu0 0.0
      %1545 = vmatpush1.msra.mxu0 0.0
      %1546 = vmatprep.subr.mxu0 0.0
      %1547 = vmatpush1.msra.mxu0 0.0
      %1548 = vmatprep.subr.mxu0 0.0
      %1549 = vmatpush1.msra.mxu0 0.0
      %1550 = vmatprep.subr.mxu0 0.0
      %1551 = vmatpush1.msra.mxu0 0.0
      %1552 = vmatprep.subr.mxu0 0.0
      %1553 = vmatpush1.msra.mxu0 0.0
      %1554 = vmatprep.mubr.f32.mxu0 0.0
      %1555 = vmatmul.mubr.f32.gmra.mrb[0].mxu0 %v481
      %v1556 = vpop.f32.mrb[0].mxu0
      %v1557 = vadd.f32 0.0, %v1556
      %v1558 = vpop.f32.mrb[0].mxu0
      %1559 = vdwg.mxu0
      %1561 = vrot.lane.b32.xlu0 %v1557, 1
      %v1562 = vpop.permute.xlu0 %1561
      %s1564 = scalar_lea.vmem [#allocation2], 32
      %1565 = vst.msk [vmem:[%s1564 + $0x1] sm:$0xf] %vm557, %v1562
      %1566 = vmatprep.subr.mxu0 0.0
      %1567 = vmatpush1.msra.mxu0 %v1179
      %1568 = vmatprep.subr.mxu0 0.0
      %1569 = vmatpush1.msra.mxu0 %v1184
      %1570 = vmatprep.subr.mxu0 0.0
      %1571 = vmatpush1.msra.mxu0 0.0
      %1572 = vmatprep.subr.mxu0 0.0
      %1573 = vmatpush1.msra.mxu0 0.0
      %1574 = vmatprep.subr.mxu0 0.0
      %1575 = vmatpush1.msra.mxu0 0.0
      %1576 = vmatprep.subr.mxu0 0.0
      %1577 = vmatpush1.msra.mxu0 0.0
      %1578 = vmatprep.subr.mxu0 0.0
      %1579 = vmatpush1.msra.mxu0 0.0
      %1580 = vmatprep.subr.mxu0 0.0
      %1581 = vmatpush1.msra.mxu0 0.0
      %1582 = vmatprep.subr.mxu0 0.0
      %1583 = vmatpush1.msra.mxu0 0.0
      %1584 = vmatprep.subr.mxu0 0.0
      %1585 = vmatpush1.msra.mxu0 0.0
      %1586 = vmatprep.subr.mxu0 0.0
      %1587 = vmatpush1.msra.mxu0 0.0
      %1588 = vmatprep.subr.mxu0 0.0
      %1589 = vmatpush1.msra.mxu0 0.0
      %1590 = vmatprep.subr.mxu0 0.0
      %1591 = vmatpush1.msra.mxu0 0.0
      %1592 = vmatprep.subr.mxu0 0.0
      %1593 = vmatpush1.msra.mxu0 0.0
      %1594 = vmatprep.subr.mxu0 0.0
      %1595 = vmatpush1.msra.mxu0 0.0
      %1596 = vmatprep.subr.mxu0 0.0
      %1597 = vmatpush1.msra.mxu0 0.0
      %1598 = vmatprep.subr.mxu0 0.0
      %1599 = vmatpush1.msra.mxu0 0.0
      %1600 = vmatprep.subr.mxu0 0.0
      %1601 = vmatpush1.msra.mxu0 0.0
      %1602 = vmatprep.subr.mxu0 0.0
      %1603 = vmatpush1.msra.mxu0 0.0
      %1604 = vmatprep.subr.mxu0 0.0
      %1605 = vmatpush1.msra.mxu0 0.0
      %1606 = vmatprep.subr.mxu0 0.0
      %1607 = vmatpush1.msra.mxu0 0.0
      %1608 = vmatprep.subr.mxu0 0.0
      %1609 = vmatpush1.msra.mxu0 0.0
      %1610 = vmatprep.subr.mxu0 0.0
      %1611 = vmatpush1.msra.mxu0 0.0
      %1612 = vmatprep.subr.mxu0 0.0
      %1613 = vmatpush1.msra.mxu0 0.0
      %1614 = vmatprep.subr.mxu0 0.0
      %1615 = vmatpush1.msra.mxu0 0.0
      %1616 = vmatprep.subr.mxu0 0.0
      %1617 = vmatpush1.msra.mxu0 0.0
      %1618 = vmatprep.subr.mxu0 0.0
      %1619 = vmatpush1.msra.mxu0 0.0
      %1620 = vmatprep.subr.mxu0 0.0
      %1621 = vmatpush1.msra.mxu0 0.0
      %1622 = vmatprep.subr.mxu0 0.0
      %1623 = vmatpush1.msra.mxu0 0.0
      %1624 = vmatprep.subr.mxu0 0.0
      %1625 = vmatpush1.msra.mxu0 0.0
      %1626 = vmatprep.subr.mxu0 0.0
      %1627 = vmatpush1.msra.mxu0 0.0
      %1628 = vmatprep.subr.mxu0 0.0
      %1629 = vmatpush1.msra.mxu0 0.0
      %1630 = vmatprep.mubr.f32.mxu0 0.0
      %1631 = vmatmul.mubr.f32.gmra.mrb[0].mxu0 %v481
      %v1632 = vpop.f32.mrb[0].mxu0
      %v1633 = vadd.f32 0.0, %v1632
      %v1634 = vpop.f32.mrb[0].mxu0
      %1635 = vdwg.mxu0
      %1637 = vrot.lane.b32.xlu0 %v1633, 1
      %v1638 = vpop.permute.xlu0 %1637
      %s1640 = scalar_lea.vmem [#allocation2], 40
      %1641 = vst.msk [vmem:[%s1640 + $0x1] sm:$0xf] %vm557, %v1638
      %v1642 = vld [vmem:[#allocation2] sm:$0xf]
      %v1643 = vld [vmem:[#allocation2 + $0x8] sm:$0xf]
      %v1644 = vld [vmem:[#allocation2 + $0x10] sm:$0xf]
      %v1645 = vld [vmem:[#allocation2 + $0x18] sm:$0xf]
      %v1646 = vld [vmem:[#allocation2 + $0x20] sm:$0xf]
      %v1647 = vld [vmem:[#allocation2 + $0x28] sm:$0xf]
      %1648 = vst.msk [vmem:[#allocation3] sm:$0xf] %vm560, %v1642
      %1649 = vst.msk [vmem:[#allocation3 + $0x4] sm:$0xf] %vm560, %v1643
      %1650 = vst.msk [vmem:[#allocation3 + $0x8] sm:$0xf] %vm560, %v1644
      %1651 = vst.msk [vmem:[#allocation3 + $0xc] sm:$0xf] %vm560, %v1645
      %1652 = vst.msk [vmem:[#allocation3 + $0x10] sm:$0xf] %vm560, %v1646
      %1653 = vst.msk [vmem:[#allocation3 + $0x14] sm:$0xf] %vm560, %v1647
      %v1654 = vld [vmem:[#allocation2] sm:$0xf]
      %v1655 = vld [vmem:[#allocation2 + $0x8] sm:$0xf]
      %v1656 = vld [vmem:[#allocation2 + $0x10] sm:$0xf]
      %v1657 = vld [vmem:[#allocation2 + $0x18] sm:$0xf]
      %v1658 = vld [vmem:[#allocation2 + $0x20] sm:$0xf]
      %v1659 = vld [vmem:[#allocation2 + $0x28] sm:$0xf]
      %1666 = vrot.lane.b32.xlu0 %v1654, 127
      %v1667 = vpop.permute.xlu0 %1666
      %1668 = vrot.lane.b32.xlu0 %v1655, 127
      %v1669 = vpop.permute.xlu0 %1668
      %1670 = vrot.lane.b32.xlu0 %v1656, 127
      %v1671 = vpop.permute.xlu0 %1670
      %1672 = vrot.lane.b32.xlu0 %v1657, 127
      %v1673 = vpop.permute.xlu0 %1672
      %1674 = vrot.lane.b32.xlu0 %v1658, 127
      %v1675 = vpop.permute.xlu0 %1674
      %1676 = vrot.lane.b32.xlu0 %v1659, 127
      %v1677 = vpop.permute.xlu0 %1676
      %1684 = vst.msk [vmem:[%s594] sm:$0xf] %vm560, %v1667
      %1685 = vst.msk [vmem:[%s594 + $0x4] sm:$0xf] %vm560, %v1669
      %1686 = vst.msk [vmem:[%s594 + $0x8] sm:$0xf] %vm560, %v1671
      %1687 = vst.msk [vmem:[%s594 + $0xc] sm:$0xf] %vm560, %v1673
      %1688 = vst.msk [vmem:[%s594 + $0x10] sm:$0xf] %vm560, %v1675
      %1689 = vst.msk [vmem:[%s594 + $0x14] sm:$0xf] %vm560, %v1677
      %v1690 = vld [vmem:[#allocation2] sm:$0xf]
      %v1691 = vld [vmem:[#allocation2 + $0x8] sm:$0xf]
      %v1692 = vld [vmem:[#allocation2 + $0x10] sm:$0xf]
      %v1693 = vld [vmem:[#allocation2 + $0x18] sm:$0xf]
      %v1694 = vld [vmem:[#allocation2 + $0x20] sm:$0xf]
      %v1695 = vld [vmem:[#allocation2 + $0x28] sm:$0xf]
      %1702 = vrot.lane.b32.xlu0 %v1690, 126
      %v1703 = vpop.permute.xlu0 %1702
      %1704 = vrot.lane.b32.xlu0 %v1691, 126
      %v1705 = vpop.permute.xlu0 %1704
      %1706 = vrot.lane.b32.xlu0 %v1692, 126
      %v1707 = vpop.permute.xlu0 %1706
      %1708 = vrot.lane.b32.xlu0 %v1693, 126
      %v1709 = vpop.permute.xlu0 %1708
      %1710 = vrot.lane.b32.xlu0 %v1694, 126
      %v1711 = vpop.permute.xlu0 %1710
      %1712 = vrot.lane.b32.xlu0 %v1695, 126
      %v1713 = vpop.permute.xlu0 %1712
      %s1720 = scalar_lea.vmem [#allocation3], 48
      %1721 = vst.msk [vmem:[%s1720] sm:$0xf] %vm560, %v1703
      %1722 = vst.msk [vmem:[%s1720 + $0x4] sm:$0xf] %vm560, %v1705
      %1723 = vst.msk [vmem:[%s1720 + $0x8] sm:$0xf] %vm560, %v1707
      %1724 = vst.msk [vmem:[%s1720 + $0xc] sm:$0xf] %vm560, %v1709
      %1725 = vst.msk [vmem:[%s1720 + $0x10] sm:$0xf] %vm560, %v1711
      %1726 = vst.msk [vmem:[%s1720 + $0x14] sm:$0xf] %vm560, %v1713
      %v1727 = vld [vmem:[#allocation2 + $0x1] sm:$0xf]
      %v1728 = vld [vmem:[#allocation2 + $0x9] sm:$0xf]
      %v1729 = vld [vmem:[#allocation2 + $0x11] sm:$0xf]
      %v1730 = vld [vmem:[#allocation2 + $0x19] sm:$0xf]
      %v1731 = vld [vmem:[#allocation2 + $0x21] sm:$0xf]
      %v1732 = vld [vmem:[#allocation2 + $0x29] sm:$0xf]
      %s1733 = scalar_lea.vmem [#allocation3], 72
      %1734 = vst.msk [vmem:[%s1733] sm:$0xf] %vm560, %v1727
      %1735 = vst.msk [vmem:[%s1733 + $0x4] sm:$0xf] %vm560, %v1728
      %1736 = vst.msk [vmem:[%s1733 + $0x8] sm:$0xf] %vm560, %v1729
      %1737 = vst.msk [vmem:[%s1733 + $0xc] sm:$0xf] %vm560, %v1730
      %1738 = vst.msk [vmem:[%s1733 + $0x10] sm:$0xf] %vm560, %v1731
      %1739 = vst.msk [vmem:[%s1733 + $0x14] sm:$0xf] %vm560, %v1732
      %v1740 = vld [vmem:[#allocation2 + $0x1] sm:$0xf]
      %v1741 = vld [vmem:[#allocation2 + $0x9] sm:$0xf]
      %v1742 = vld [vmem:[#allocation2 + $0x11] sm:$0xf]
      %v1743 = vld [vmem:[#allocation2 + $0x19] sm:$0xf]
      %v1744 = vld [vmem:[#allocation2 + $0x21] sm:$0xf]
      %v1745 = vld [vmem:[#allocation2 + $0x29] sm:$0xf]
      %1752 = vrot.lane.b32.xlu0 %v1740, 127
      %v1753 = vpop.permute.xlu0 %1752
      %1754 = vrot.lane.b32.xlu0 %v1741, 127
      %v1755 = vpop.permute.xlu0 %1754
      %1756 = vrot.lane.b32.xlu0 %v1742, 127
      %v1757 = vpop.permute.xlu0 %1756
      %1758 = vrot.lane.b32.xlu0 %v1743, 127
      %v1759 = vpop.permute.xlu0 %1758
      %1760 = vrot.lane.b32.xlu0 %v1744, 127
      %v1761 = vpop.permute.xlu0 %1760
      %1762 = vrot.lane.b32.xlu0 %v1745, 127
      %v1763 = vpop.permute.xlu0 %1762
      %s1770 = scalar_lea.vmem [#allocation3], 96
      %1771 = vst.msk [vmem:[%s1770] sm:$0xf] %vm560, %v1753
      %1772 = vst.msk [vmem:[%s1770 + $0x4] sm:$0xf] %vm560, %v1755
      %1773 = vst.msk [vmem:[%s1770 + $0x8] sm:$0xf] %vm560, %v1757
      %1774 = vst.msk [vmem:[%s1770 + $0xc] sm:$0xf] %vm560, %v1759
      %1775 = vst.msk [vmem:[%s1770 + $0x10] sm:$0xf] %vm560, %v1761
      %1776 = vst.msk [vmem:[%s1770 + $0x14] sm:$0xf] %vm560, %v1763
      %v1777 = vld [vmem:[#allocation2 + $0x1] sm:$0xf]
      %v1778 = vld [vmem:[#allocation2 + $0x9] sm:$0xf]
      %v1779 = vld [vmem:[#allocation2 + $0x11] sm:$0xf]
      %v1780 = vld [vmem:[#allocation2 + $0x19] sm:$0xf]
      %v1781 = vld [vmem:[#allocation2 + $0x21] sm:$0xf]
      %v1782 = vld [vmem:[#allocation2 + $0x29] sm:$0xf]
      %1789 = vrot.lane.b32.xlu0 %v1777, 126
      %v1790 = vpop.permute.xlu0 %1789
      %1791 = vrot.lane.b32.xlu0 %v1778, 126
      %v1792 = vpop.permute.xlu0 %1791
      %1793 = vrot.lane.b32.xlu0 %v1779, 126
      %v1794 = vpop.permute.xlu0 %1793
      %1795 = vrot.lane.b32.xlu0 %v1780, 126
      %v1796 = vpop.permute.xlu0 %1795
      %1797 = vrot.lane.b32.xlu0 %v1781, 126
      %v1798 = vpop.permute.xlu0 %1797
      %1799 = vrot.lane.b32.xlu0 %v1782, 126
      %v1800 = vpop.permute.xlu0 %1799
      %s1807 = scalar_lea.vmem [#allocation3], 120
      %1808 = vst.msk [vmem:[%s1807] sm:$0xf] %vm560, %v1790
      %1809 = vst.msk [vmem:[%s1807 + $0x4] sm:$0xf] %vm560, %v1792
      %1810 = vst.msk [vmem:[%s1807 + $0x8] sm:$0xf] %vm560, %v1794
      %1811 = vst.msk [vmem:[%s1807 + $0xc] sm:$0xf] %vm560, %v1796
      %1812 = vst.msk [vmem:[%s1807 + $0x10] sm:$0xf] %vm560, %v1798
      %1813 = vst.msk [vmem:[%s1807 + $0x14] sm:$0xf] %vm560, %v1800
      %v1814 = vld [vmem:[#allocation2 + $0x2] sm:$0xf]
      %v1815 = vld [vmem:[#allocation2 + $0xa] sm:$0xf]
      %v1816 = vld [vmem:[#allocation2 + $0x12] sm:$0xf]
      %v1817 = vld [vmem:[#allocation2 + $0x1a] sm:$0xf]
      %v1818 = vld [vmem:[#allocation2 + $0x22] sm:$0xf]
      %v1819 = vld [vmem:[#allocation2 + $0x2a] sm:$0xf]
      %s1820 = scalar_lea.vmem [#allocation3], 144
      %1821 = vst.msk [vmem:[%s1820] sm:$0xf] %vm560, %v1814
      %1822 = vst.msk [vmem:[%s1820 + $0x4] sm:$0xf] %vm560, %v1815
      %1823 = vst.msk [vmem:[%s1820 + $0x8] sm:$0xf] %vm560, %v1816
      %1824 = vst.msk [vmem:[%s1820 + $0xc] sm:$0xf] %vm560, %v1817
      %1825 = vst.msk [vmem:[%s1820 + $0x10] sm:$0xf] %vm560, %v1818
      %1826 = vst.msk [vmem:[%s1820 + $0x14] sm:$0xf] %vm560, %v1819
      %v1827 = vld [vmem:[#allocation2 + $0x2] sm:$0xf]
      %v1828 = vld [vmem:[#allocation2 + $0xa] sm:$0xf]
      %v1829 = vld [vmem:[#allocation2 + $0x12] sm:$0xf]
      %v1830 = vld [vmem:[#allocation2 + $0x1a] sm:$0xf]
      %v1831 = vld [vmem:[#allocation2 + $0x22] sm:$0xf]
      %v1832 = vld [vmem:[#allocation2 + $0x2a] sm:$0xf]
      %1839 = vrot.lane.b32.xlu0 %v1827, 127
      %v1840 = vpop.permute.xlu0 %1839
      %1841 = vrot.lane.b32.xlu0 %v1828, 127
      %v1842 = vpop.permute.xlu0 %1841
      %1843 = vrot.lane.b32.xlu0 %v1829, 127
      %v1844 = vpop.permute.xlu0 %1843
      %1845 = vrot.lane.b32.xlu0 %v1830, 127
      %v1846 = vpop.permute.xlu0 %1845
      %1847 = vrot.lane.b32.xlu0 %v1831, 127
      %v1848 = vpop.permute.xlu0 %1847
      %1849 = vrot.lane.b32.xlu0 %v1832, 127
      %v1850 = vpop.permute.xlu0 %1849
      %s1857 = scalar_lea.vmem [#allocation3], 168
      %1858 = vst.msk [vmem:[%s1857] sm:$0xf] %vm560, %v1840
      %1859 = vst.msk [vmem:[%s1857 + $0x4] sm:$0xf] %vm560, %v1842
      %1860 = vst.msk [vmem:[%s1857 + $0x8] sm:$0xf] %vm560, %v1844
      %1861 = vst.msk [vmem:[%s1857 + $0xc] sm:$0xf] %vm560, %v1846
      %1862 = vst.msk [vmem:[%s1857 + $0x10] sm:$0xf] %vm560, %v1848
      %1863 = vst.msk [vmem:[%s1857 + $0x14] sm:$0xf] %vm560, %v1850
      %v1864 = vld [vmem:[#allocation2 + $0x2] sm:$0xf]
      %v1865 = vld [vmem:[#allocation2 + $0xa] sm:$0xf]
      %v1866 = vld [vmem:[#allocation2 + $0x12] sm:$0xf]
      %v1867 = vld [vmem:[#allocation2 + $0x1a] sm:$0xf]
      %v1868 = vld [vmem:[#allocation2 + $0x22] sm:$0xf]
      %v1869 = vld [vmem:[#allocation2 + $0x2a] sm:$0xf]
      %1876 = vrot.lane.b32.xlu0 %v1864, 126
      %v1877 = vpop.permute.xlu0 %1876
      %1878 = vrot.lane.b32.xlu0 %v1865, 126
      %v1879 = vpop.permute.xlu0 %1878
      %1880 = vrot.lane.b32.xlu0 %v1866, 126
      %v1881 = vpop.permute.xlu0 %1880
      %1882 = vrot.lane.b32.xlu0 %v1867, 126
      %v1883 = vpop.permute.xlu0 %1882
      %1884 = vrot.lane.b32.xlu0 %v1868, 126
      %v1885 = vpop.permute.xlu0 %1884
      %1886 = vrot.lane.b32.xlu0 %v1869, 126
      %v1887 = vpop.permute.xlu0 %1886
      %s1894 = scalar_lea.vmem [#allocation3], 192
      %1895 = vst.msk [vmem:[%s1894] sm:$0xf] %vm560, %v1877
      %1896 = vst.msk [vmem:[%s1894 + $0x4] sm:$0xf] %vm560, %v1879
      %1897 = vst.msk [vmem:[%s1894 + $0x8] sm:$0xf] %vm560, %v1881
      %1898 = vst.msk [vmem:[%s1894 + $0xc] sm:$0xf] %vm560, %v1883
      %1899 = vst.msk [vmem:[%s1894 + $0x10] sm:$0xf] %vm560, %v1885
      %1900 = vst.msk [vmem:[%s1894 + $0x14] sm:$0xf] %vm560, %v1887
      %v1901 = vld [vmem:[#allocation3] sm:$0x1]
      %v1902 = vld [vmem:[#allocation3 + $0x4] sm:$0x1]
      %v1903 = vld [vmem:[#allocation3 + $0x8] sm:$0x1]
      %v1904 = vld [vmem:[#allocation3 + $0xc] sm:$0x1]
      %v1905 = vld [vmem:[#allocation3 + $0x10] sm:$0x1]
      %v1906 = vld [vmem:[#allocation3 + $0x14] sm:$0x1]
      %v1907 = vld [vmem:[#allocation3 + $0x18] sm:$0x1]
      %v1908 = vld [vmem:[#allocation3 + $0x1c] sm:$0x1]
      %v1909 = vld [vmem:[#allocation3 + $0x20] sm:$0x1]
      %v1910 = vld [vmem:[#allocation3 + $0x24] sm:$0x1]
      %v1911 = vld [vmem:[#allocation3 + $0x28] sm:$0x1]
      %v1912 = vld [vmem:[#allocation3 + $0x2c] sm:$0x1]
      %v1913 = vld [vmem:[#allocation3 + $0x30] sm:$0x1]
      %v1914 = vld [vmem:[#allocation3 + $0x34] sm:$0x1]
      %v1915 = vld [vmem:[#allocation3 + $0x38] sm:$0x1]
      %v1916 = vld [vmem:[#allocation3 + $0x3c] sm:$0x1]
      %v1917 = vld [vmem:[#allocation3 + $0x40] sm:$0x1]
      %v1918 = vld [vmem:[#allocation3 + $0x44] sm:$0x1]
      %v1919 = vld [vmem:[#allocation3 + $0x48] sm:$0x1]
      %v1920 = vld [vmem:[#allocation3 + $0x4c] sm:$0x1]
      %v1921 = vld [vmem:[#allocation3 + $0x50] sm:$0x1]
      %v1922 = vld [vmem:[#allocation3 + $0x54] sm:$0x1]
      %v1923 = vld [vmem:[#allocation3 + $0x58] sm:$0x1]
      %v1924 = vld [vmem:[#allocation3 + $0x5c] sm:$0x1]
      %v1925 = vld [vmem:[#allocation3 + $0x60] sm:$0x1]
      %v1926 = vld [vmem:[#allocation3 + $0x64] sm:$0x1]
      %v1927 = vld [vmem:[#allocation3 + $0x68] sm:$0x1]
      %v1928 = vld [vmem:[#allocation3 + $0x6c] sm:$0x1]
      %v1929 = vld [vmem:[#allocation3 + $0x70] sm:$0x1]
      %v1930 = vld [vmem:[#allocation3 + $0x74] sm:$0x1]
      %v1931 = vld [vmem:[#allocation3 + $0x78] sm:$0x1]
      %v1932 = vld [vmem:[#allocation3 + $0x7c] sm:$0x1]
      %v1933 = vld [vmem:[#allocation3 + $0x80] sm:$0x1]
      %v1934 = vld [vmem:[#allocation3 + $0x84] sm:$0x1]
      %v1935 = vld [vmem:[#allocation3 + $0x88] sm:$0x1]
      %v1936 = vld [vmem:[#allocation3 + $0x8c] sm:$0x1]
      %v1937 = vld [vmem:[#allocation3 + $0x90] sm:$0x1]
      %v1938 = vld [vmem:[#allocation3 + $0x94] sm:$0x1]
      %v1939 = vld [vmem:[#allocation3 + $0x98] sm:$0x1]
      %v1940 = vld [vmem:[#allocation3 + $0x9c] sm:$0x1]
      %v1941 = vld [vmem:[#allocation3 + $0xa0] sm:$0x1]
      %v1942 = vld [vmem:[#allocation3 + $0xa4] sm:$0x1]
      %v1943 = vld [vmem:[#allocation3 + $0xa8] sm:$0x1]
      %v1944 = vld [vmem:[#allocation3 + $0xac] sm:$0x1]
      %v1945 = vld [vmem:[#allocation3 + $0xb0] sm:$0x1]
      %v1946 = vld [vmem:[#allocation3 + $0xb4] sm:$0x1]
      %v1947 = vld [vmem:[#allocation3 + $0xb8] sm:$0x1]
      %v1948 = vld [vmem:[#allocation3 + $0xbc] sm:$0x1]
      %v1949 = vld [vmem:[#allocation3 + $0xc0] sm:$0x1]
      %v1950 = vld [vmem:[#allocation3 + $0xc4] sm:$0x1]
      %v1951 = vld [vmem:[#allocation3 + $0xc8] sm:$0x1]
      %v1952 = vld [vmem:[#allocation3 + $0xcc] sm:$0x1]
      %v1953 = vld [vmem:[#allocation3 + $0xd0] sm:$0x1]
      %v1954 = vld [vmem:[#allocation3 + $0xd4] sm:$0x1]
      %v2009 = vrot.slane %v1902, 7
      %v2010 = vsel %vm629, %v2009, %v1901
      %v2011 = vrot.slane %v1903, 6
      %v2012 = vsel %vm632, %v2011, %v2010
      %v2013 = vrot.slane %v1904, 5
      %v2014 = vsel %vm635, %v2013, %v2012
      %v2015 = vrot.slane %v1905, 4
      %v2016 = vsel %vm638, %v2015, %v2014
      %v2017 = vrot.slane %v1906, 3
      %v2018 = vsel %vm641, %v2017, %v2016
      %v2019 = vrot.slane %v1907, 2
      %v2020 = vsel %vm644, %v2019, %v2018
      %v2021 = vrot.slane %v1908, 1
      %v2022 = vsel %vm647, %v2021, %v2020
      %v2023 = vrot.slane %v1910, 7
      %v2024 = vsel %vm629, %v2023, %v1909
      %v2025 = vrot.slane %v1911, 6
      %v2026 = vsel %vm632, %v2025, %v2024
      %v2027 = vrot.slane %v1912, 5
      %v2028 = vsel %vm635, %v2027, %v2026
      %v2029 = vrot.slane %v1913, 4
      %v2030 = vsel %vm638, %v2029, %v2028
      %v2031 = vrot.slane %v1914, 3
      %v2032 = vsel %vm641, %v2031, %v2030
      %v2033 = vrot.slane %v1915, 2
      %v2034 = vsel %vm644, %v2033, %v2032
      %v2035 = vrot.slane %v1916, 1
      %v2036 = vsel %vm647, %v2035, %v2034
      %v2037 = vrot.slane %v1918, 7
      %v2038 = vsel %vm629, %v2037, %v1917
      %v2039 = vrot.slane %v1919, 6
      %v2040 = vsel %vm632, %v2039, %v2038
      %v2041 = vrot.slane %v1920, 5
      %v2042 = vsel %vm635, %v2041, %v2040
      %v2043 = vrot.slane %v1921, 4
      %v2044 = vsel %vm638, %v2043, %v2042
      %v2045 = vrot.slane %v1922, 3
      %v2046 = vsel %vm641, %v2045, %v2044
      %v2047 = vrot.slane %v1923, 2
      %v2048 = vsel %vm644, %v2047, %v2046
      %v2049 = vrot.slane %v1924, 1
      %v2050 = vsel %vm647, %v2049, %v2048
      %v2051 = vrot.slane %v1926, 7
      %v2052 = vsel %vm629, %v2051, %v1925
      %v2053 = vrot.slane %v1927, 6
      %v2054 = vsel %vm632, %v2053, %v2052
      %v2055 = vrot.slane %v1928, 5
      %v2056 = vsel %vm635, %v2055, %v2054
      %v2057 = vrot.slane %v1929, 4
      %v2058 = vsel %vm638, %v2057, %v2056
      %v2059 = vrot.slane %v1930, 3
      %v2060 = vsel %vm641, %v2059, %v2058
      %v2061 = vrot.slane %v1931, 2
      %v2062 = vsel %vm644, %v2061, %v2060
      %v2063 = vrot.slane %v1932, 1
      %v2064 = vsel %vm647, %v2063, %v2062
      %v2065 = vrot.slane %v1934, 7
      %v2066 = vsel %vm629, %v2065, %v1933
      %v2067 = vrot.slane %v1935, 6
      %v2068 = vsel %vm632, %v2067, %v2066
      %v2069 = vrot.slane %v1936, 5
      %v2070 = vsel %vm635, %v2069, %v2068
      %v2071 = vrot.slane %v1937, 4
      %v2072 = vsel %vm638, %v2071, %v2070
      %v2073 = vrot.slane %v1938, 3
      %v2074 = vsel %vm641, %v2073, %v2072
      %v2075 = vrot.slane %v1939, 2
      %v2076 = vsel %vm644, %v2075, %v2074
      %v2077 = vrot.slane %v1940, 1
      %v2078 = vsel %vm647, %v2077, %v2076
      %v2079 = vrot.slane %v1942, 7
      %v2080 = vsel %vm629, %v2079, %v1941
      %v2081 = vrot.slane %v1943, 6
      %v2082 = vsel %vm632, %v2081, %v2080
      %v2083 = vrot.slane %v1944, 5
      %v2084 = vsel %vm635, %v2083, %v2082
      %v2085 = vrot.slane %v1945, 4
      %v2086 = vsel %vm638, %v2085, %v2084
      %v2087 = vrot.slane %v1946, 3
      %v2088 = vsel %vm641, %v2087, %v2086
      %v2089 = vrot.slane %v1947, 2
      %v2090 = vsel %vm644, %v2089, %v2088
      %v2091 = vrot.slane %v1948, 1
      %v2092 = vsel %vm647, %v2091, %v2090
      %v2093 = vrot.slane %v1950, 7
      %v2094 = vsel %vm629, %v2093, %v1949
      %v2095 = vrot.slane %v1951, 6
      %v2096 = vsel %vm632, %v2095, %v2094
      %v2097 = vrot.slane %v1952, 5
      %v2098 = vsel %vm635, %v2097, %v2096
      %v2099 = vrot.slane %v1953, 4
      %v2100 = vsel %vm638, %v2099, %v2098
      %v2101 = vrot.slane %v1954, 3
      %v2102 = vsel %vm641, %v2101, %v2100
      %2110 = vst.msk [vmem:[#allocation4] sm:$0xff] %vm651, %v2022
      %2111 = vst.msk [vmem:[#allocation4 + $0x8] sm:$0xff] %vm651, %v2036
      %2112 = vst.msk [vmem:[#allocation4 + $0x10] sm:$0xff] %vm651, %v2050
      %2113 = vst.msk [vmem:[#allocation4 + $0x18] sm:$0xff] %vm651, %v2064
      %2114 = vst.msk [vmem:[#allocation4 + $0x20] sm:$0xff] %vm651, %v2078
      %2115 = vst.msk [vmem:[#allocation4 + $0x28] sm:$0xff] %vm651, %v2092
      %vm2116 = vcmask 29696
      %2117 = vst.msk [vmem:[#allocation4 + $0x30] sm:$0x3f] %vm2116, %v2102
      %v2118 = vld [vmem:[#allocation3 + $0x1] sm:$0x1]
      %v2119 = vld [vmem:[#allocation3 + $0x5] sm:$0x1]
      %v2120 = vld [vmem:[#allocation3 + $0x9] sm:$0x1]
      %v2121 = vld [vmem:[#allocation3 + $0xd] sm:$0x1]
      %v2122 = vld [vmem:[#allocation3 + $0x11] sm:$0x1]
      %v2123 = vld [vmem:[#allocation3 + $0x15] sm:$0x1]
      %v2124 = vld [vmem:[#allocation3 + $0x19] sm:$0x1]
      %v2125 = vld [vmem:[#allocation3 + $0x1d] sm:$0x1]
      %v2126 = vld [vmem:[#allocation3 + $0x21] sm:$0x1]
      %v2127 = vld [vmem:[#allocation3 + $0x25] sm:$0x1]
      %v2128 = vld [vmem:[#allocation3 + $0x29] sm:$0x1]
      %v2129 = vld [vmem:[#allocation3 + $0x2d] sm:$0x1]
      %v2130 = vld [vmem:[#allocation3 + $0x31] sm:$0x1]
      %v2131 = vld [vmem:[#allocation3 + $0x35] sm:$0x1]
      %v2132 = vld [vmem:[#allocation3 + $0x39] sm:$0x1]
      %v2133 = vld [vmem:[#allocation3 + $0x3d] sm:$0x1]
      %v2134 = vld [vmem:[#allocation3 + $0x41] sm:$0x1]
      %v2135 = vld [vmem:[#allocation3 + $0x45] sm:$0x1]
      %v2136 = vld [vmem:[#allocation3 + $0x49] sm:$0x1]
      %v2137 = vld [vmem:[#allocation3 + $0x4d] sm:$0x1]
      %v2138 = vld [vmem:[#allocation3 + $0x51] sm:$0x1]
      %v2139 = vld [vmem:[#allocation3 + $0x55] sm:$0x1]
      %v2140 = vld [vmem:[#allocation3 + $0x59] sm:$0x1]
      %v2141 = vld [vmem:[#allocation3 + $0x5d] sm:$0x1]
      %v2142 = vld [vmem:[#allocation3 + $0x61] sm:$0x1]
      %v2143 = vld [vmem:[#allocation3 + $0x65] sm:$0x1]
      %v2144 = vld [vmem:[#allocation3 + $0x69] sm:$0x1]
      %v2145 = vld [vmem:[#allocation3 + $0x6d] sm:$0x1]
      %v2146 = vld [vmem:[#allocation3 + $0x71] sm:$0x1]
      %v2147 = vld [vmem:[#allocation3 + $0x75] sm:$0x1]
      %v2148 = vld [vmem:[#allocation3 + $0x79] sm:$0x1]
      %v2149 = vld [vmem:[#allocation3 + $0x7d] sm:$0x1]
      %v2150 = vld [vmem:[#allocation3 + $0x81] sm:$0x1]
      %v2151 = vld [vmem:[#allocation3 + $0x85] sm:$0x1]
      %v2152 = vld [vmem:[#allocation3 + $0x89] sm:$0x1]
      %v2153 = vld [vmem:[#allocation3 + $0x8d] sm:$0x1]
      %v2154 = vld [vmem:[#allocation3 + $0x91] sm:$0x1]
      %v2155 = vld [vmem:[#allocation3 + $0x95] sm:$0x1]
      %v2156 = vld [vmem:[#allocation3 + $0x99] sm:$0x1]
      %v2157 = vld [vmem:[#allocation3 + $0x9d] sm:$0x1]
      %v2158 = vld [vmem:[#allocation3 + $0xa1] sm:$0x1]
      %v2159 = vld [vmem:[#allocation3 + $0xa5] sm:$0x1]
      %v2160 = vld [vmem:[#allocation3 + $0xa9] sm:$0x1]
      %v2161 = vld [vmem:[#allocation3 + $0xad] sm:$0x1]
      %v2162 = vld [vmem:[#allocation3 + $0xb1] sm:$0x1]
      %v2163 = vld [vmem:[#allocation3 + $0xb5] sm:$0x1]
      %v2164 = vld [vmem:[#allocation3 + $0xb9] sm:$0x1]
      %v2165 = vld [vmem:[#allocation3 + $0xbd] sm:$0x1]
      %v2166 = vld [vmem:[#allocation3 + $0xc1] sm:$0x1]
      %v2167 = vld [vmem:[#allocation3 + $0xc5] sm:$0x1]
      %v2168 = vld [vmem:[#allocation3 + $0xc9] sm:$0x1]
      %v2169 = vld [vmem:[#allocation3 + $0xcd] sm:$0x1]
      %v2170 = vld [vmem:[#allocation3 + $0xd1] sm:$0x1]
      %v2171 = vld [vmem:[#allocation3 + $0xd5] sm:$0x1]
      %v2226 = vrot.slane %v2119, 7
      %v2227 = vsel %vm629, %v2226, %v2118
      %v2228 = vrot.slane %v2120, 6
      %v2229 = vsel %vm632, %v2228, %v2227
      %v2230 = vrot.slane %v2121, 5
      %v2231 = vsel %vm635, %v2230, %v2229
      %v2232 = vrot.slane %v2122, 4
      %v2233 = vsel %vm638, %v2232, %v2231
      %v2234 = vrot.slane %v2123, 3
      %v2235 = vsel %vm641, %v2234, %v2233
      %v2236 = vrot.slane %v2124, 2
      %v2237 = vsel %vm644, %v2236, %v2235
      %v2238 = vrot.slane %v2125, 1
      %v2239 = vsel %vm647, %v2238, %v2237
      %v2240 = vrot.slane %v2127, 7
      %v2241 = vsel %vm629, %v2240, %v2126
      %v2242 = vrot.slane %v2128, 6
      %v2243 = vsel %vm632, %v2242, %v2241
      %v2244 = vrot.slane %v2129, 5
      %v2245 = vsel %vm635, %v2244, %v2243
      %v2246 = vrot.slane %v2130, 4
      %v2247 = vsel %vm638, %v2246, %v2245
      %v2248 = vrot.slane %v2131, 3
      %v2249 = vsel %vm641, %v2248, %v2247
      %v2250 = vrot.slane %v2132, 2
      %v2251 = vsel %vm644, %v2250, %v2249
      %v2252 = vrot.slane %v2133, 1
      %v2253 = vsel %vm647, %v2252, %v2251
      %v2254 = vrot.slane %v2135, 7
      %v2255 = vsel %vm629, %v2254, %v2134
      %v2256 = vrot.slane %v2136, 6
      %v2257 = vsel %vm632, %v2256, %v2255
      %v2258 = vrot.slane %v2137, 5
      %v2259 = vsel %vm635, %v2258, %v2257
      %v2260 = vrot.slane %v2138, 4
      %v2261 = vsel %vm638, %v2260, %v2259
      %v2262 = vrot.slane %v2139, 3
      %v2263 = vsel %vm641, %v2262, %v2261
      %v2264 = vrot.slane %v2140, 2
      %v2265 = vsel %vm644, %v2264, %v2263
      %v2266 = vrot.slane %v2141, 1
      %v2267 = vsel %vm647, %v2266, %v2265
      %v2268 = vrot.slane %v2143, 7
      %v2269 = vsel %vm629, %v2268, %v2142
      %v2270 = vrot.slane %v2144, 6
      %v2271 = vsel %vm632, %v2270, %v2269
      %v2272 = vrot.slane %v2145, 5
      %v2273 = vsel %vm635, %v2272, %v2271
      %v2274 = vrot.slane %v2146, 4
      %v2275 = vsel %vm638, %v2274, %v2273
      %v2276 = vrot.slane %v2147, 3
      %v2277 = vsel %vm641, %v2276, %v2275
      %v2278 = vrot.slane %v2148, 2
      %v2279 = vsel %vm644, %v2278, %v2277
      %v2280 = vrot.slane %v2149, 1
      %v2281 = vsel %vm647, %v2280, %v2279
      %v2282 = vrot.slane %v2151, 7
      %v2283 = vsel %vm629, %v2282, %v2150
      %v2284 = vrot.slane %v2152, 6
      %v2285 = vsel %vm632, %v2284, %v2283
      %v2286 = vrot.slane %v2153, 5
      %v2287 = vsel %vm635, %v2286, %v2285
      %v2288 = vrot.slane %v2154, 4
      %v2289 = vsel %vm638, %v2288, %v2287
      %v2290 = vrot.slane %v2155, 3
      %v2291 = vsel %vm641, %v2290, %v2289
      %v2292 = vrot.slane %v2156, 2
      %v2293 = vsel %vm644, %v2292, %v2291
      %v2294 = vrot.slane %v2157, 1
      %v2295 = vsel %vm647, %v2294, %v2293
      %v2296 = vrot.slane %v2159, 7
      %v2297 = vsel %vm629, %v2296, %v2158
      %v2298 = vrot.slane %v2160, 6
      %v2299 = vsel %vm632, %v2298, %v2297
      %v2300 = vrot.slane %v2161, 5
      %v2301 = vsel %vm635, %v2300, %v2299
      %v2302 = vrot.slane %v2162, 4
      %v2303 = vsel %vm638, %v2302, %v2301
      %v2304 = vrot.slane %v2163, 3
      %v2305 = vsel %vm641, %v2304, %v2303
      %v2306 = vrot.slane %v2164, 2
      %v2307 = vsel %vm644, %v2306, %v2305
      %v2308 = vrot.slane %v2165, 1
      %v2309 = vsel %vm647, %v2308, %v2307
      %v2310 = vrot.slane %v2167, 7
      %v2311 = vsel %vm629, %v2310, %v2166
      %v2312 = vrot.slane %v2168, 6
      %v2313 = vsel %vm632, %v2312, %v2311
      %v2314 = vrot.slane %v2169, 5
      %v2315 = vsel %vm635, %v2314, %v2313
      %v2316 = vrot.slane %v2170, 4
      %v2317 = vsel %vm638, %v2316, %v2315
      %v2318 = vrot.slane %v2171, 3
      %v2319 = vsel %vm641, %v2318, %v2317
      %2320 = vrot.lane.b32.xlu0 %v2239, 4
      %v2321 = vpop.permute.xlu0 %2320
      %2322 = vrot.lane.b32.xlu0 %v2253, 4
      %v2323 = vpop.permute.xlu0 %2322
      %2324 = vrot.lane.b32.xlu0 %v2267, 4
      %v2325 = vpop.permute.xlu0 %2324
      %2326 = vrot.lane.b32.xlu0 %v2281, 4
      %v2327 = vpop.permute.xlu0 %2326
      %2328 = vrot.lane.b32.xlu0 %v2295, 4
      %v2329 = vpop.permute.xlu0 %2328
      %2330 = vrot.lane.b32.xlu0 %v2309, 4
      %v2331 = vpop.permute.xlu0 %2330
      %2332 = vrot.lane.b32.xlu0 %v2319, 4
      %v2333 = vpop.permute.xlu0 %2332
      %2341 = vst.msk [vmem:[#allocation4] sm:$0xff] %vm693, %v2321
      %2342 = vst.msk [vmem:[#allocation4 + $0x8] sm:$0xff] %vm693, %v2323
      %2343 = vst.msk [vmem:[#allocation4 + $0x10] sm:$0xff] %vm693, %v2325
      %2344 = vst.msk [vmem:[#allocation4 + $0x18] sm:$0xff] %vm693, %v2327
      %2345 = vst.msk [vmem:[#allocation4 + $0x20] sm:$0xff] %vm693, %v2329
      %2346 = vst.msk [vmem:[#allocation4 + $0x28] sm:$0xff] %vm693, %v2331
      %vm2347 = vcmask 62496
      %2348 = vst.msk [vmem:[#allocation4 + $0x30] sm:$0x3f] %vm2347, %v2333
      %v2349 = vld [vmem:[#allocation3 + $0x2] sm:$0x1]
      %v2350 = vld [vmem:[#allocation3 + $0x6] sm:$0x1]
      %v2351 = vld [vmem:[#allocation3 + $0xa] sm:$0x1]
      %v2352 = vld [vmem:[#allocation3 + $0xe] sm:$0x1]
      %v2353 = vld [vmem:[#allocation3 + $0x12] sm:$0x1]
      %v2354 = vld [vmem:[#allocation3 + $0x16] sm:$0x1]
      %v2355 = vld [vmem:[#allocation3 + $0x1a] sm:$0x1]
      %v2356 = vld [vmem:[#allocation3 + $0x1e] sm:$0x1]
      %v2357 = vld [vmem:[#allocation3 + $0x22] sm:$0x1]
      %v2358 = vld [vmem:[#allocation3 + $0x26] sm:$0x1]
      %v2359 = vld [vmem:[#allocation3 + $0x2a] sm:$0x1]
      %v2360 = vld [vmem:[#allocation3 + $0x2e] sm:$0x1]
      %v2361 = vld [vmem:[#allocation3 + $0x32] sm:$0x1]
      %v2362 = vld [vmem:[#allocation3 + $0x36] sm:$0x1]
      %v2363 = vld [vmem:[#allocation3 + $0x3a] sm:$0x1]
      %v2364 = vld [vmem:[#allocation3 + $0x3e] sm:$0x1]
      %v2365 = vld [vmem:[#allocation3 + $0x42] sm:$0x1]
      %v2366 = vld [vmem:[#allocation3 + $0x46] sm:$0x1]
      %v2367 = vld [vmem:[#allocation3 + $0x4a] sm:$0x1]
      %v2368 = vld [vmem:[#allocation3 + $0x4e] sm:$0x1]
      %v2369 = vld [vmem:[#allocation3 + $0x52] sm:$0x1]
      %v2370 = vld [vmem:[#allocation3 + $0x56] sm:$0x1]
      %v2371 = vld [vmem:[#allocation3 + $0x5a] sm:$0x1]
      %v2372 = vld [vmem:[#allocation3 + $0x5e] sm:$0x1]
      %v2373 = vld [vmem:[#allocation3 + $0x62] sm:$0x1]
      %v2374 = vld [vmem:[#allocation3 + $0x66] sm:$0x1]
      %v2375 = vld [vmem:[#allocation3 + $0x6a] sm:$0x1]
      %v2376 = vld [vmem:[#allocation3 + $0x6e] sm:$0x1]
      %v2377 = vld [vmem:[#allocation3 + $0x72] sm:$0x1]
      %v2378 = vld [vmem:[#allocation3 + $0x76] sm:$0x1]
      %v2379 = vld [vmem:[#allocation3 + $0x7a] sm:$0x1]
      %v2380 = vld [vmem:[#allocation3 + $0x7e] sm:$0x1]
      %v2381 = vld [vmem:[#allocation3 + $0x82] sm:$0x1]
      %v2382 = vld [vmem:[#allocation3 + $0x86] sm:$0x1]
      %v2383 = vld [vmem:[#allocation3 + $0x8a] sm:$0x1]
      %v2384 = vld [vmem:[#allocation3 + $0x8e] sm:$0x1]
      %v2385 = vld [vmem:[#allocation3 + $0x92] sm:$0x1]
      %v2386 = vld [vmem:[#allocation3 + $0x96] sm:$0x1]
      %v2387 = vld [vmem:[#allocation3 + $0x9a] sm:$0x1]
      %v2388 = vld [vmem:[#allocation3 + $0x9e] sm:$0x1]
      %v2389 = vld [vmem:[#allocation3 + $0xa2] sm:$0x1]
      %v2390 = vld [vmem:[#allocation3 + $0xa6] sm:$0x1]
      %v2391 = vld [vmem:[#allocation3 + $0xaa] sm:$0x1]
      %v2392 = vld [vmem:[#allocation3 + $0xae] sm:$0x1]
      %v2393 = vld [vmem:[#allocation3 + $0xb2] sm:$0x1]
      %v2394 = vld [vmem:[#allocation3 + $0xb6] sm:$0x1]
      %v2395 = vld [vmem:[#allocation3 + $0xba] sm:$0x1]
      %v2396 = vld [vmem:[#allocation3 + $0xbe] sm:$0x1]
      %v2397 = vld [vmem:[#allocation3 + $0xc2] sm:$0x1]
      %v2398 = vld [vmem:[#allocation3 + $0xc6] sm:$0x1]
      %v2399 = vld [vmem:[#allocation3 + $0xca] sm:$0x1]
      %v2400 = vld [vmem:[#allocation3 + $0xce] sm:$0x1]
      %v2401 = vld [vmem:[#allocation3 + $0xd2] sm:$0x1]
      %v2402 = vld [vmem:[#allocation3 + $0xd6] sm:$0x1]
      %v2457 = vrot.slane %v2350, 7
      %v2458 = vsel %vm629, %v2457, %v2349
      %v2459 = vrot.slane %v2351, 6
      %v2460 = vsel %vm632, %v2459, %v2458
      %v2461 = vrot.slane %v2352, 5
      %v2462 = vsel %vm635, %v2461, %v2460
      %v2463 = vrot.slane %v2353, 4
      %v2464 = vsel %vm638, %v2463, %v2462
      %v2465 = vrot.slane %v2354, 3
      %v2466 = vsel %vm641, %v2465, %v2464
      %v2467 = vrot.slane %v2355, 2
      %v2468 = vsel %vm644, %v2467, %v2466
      %v2469 = vrot.slane %v2356, 1
      %v2470 = vsel %vm647, %v2469, %v2468
      %v2471 = vrot.slane %v2358, 7
      %v2472 = vsel %vm629, %v2471, %v2357
      %v2473 = vrot.slane %v2359, 6
      %v2474 = vsel %vm632, %v2473, %v2472
      %v2475 = vrot.slane %v2360, 5
      %v2476 = vsel %vm635, %v2475, %v2474
      %v2477 = vrot.slane %v2361, 4
      %v2478 = vsel %vm638, %v2477, %v2476
      %v2479 = vrot.slane %v2362, 3
      %v2480 = vsel %vm641, %v2479, %v2478
      %v2481 = vrot.slane %v2363, 2
      %v2482 = vsel %vm644, %v2481, %v2480
      %v2483 = vrot.slane %v2364, 1
      %v2484 = vsel %vm647, %v2483, %v2482
      %v2485 = vrot.slane %v2366, 7
      %v2486 = vsel %vm629, %v2485, %v2365
      %v2487 = vrot.slane %v2367, 6
      %v2488 = vsel %vm632, %v2487, %v2486
      %v2489 = vrot.slane %v2368, 5
      %v2490 = vsel %vm635, %v2489, %v2488
      %v2491 = vrot.slane %v2369, 4
      %v2492 = vsel %vm638, %v2491, %v2490
      %v2493 = vrot.slane %v2370, 3
      %v2494 = vsel %vm641, %v2493, %v2492
      %v2495 = vrot.slane %v2371, 2
      %v2496 = vsel %vm644, %v2495, %v2494
      %v2497 = vrot.slane %v2372, 1
      %v2498 = vsel %vm647, %v2497, %v2496
      %v2499 = vrot.slane %v2374, 7
      %v2500 = vsel %vm629, %v2499, %v2373
      %v2501 = vrot.slane %v2375, 6
      %v2502 = vsel %vm632, %v2501, %v2500
      %v2503 = vrot.slane %v2376, 5
      %v2504 = vsel %vm635, %v2503, %v2502
      %v2505 = vrot.slane %v2377, 4
      %v2506 = vsel %vm638, %v2505, %v2504
      %v2507 = vrot.slane %v2378, 3
      %v2508 = vsel %vm641, %v2507, %v2506
      %v2509 = vrot.slane %v2379, 2
      %v2510 = vsel %vm644, %v2509, %v2508
      %v2511 = vrot.slane %v2380, 1
      %v2512 = vsel %vm647, %v2511, %v2510
      %v2513 = vrot.slane %v2382, 7
      %v2514 = vsel %vm629, %v2513, %v2381
      %v2515 = vrot.slane %v2383, 6
      %v2516 = vsel %vm632, %v2515, %v2514
      %v2517 = vrot.slane %v2384, 5
      %v2518 = vsel %vm635, %v2517, %v2516
      %v2519 = vrot.slane %v2385, 4
      %v2520 = vsel %vm638, %v2519, %v2518
      %v2521 = vrot.slane %v2386, 3
      %v2522 = vsel %vm641, %v2521, %v2520
      %v2523 = vrot.slane %v2387, 2
      %v2524 = vsel %vm644, %v2523, %v2522
      %v2525 = vrot.slane %v2388, 1
      %v2526 = vsel %vm647, %v2525, %v2524
      %v2527 = vrot.slane %v2390, 7
      %v2528 = vsel %vm629, %v2527, %v2389
      %v2529 = vrot.slane %v2391, 6
      %v2530 = vsel %vm632, %v2529, %v2528
      %v2531 = vrot.slane %v2392, 5
      %v2532 = vsel %vm635, %v2531, %v2530
      %v2533 = vrot.slane %v2393, 4
      %v2534 = vsel %vm638, %v2533, %v2532
      %v2535 = vrot.slane %v2394, 3
      %v2536 = vsel %vm641, %v2535, %v2534
      %v2537 = vrot.slane %v2395, 2
      %v2538 = vsel %vm644, %v2537, %v2536
      %v2539 = vrot.slane %v2396, 1
      %v2540 = vsel %vm647, %v2539, %v2538
      %v2541 = vrot.slane %v2398, 7
      %v2542 = vsel %vm629, %v2541, %v2397
      %v2543 = vrot.slane %v2399, 6
      %v2544 = vsel %vm632, %v2543, %v2542
      %v2545 = vrot.slane %v2400, 5
      %v2546 = vsel %vm635, %v2545, %v2544
      %v2547 = vrot.slane %v2401, 4
      %v2548 = vsel %vm638, %v2547, %v2546
      %v2549 = vrot.slane %v2402, 3
      %v2550 = vsel %vm641, %v2549, %v2548
      %2551 = vrot.lane.b32.xlu0 %v2470, 8
      %v2552 = vpop.permute.xlu0 %2551
      %2553 = vrot.lane.b32.xlu0 %v2484, 8
      %v2554 = vpop.permute.xlu0 %2553
      %2555 = vrot.lane.b32.xlu0 %v2498, 8
      %v2556 = vpop.permute.xlu0 %2555
      %2557 = vrot.lane.b32.xlu0 %v2512, 8
      %v2558 = vpop.permute.xlu0 %2557
      %2559 = vrot.lane.b32.xlu0 %v2526, 8
      %v2560 = vpop.permute.xlu0 %2559
      %2561 = vrot.lane.b32.xlu0 %v2540, 8
      %v2562 = vpop.permute.xlu0 %2561
      %2563 = vrot.lane.b32.xlu0 %v2550, 8
      %v2564 = vpop.permute.xlu0 %2563
      %2572 = vst.msk [vmem:[#allocation4] sm:$0xff] %vm735, %v2552
      %2573 = vst.msk [vmem:[#allocation4 + $0x8] sm:$0xff] %vm735, %v2554
      %2574 = vst.msk [vmem:[#allocation4 + $0x10] sm:$0xff] %vm735, %v2556
      %2575 = vst.msk [vmem:[#allocation4 + $0x18] sm:$0xff] %vm735, %v2558
      %2576 = vst.msk [vmem:[#allocation4 + $0x20] sm:$0xff] %vm735, %v2560
      %2577 = vst.msk [vmem:[#allocation4 + $0x28] sm:$0xff] %vm735, %v2562
      %vm2578 = vcmask 95296
      %2579 = vst.msk [vmem:[#allocation4 + $0x30] sm:$0x3f] %vm2578, %v2564
      %v2580 = vld [vmem:[#allocation3 + $0x3] sm:$0x1]
      %v2581 = vld [vmem:[#allocation3 + $0x7] sm:$0x1]
      %v2582 = vld [vmem:[#allocation3 + $0xb] sm:$0x1]
      %v2583 = vld [vmem:[#allocation3 + $0xf] sm:$0x1]
      %v2584 = vld [vmem:[#allocation3 + $0x13] sm:$0x1]
      %v2585 = vld [vmem:[#allocation3 + $0x17] sm:$0x1]
      %v2586 = vld [vmem:[#allocation3 + $0x1b] sm:$0x1]
      %v2587 = vld [vmem:[#allocation3 + $0x1f] sm:$0x1]
      %v2588 = vld [vmem:[#allocation3 + $0x23] sm:$0x1]
      %v2589 = vld [vmem:[#allocation3 + $0x27] sm:$0x1]
      %v2590 = vld [vmem:[#allocation3 + $0x2b] sm:$0x1]
      %v2591 = vld [vmem:[#allocation3 + $0x2f] sm:$0x1]
      %v2592 = vld [vmem:[#allocation3 + $0x33] sm:$0x1]
      %v2593 = vld [vmem:[#allocation3 + $0x37] sm:$0x1]
      %v2594 = vld [vmem:[#allocation3 + $0x3b] sm:$0x1]
      %v2595 = vld [vmem:[#allocation3 + $0x3f] sm:$0x1]
      %v2596 = vld [vmem:[#allocation3 + $0x43] sm:$0x1]
      %v2597 = vld [vmem:[#allocation3 + $0x47] sm:$0x1]
      %v2598 = vld [vmem:[#allocation3 + $0x4b] sm:$0x1]
      %v2599 = vld [vmem:[#allocation3 + $0x4f] sm:$0x1]
      %v2600 = vld [vmem:[#allocation3 + $0x53] sm:$0x1]
      %v2601 = vld [vmem:[#allocation3 + $0x57] sm:$0x1]
      %v2602 = vld [vmem:[#allocation3 + $0x5b] sm:$0x1]
      %v2603 = vld [vmem:[#allocation3 + $0x5f] sm:$0x1]
      %v2604 = vld [vmem:[#allocation3 + $0x63] sm:$0x1]
      %v2605 = vld [vmem:[#allocation3 + $0x67] sm:$0x1]
      %v2606 = vld [vmem:[#allocation3 + $0x6b] sm:$0x1]
      %v2607 = vld [vmem:[#allocation3 + $0x6f] sm:$0x1]
      %v2608 = vld [vmem:[#allocation3 + $0x73] sm:$0x1]
      %v2609 = vld [vmem:[#allocation3 + $0x77] sm:$0x1]
      %v2610 = vld [vmem:[#allocation3 + $0x7b] sm:$0x1]
      %v2611 = vld [vmem:[#allocation3 + $0x7f] sm:$0x1]
      %v2612 = vld [vmem:[#allocation3 + $0x83] sm:$0x1]
      %v2613 = vld [vmem:[#allocation3 + $0x87] sm:$0x1]
      %v2614 = vld [vmem:[#allocation3 + $0x8b] sm:$0x1]
      %v2615 = vld [vmem:[#allocation3 + $0x8f] sm:$0x1]
      %v2616 = vld [vmem:[#allocation3 + $0x93] sm:$0x1]
      %v2617 = vld [vmem:[#allocation3 + $0x97] sm:$0x1]
      %v2618 = vld [vmem:[#allocation3 + $0x9b] sm:$0x1]
      %v2619 = vld [vmem:[#allocation3 + $0x9f] sm:$0x1]
      %v2620 = vld [vmem:[#allocation3 + $0xa3] sm:$0x1]
      %v2621 = vld [vmem:[#allocation3 + $0xa7] sm:$0x1]
      %v2622 = vld [vmem:[#allocation3 + $0xab] sm:$0x1]
      %v2623 = vld [vmem:[#allocation3 + $0xaf] sm:$0x1]
      %v2624 = vld [vmem:[#allocation3 + $0xb3] sm:$0x1]
      %v2625 = vld [vmem:[#allocation3 + $0xb7] sm:$0x1]
      %v2626 = vld [vmem:[#allocation3 + $0xbb] sm:$0x1]
      %v2627 = vld [vmem:[#allocation3 + $0xbf] sm:$0x1]
      %v2628 = vld [vmem:[#allocation3 + $0xc3] sm:$0x1]
      %v2629 = vld [vmem:[#allocation3 + $0xc7] sm:$0x1]
      %v2630 = vld [vmem:[#allocation3 + $0xcb] sm:$0x1]
      %v2631 = vld [vmem:[#allocation3 + $0xcf] sm:$0x1]
      %v2632 = vld [vmem:[#allocation3 + $0xd3] sm:$0x1]
      %v2633 = vld [vmem:[#allocation3 + $0xd7] sm:$0x1]
      %v2688 = vrot.slane %v2581, 7
      %v2689 = vsel %vm629, %v2688, %v2580
      %v2690 = vrot.slane %v2582, 6
      %v2691 = vsel %vm632, %v2690, %v2689
      %v2692 = vrot.slane %v2583, 5
      %v2693 = vsel %vm635, %v2692, %v2691
      %v2694 = vrot.slane %v2584, 4
      %v2695 = vsel %vm638, %v2694, %v2693
      %v2696 = vrot.slane %v2585, 3
      %v2697 = vsel %vm641, %v2696, %v2695
      %v2698 = vrot.slane %v2586, 2
      %v2699 = vsel %vm644, %v2698, %v2697
      %v2700 = vrot.slane %v2587, 1
      %v2701 = vsel %vm647, %v2700, %v2699
      %v2702 = vrot.slane %v2589, 7
      %v2703 = vsel %vm629, %v2702, %v2588
      %v2704 = vrot.slane %v2590, 6
      %v2705 = vsel %vm632, %v2704, %v2703
      %v2706 = vrot.slane %v2591, 5
      %v2707 = vsel %vm635, %v2706, %v2705
      %v2708 = vrot.slane %v2592, 4
      %v2709 = vsel %vm638, %v2708, %v2707
      %v2710 = vrot.slane %v2593, 3
      %v2711 = vsel %vm641, %v2710, %v2709
      %v2712 = vrot.slane %v2594, 2
      %v2713 = vsel %vm644, %v2712, %v2711
      %v2714 = vrot.slane %v2595, 1
      %v2715 = vsel %vm647, %v2714, %v2713
      %v2716 = vrot.slane %v2597, 7
      %v2717 = vsel %vm629, %v2716, %v2596
      %v2718 = vrot.slane %v2598, 6
      %v2719 = vsel %vm632, %v2718, %v2717
      %v2720 = vrot.slane %v2599, 5
      %v2721 = vsel %vm635, %v2720, %v2719
      %v2722 = vrot.slane %v2600, 4
      %v2723 = vsel %vm638, %v2722, %v2721
      %v2724 = vrot.slane %v2601, 3
      %v2725 = vsel %vm641, %v2724, %v2723
      %v2726 = vrot.slane %v2602, 2
      %v2727 = vsel %vm644, %v2726, %v2725
      %v2728 = vrot.slane %v2603, 1
      %v2729 = vsel %vm647, %v2728, %v2727
      %v2730 = vrot.slane %v2605, 7
      %v2731 = vsel %vm629, %v2730, %v2604
      %v2732 = vrot.slane %v2606, 6
      %v2733 = vsel %vm632, %v2732, %v2731
      %v2734 = vrot.slane %v2607, 5
      %v2735 = vsel %vm635, %v2734, %v2733
      %v2736 = vrot.slane %v2608, 4
      %v2737 = vsel %vm638, %v2736, %v2735
      %v2738 = vrot.slane %v2609, 3
      %v2739 = vsel %vm641, %v2738, %v2737
      %v2740 = vrot.slane %v2610, 2
      %v2741 = vsel %vm644, %v2740, %v2739
      %v2742 = vrot.slane %v2611, 1
      %v2743 = vsel %vm647, %v2742, %v2741
      %v2744 = vrot.slane %v2613, 7
      %v2745 = vsel %vm629, %v2744, %v2612
      %v2746 = vrot.slane %v2614, 6
      %v2747 = vsel %vm632, %v2746, %v2745
      %v2748 = vrot.slane %v2615, 5
      %v2749 = vsel %vm635, %v2748, %v2747
      %v2750 = vrot.slane %v2616, 4
      %v2751 = vsel %vm638, %v2750, %v2749
      %v2752 = vrot.slane %v2617, 3
      %v2753 = vsel %vm641, %v2752, %v2751
      %v2754 = vrot.slane %v2618, 2
      %v2755 = vsel %vm644, %v2754, %v2753
      %v2756 = vrot.slane %v2619, 1
      %v2757 = vsel %vm647, %v2756, %v2755
      %v2758 = vrot.slane %v2621, 7
      %v2759 = vsel %vm629, %v2758, %v2620
      %v2760 = vrot.slane %v2622, 6
      %v2761 = vsel %vm632, %v2760, %v2759
      %v2762 = vrot.slane %v2623, 5
      %v2763 = vsel %vm635, %v2762, %v2761
      %v2764 = vrot.slane %v2624, 4
      %v2765 = vsel %vm638, %v2764, %v2763
      %v2766 = vrot.slane %v2625, 3
      %v2767 = vsel %vm641, %v2766, %v2765
      %v2768 = vrot.slane %v2626, 2
      %v2769 = vsel %vm644, %v2768, %v2767
      %v2770 = vrot.slane %v2627, 1
      %v2771 = vsel %vm647, %v2770, %v2769
      %v2772 = vrot.slane %v2629, 7
      %v2773 = vsel %vm629, %v2772, %v2628
      %v2774 = vrot.slane %v2630, 6
      %v2775 = vsel %vm632, %v2774, %v2773
      %v2776 = vrot.slane %v2631, 5
      %v2777 = vsel %vm635, %v2776, %v2775
      %v2778 = vrot.slane %v2632, 4
      %v2779 = vsel %vm638, %v2778, %v2777
      %v2780 = vrot.slane %v2633, 3
      %v2781 = vsel %vm641, %v2780, %v2779
      %2782 = vrot.lane.b32.xlu0 %v2701, 12
      %v2783 = vpop.permute.xlu0 %2782
      %2784 = vrot.lane.b32.xlu0 %v2715, 12
      %v2785 = vpop.permute.xlu0 %2784
      %2786 = vrot.lane.b32.xlu0 %v2729, 12
      %v2787 = vpop.permute.xlu0 %2786
      %2788 = vrot.lane.b32.xlu0 %v2743, 12
      %v2789 = vpop.permute.xlu0 %2788
      %2790 = vrot.lane.b32.xlu0 %v2757, 12
      %v2791 = vpop.permute.xlu0 %2790
      %2792 = vrot.lane.b32.xlu0 %v2771, 12
      %v2793 = vpop.permute.xlu0 %2792
      %2794 = vrot.lane.b32.xlu0 %v2781, 12
      %v2795 = vpop.permute.xlu0 %2794
      %2803 = vst.msk [vmem:[#allocation4] sm:$0xff] %vm777, %v2783
      %2804 = vst.msk [vmem:[#allocation4 + $0x8] sm:$0xff] %vm777, %v2785
      %2805 = vst.msk [vmem:[#allocation4 + $0x10] sm:$0xff] %vm777, %v2787
      %2806 = vst.msk [vmem:[#allocation4 + $0x18] sm:$0xff] %vm777, %v2789
      %2807 = vst.msk [vmem:[#allocation4 + $0x20] sm:$0xff] %vm777, %v2791
      %2808 = vst.msk [vmem:[#allocation4 + $0x28] sm:$0xff] %vm777, %v2793
      %vm2809 = vcmask 128096
      %2810 = vst.msk [vmem:[#allocation4 + $0x30] sm:$0x3f] %vm2809, %v2795
      %v2811 = vld [vmem:[%s6] sm:$0xff]
      %v2812 = vld [vmem:[%s6 + $0x8] sm:$0xff]
      %v2813 = vld [vmem:[%s6 + $0x10] sm:$0xff]
      %v2814 = vld [vmem:[%s6 + $0x18] sm:$0xff]
      %v2815 = vld [vmem:[%s6 + $0x20] sm:$0xff]
      %v2816 = vld [vmem:[%s6 + $0x28] sm:$0xff]
      %v2817 = vld [vmem:[%s6 + $0x30] sm:$0xff]
      %v2818 = vld [vmem:[%s6 + $0x38] sm:$0xff]
      %v2819 = vld [vmem:[%s6 + $0x40] sm:$0xff]
      %v2820 = vld [vmem:[%s6 + $0x48] sm:$0xff]
      %v2821 = vld [vmem:[%s6 + $0x50] sm:$0xff]
      %v2822 = vld [vmem:[%s6 + $0x58] sm:$0xff]
      %v2823 = vld [vmem:[%s6 + $0x60] sm:$0xff]
      %v2824 = vld [vmem:[%s6 + $0x68] sm:$0xff]
      %v2825 = vld [vmem:[%s6 + $0x70] sm:$0xff]
      %v2826 = vld [vmem:[%s6 + $0x78] sm:$0xff]
      %v2827 = vld [vmem:[#allocation4] sm:$0xff]
      %v2828 = vld [vmem:[#allocation4 + $0x8] sm:$0xff]
      %v2829 = vld [vmem:[#allocation4 + $0x10] sm:$0xff]
      %v2830 = vld [vmem:[#allocation4 + $0x18] sm:$0xff]
      %v2831 = vld [vmem:[#allocation4 + $0x20] sm:$0xff]
      %v2832 = vld [vmem:[#allocation4 + $0x28] sm:$0xff]
      %v2833 = vld [vmem:[#allocation4 + $0x30] sm:$0x3f]
      %v2834 = vld [vmem:[%s7] sm:$0xff]
      %v2835 = vld [vmem:[%s7 + $0x8] sm:$0xff]
      %v2836 = vld [vmem:[%s7 + $0x10] sm:$0xff]
      %v2837 = vld [vmem:[%s7 + $0x18] sm:$0xff]
      %v2838 = vld [vmem:[%s7 + $0x20] sm:$0xff]
      %v2839 = vld [vmem:[%s7 + $0x28] sm:$0xff]
      %v2840 = vld [vmem:[%s7 + $0x30] sm:$0xff]
      %v2841 = vld [vmem:[%s7 + $0x38] sm:$0xff]
      %v2842 = vld [vmem:[%s7 + $0x40] sm:$0xff]
      %v2843 = vld [vmem:[%s7 + $0x48] sm:$0xff]
      %v2844 = vld [vmem:[%s7 + $0x50] sm:$0xff]
      %v2845 = vld [vmem:[%s7 + $0x58] sm:$0xff]
      %v2846 = vld [vmem:[%s7 + $0x60] sm:$0xff]
      %v2847 = vld [vmem:[%s7 + $0x68] sm:$0xff]
      %v2848 = vld [vmem:[%s7 + $0x70] sm:$0xff]
      %v2849 = vld [vmem:[%s7 + $0x78] sm:$0xff]
      %2851 = vset.pattern.permute.xlu0 0
      %2852 = vperm.xlu0 %2851, %v2834
      %v2853 = vpop.permute.xlu0 %2852
      %2856 = vset.pattern.permute.xlu0 0
      %2857 = vperm.xlu0 %2856, %v2835
      %v2858 = vpop.permute.xlu0 %2857
      %2861 = vset.pattern.permute.xlu0 0
      %2862 = vperm.xlu0 %2861, %v2836
      %v2863 = vpop.permute.xlu0 %2862
      %2866 = vset.pattern.permute.xlu0 0
      %2867 = vperm.xlu0 %2866, %v2837
      %v2868 = vpop.permute.xlu0 %2867
      %2871 = vset.pattern.permute.xlu0 0
      %2872 = vperm.xlu0 %2871, %v2838
      %v2873 = vpop.permute.xlu0 %2872
      %2876 = vset.pattern.permute.xlu0 0
      %2877 = vperm.xlu0 %2876, %v2839
      %v2878 = vpop.permute.xlu0 %2877
      %2881 = vset.pattern.permute.xlu0 0
      %2882 = vperm.xlu0 %2881, %v2840
      %v2883 = vpop.permute.xlu0 %2882
      %2886 = vset.pattern.permute.xlu0 0
      %2887 = vperm.xlu0 %2886, %v2841
      %v2888 = vpop.permute.xlu0 %2887
      %2891 = vset.pattern.permute.xlu0 0
      %2892 = vperm.xlu0 %2891, %v2842
      %v2893 = vpop.permute.xlu0 %2892
      %2896 = vset.pattern.permute.xlu0 0
      %2897 = vperm.xlu0 %2896, %v2843
      %v2898 = vpop.permute.xlu0 %2897
      %2901 = vset.pattern.permute.xlu0 0
      %2902 = vperm.xlu0 %2901, %v2844
      %v2903 = vpop.permute.xlu0 %2902
      %2906 = vset.pattern.permute.xlu0 0
      %2907 = vperm.xlu0 %2906, %v2845
      %v2908 = vpop.permute.xlu0 %2907
      %2911 = vset.pattern.permute.xlu0 0
      %2912 = vperm.xlu0 %2911, %v2846
      %v2913 = vpop.permute.xlu0 %2912
      %2916 = vset.pattern.permute.xlu0 0
      %2917 = vperm.xlu0 %2916, %v2847
      %v2918 = vpop.permute.xlu0 %2917
      %2921 = vset.pattern.permute.xlu0 0
      %2922 = vperm.xlu0 %2921, %v2848
      %v2923 = vpop.permute.xlu0 %2922
      %2926 = vset.pattern.permute.xlu0 0
      %2927 = vperm.xlu0 %2926, %v2849
      %v2928 = vpop.permute.xlu0 %2927
      %vm2930 = vcmask 441344
      %v2932 = vsel %vm2930, %v2811, 0
      %v2935 = vsel %vm2930, %v2812, 0
      %v2938 = vsel %vm2930, %v2813, 0
      %v2941 = vsel %vm2930, %v2814, 0
      %v2944 = vsel %vm2930, %v2815, 0
      %v2947 = vsel %vm2930, %v2816, 0
      %v2950 = vsel %vm2930, %v2817, 0
      %v2953 = vsel %vm2930, %v2818, 0
      %v2956 = vsel %vm2930, %v2819, 0
      %v2959 = vsel %vm2930, %v2820, 0
      %v2962 = vsel %vm2930, %v2821, 0
      %v2965 = vsel %vm2930, %v2822, 0
      %v2968 = vsel %vm2930, %v2823, 0
      %v2971 = vsel %vm2930, %v2824, 0
      %v2974 = vsel %vm2930, %v2825, 0
      %v2977 = vsel %vm2930, %v2826, 0
      %vm2979 = vcmask 1045504
      %v2981 = vsel %vm2979, %v2833, 0
      %2983 = vmatprep.subr.mxu0 0.0
      %2984 = vmatpush1.msra.mxu0 %v2827
      %2985 = vmatprep.subr.mxu0 0.0
      %2986 = vmatpush1.msra.mxu0 %v2828
      %2987 = vmatprep.subr.mxu0 0.0
      %2988 = vmatpush1.msra.mxu0 %v2829
      %2989 = vmatprep.subr.mxu0 0.0
      %2990 = vmatpush1.msra.mxu0 %v2830
      %2991 = vmatprep.subr.mxu0 0.0
      %2992 = vmatpush1.msra.mxu0 %v2831
      %2993 = vmatprep.subr.mxu0 0.0
      %2994 = vmatpush1.msra.mxu0 %v2832
      %2995 = vmatprep.subr.mxu0 0.0
      %2996 = vmatpush1.msra.mxu0 %v2981
      %2997 = vmatprep.subr.mxu0 0.0
      %2998 = vmatpush1.msra.mxu0 0.0
      %2999 = vmatprep.subr.mxu0 0.0
      %3000 = vmatpush1.msra.mxu0 0.0
      %3001 = vmatprep.subr.mxu0 0.0
      %3002 = vmatpush1.msra.mxu0 0.0
      %3003 = vmatprep.subr.mxu0 0.0
      %3004 = vmatpush1.msra.mxu0 0.0
      %3005 = vmatprep.subr.mxu0 0.0
      %3006 = vmatpush1.msra.mxu0 0.0
      %3007 = vmatprep.subr.mxu0 0.0
      %3008 = vmatpush1.msra.mxu0 0.0
      %3009 = vmatprep.subr.mxu0 0.0
      %3010 = vmatpush1.msra.mxu0 0.0
      %3011 = vmatprep.subr.mxu0 0.0
      %3012 = vmatpush1.msra.mxu0 0.0
      %3013 = vmatprep.subr.mxu0 0.0
      %3014 = vmatpush1.msra.mxu0 0.0
      %3015 = vmatprep.subr.mxu0 0.0
      %3016 = vmatpush1.msra.mxu0 0.0
      %3017 = vmatprep.subr.mxu0 0.0
      %3018 = vmatpush1.msra.mxu0 0.0
      %3019 = vmatprep.subr.mxu0 0.0
      %3020 = vmatpush1.msra.mxu0 0.0
      %3021 = vmatprep.subr.mxu0 0.0
      %3022 = vmatpush1.msra.mxu0 0.0
      %3023 = vmatprep.subr.mxu0 0.0
      %3024 = vmatpush1.msra.mxu0 0.0
      %3025 = vmatprep.subr.mxu0 0.0
      %3026 = vmatpush1.msra.mxu0 0.0
      %3027 = vmatprep.subr.mxu0 0.0
      %3028 = vmatpush1.msra.mxu0 0.0
      %3029 = vmatprep.subr.mxu0 0.0
      %3030 = vmatpush1.msra.mxu0 0.0
      %3031 = vmatprep.subr.mxu0 0.0
      %3032 = vmatpush1.msra.mxu0 0.0
      %3033 = vmatprep.subr.mxu0 0.0
      %3034 = vmatpush1.msra.mxu0 0.0
      %3035 = vmatprep.subr.mxu0 0.0
      %3036 = vmatpush1.msra.mxu0 0.0
      %3037 = vmatprep.subr.mxu0 0.0
      %3038 = vmatpush1.msra.mxu0 0.0
      %3039 = vmatprep.subr.mxu0 0.0
      %3040 = vmatpush1.msra.mxu0 0.0
      %3041 = vmatprep.subr.mxu0 0.0
      %3042 = vmatpush1.msra.mxu0 0.0
      %3043 = vmatprep.subr.mxu0 0.0
      %3044 = vmatpush1.msra.mxu0 0.0
      %3045 = vmatprep.subr.mxu0 0.0
      %3046 = vmatpush1.msra.mxu0 0.0
      %3047 = vmatprep.mubr.f32.mxu0 0.0
      %3048 = vmatmul.mubr.f32.gmra.mrb[0].mxu0 %v2932
      %v3049 = vpop.f32.mrb[0].mxu0
      %v3050 = vadd.f32 %v2853, %v3049
      %v3051 = vpop.f32.mrb[0].mxu0
      %3052 = vmatprep.mubr.f32.mxu0 0.0
      %3053 = vmatmul.mubr.f32.gmra.mrb[0].mxu0 %v2935
      %v3054 = vpop.f32.mrb[0].mxu0
      %v3055 = vadd.f32 %v2858, %v3054
      %v3056 = vpop.f32.mrb[0].mxu0
      %3057 = vmatprep.mubr.f32.mxu0 0.0
      %3058 = vmatmul.mubr.f32.gmra.mrb[0].mxu0 %v2938
      %v3059 = vpop.f32.mrb[0].mxu0
      %v3060 = vadd.f32 %v2863, %v3059
      %v3061 = vpop.f32.mrb[0].mxu0
      %3062 = vmatprep.mubr.f32.mxu0 0.0
      %3063 = vmatmul.mubr.f32.gmra.mrb[0].mxu0 %v2941
      %v3064 = vpop.f32.mrb[0].mxu0
      %v3065 = vadd.f32 %v2868, %v3064
      %v3066 = vpop.f32.mrb[0].mxu0
      %3067 = vmatprep.mubr.f32.mxu0 0.0
      %3068 = vmatmul.mubr.f32.gmra.mrb[0].mxu0 %v2944
      %v3069 = vpop.f32.mrb[0].mxu0
      %v3070 = vadd.f32 %v2873, %v3069
      %v3071 = vpop.f32.mrb[0].mxu0
      %3072 = vmatprep.mubr.f32.mxu0 0.0
      %3073 = vmatmul.mubr.f32.gmra.mrb[0].mxu0 %v2947
      %v3074 = vpop.f32.mrb[0].mxu0
      %v3075 = vadd.f32 %v2878, %v3074
      %v3076 = vpop.f32.mrb[0].mxu0
      %3077 = vmatprep.mubr.f32.mxu0 0.0
      %3078 = vmatmul.mubr.f32.gmra.mrb[0].mxu0 %v2950
      %v3079 = vpop.f32.mrb[0].mxu0
      %v3080 = vadd.f32 %v2883, %v3079
      %v3081 = vpop.f32.mrb[0].mxu0
      %3082 = vmatprep.mubr.f32.mxu0 0.0
      %3083 = vmatmul.mubr.f32.gmra.mrb[0].mxu0 %v2953
      %v3084 = vpop.f32.mrb[0].mxu0
      %v3085 = vadd.f32 %v2888, %v3084
      %v3086 = vpop.f32.mrb[0].mxu0
      %3087 = vmatprep.mubr.f32.mxu0 0.0
      %3088 = vmatmul.mubr.f32.gmra.mrb[0].mxu0 %v2956
      %v3089 = vpop.f32.mrb[0].mxu0
      %v3090 = vadd.f32 %v2893, %v3089
      %v3091 = vpop.f32.mrb[0].mxu0
      %3092 = vmatprep.mubr.f32.mxu0 0.0
      %3093 = vmatmul.mubr.f32.gmra.mrb[0].mxu0 %v2959
      %v3094 = vpop.f32.mrb[0].mxu0
      %v3095 = vadd.f32 %v2898, %v3094
      %v3096 = vpop.f32.mrb[0].mxu0
      %3097 = vmatprep.mubr.f32.mxu0 0.0
      %3098 = vmatmul.mubr.f32.gmra.mrb[0].mxu0 %v2962
      %v3099 = vpop.f32.mrb[0].mxu0
      %v3100 = vadd.f32 %v2903, %v3099
      %v3101 = vpop.f32.mrb[0].mxu0
      %3102 = vmatprep.mubr.f32.mxu0 0.0
      %3103 = vmatmul.mubr.f32.gmra.mrb[0].mxu0 %v2965
      %v3104 = vpop.f32.mrb[0].mxu0
      %v3105 = vadd.f32 %v2908, %v3104
      %v3106 = vpop.f32.mrb[0].mxu0
      %3107 = vmatprep.mubr.f32.mxu0 0.0
      %3108 = vmatmul.mubr.f32.gmra.mrb[0].mxu0 %v2968
      %v3109 = vpop.f32.mrb[0].mxu0
      %v3110 = vadd.f32 %v2913, %v3109
      %v3111 = vpop.f32.mrb[0].mxu0
      %3112 = vmatprep.mubr.f32.mxu0 0.0
      %3113 = vmatmul.mubr.f32.gmra.mrb[0].mxu0 %v2971
      %v3114 = vpop.f32.mrb[0].mxu0
      %v3115 = vadd.f32 %v2918, %v3114
      %v3116 = vpop.f32.mrb[0].mxu0
      %3117 = vmatprep.mubr.f32.mxu0 0.0
      %3118 = vmatmul.mubr.f32.gmra.mrb[0].mxu0 %v2974
      %v3119 = vpop.f32.mrb[0].mxu0
      %v3120 = vadd.f32 %v2923, %v3119
      %v3121 = vpop.f32.mrb[0].mxu0
      %3122 = vmatprep.mubr.f32.mxu0 0.0
      %3123 = vmatmul.mubr.f32.gmra.mrb[0].mxu0 %v2977
      %v3124 = vpop.f32.mrb[0].mxu0
      %v3125 = vadd.f32 %v2928, %v3124
      %v3126 = vpop.f32.mrb[0].mxu0
      %3127 = vdwg.mxu0
      %v3128 = vpack.c.bf16 %v3055, %v3050
      %v3129 = vpack.c.bf16 %v3065, %v3060
      %v3130 = vpack.c.bf16 %v3075, %v3070
      %v3131 = vpack.c.bf16 %v3085, %v3080
      %v3132 = vpack.c.bf16 %v3095, %v3090
      %v3133 = vpack.c.bf16 %v3105, %v3100
      %v3134 = vpack.c.bf16 %v3115, %v3110
      %v3135 = vpack.c.bf16 %v3125, %v3120
      %v3144 = vunpack.c.l.b16 %v3128
      %v3145 = vunpack.c.h.b16 %v3128
      %v3146 = vunpack.c.l.b16 %v3129
      %v3147 = vunpack.c.h.b16 %v3129
      %v3148 = vunpack.c.l.b16 %v3130
      %v3149 = vunpack.c.h.b16 %v3130
      %v3150 = vunpack.c.l.b16 %v3131
      %v3151 = vunpack.c.h.b16 %v3131
      %v3152 = vunpack.c.l.b16 %v3132
      %v3153 = vunpack.c.h.b16 %v3132
      %v3154 = vunpack.c.l.b16 %v3133
      %v3155 = vunpack.c.h.b16 %v3133
      %v3156 = vunpack.c.l.b16 %v3134
      %v3157 = vunpack.c.h.b16 %v3134
      %v3158 = vunpack.c.l.b16 %v3135
      %v3159 = vunpack.c.h.b16 %v3135
      %v3160 = vpack.c.b16 %v3144, %v3144
      %v3161 = vpack.c.b16 %v3145, %v3145
      %v3162 = vpack.c.b16 %v3146, %v3146
      %v3163 = vpack.c.b16 %v3147, %v3147
      %v3164 = vpack.c.b16 %v3148, %v3148
      %v3165 = vpack.c.b16 %v3149, %v3149
      %v3166 = vpack.c.b16 %v3150, %v3150
      %v3167 = vpack.c.b16 %v3151, %v3151
      %v3168 = vpack.c.b16 %v3152, %v3152
      %v3169 = vpack.c.b16 %v3153, %v3153
      %v3170 = vpack.c.b16 %v3154, %v3154
      %v3171 = vpack.c.b16 %v3155, %v3155
      %v3172 = vpack.c.b16 %v3156, %v3156
      %v3173 = vpack.c.b16 %v3157, %v3157
      %v3174 = vpack.c.b16 %v3158, %v3158
      %v3175 = vpack.c.b16 %v3159, %v3159
      %3192 = vst.msk [vmem:[%s365] sm:$0xf] %vm1005, %v3160
      %3193 = vst.msk [vmem:[%s365 + $0x4] sm:$0xf] %vm1005, %v3161
      %3194 = vst.msk [vmem:[%s365 + $0x8] sm:$0xf] %vm1005, %v3162
      %3195 = vst.msk [vmem:[%s365 + $0xc] sm:$0xf] %vm1005, %v3163
      %3196 = vst.msk [vmem:[%s365 + $0x10] sm:$0xf] %vm1005, %v3164
      %3197 = vst.msk [vmem:[%s365 + $0x14] sm:$0xf] %vm1005, %v3165
      %3198 = vst.msk [vmem:[%s365 + $0x18] sm:$0xf] %vm1005, %v3166
      %3199 = vst.msk [vmem:[%s365 + $0x1c] sm:$0xf] %vm1005, %v3167
      %3200 = vst.msk [vmem:[%s365 + $0x20] sm:$0xf] %vm1005, %v3168
      %3201 = vst.msk [vmem:[%s365 + $0x24] sm:$0xf] %vm1005, %v3169
      %3202 = vst.msk [vmem:[%s365 + $0x28] sm:$0xf] %vm1005, %v3170
      %3203 = vst.msk [vmem:[%s365 + $0x2c] sm:$0xf] %vm1005, %v3171
      %3204 = vst.msk [vmem:[%s365 + $0x30] sm:$0xf] %vm1005, %v3172
      %3205 = vst.msk [vmem:[%s365 + $0x34] sm:$0xf] %vm1005, %v3173
      %3206 = vst.msk [vmem:[%s365 + $0x38] sm:$0xf] %vm1005, %v3174
      %3207 = vst.msk [vmem:[%s365 + $0x3c] sm:$0xf] %vm1005, %v3175
      %p3208 = scmp.lt.s32.totalorder %s21, 1
      %s3209 = scalar_select %p3208, %s21, 1
      %s3210 = smul.addr %s3209, 8
      %s3211 = smul.addr %s3210, 4
      %s3212 = scalar_lea.vmem %s8, %s3211
      %p3213 = scmp.lt.s32.totalorder %s21, 1
      %s3214 = scalar_select %p3213, %s21, 1
      %s3215 = smul.addr %s3214, 16
      %s3216 = smul.addr %s3215, 4
      %s3217 = scalar_lea.vmem %s9, %s3216
      // Predicated region
      $region53: #{tpu_custom_call.1} parent=51 // pred_check
        %p3218 = pneg %p217
      $region54: #{tpu_custom_call.1} parent=51 // pred_check_branch
        %3220 = sbr.rel (%p3218) target = $region56
      $region55: #{tpu_custom_call.1} parent=51 // pred_region
        _
      $region56: #{tpu_custom_call.1} parent=51 // pred_fallthru
        _
      // Predicated region
      $region57: #{tpu_custom_call.1} parent=51 // pred_check
        %p3221 = pneg %p243
      $region58: #{tpu_custom_call.1} parent=51 // pred_check_branch
        %3223 = sbr.rel (%p3221) target = $region60
      $region59: #{tpu_custom_call.1} parent=51 // pred_region
        _
      $region60: #{tpu_custom_call.1} parent=51 // pred_fallthru
        _
    $region52: #{tpu_custom_call.1} parent=5 // pred_fallthru
      _
    %p3224 = scmp.le.s32.totalorder 2, %s16
    // Predicated region
    $region61: #{tpu_custom_call.1} parent=5 // pred_check
      %p3225 = pneg %p3224
    $region62: #{tpu_custom_call.1} parent=5 // pred_check_branch
      %3227 = sbr.rel (%p3225) target = $region64
    $region63: #{tpu_custom_call.1} parent=5 // pred_region
      %s3228 = ssub.s32 %s16, 2
      // Predicated region
      $region65: #{tpu_custom_call.1} parent=63 // pred_check
        %p3229 = pneg %p223
      $region66: #{tpu_custom_call.1} parent=63 // pred_check_branch
        %3231 = sbr.rel (%p3229) target = $region68
      $region67: #{tpu_custom_call.1} parent=63 // pred_region
        %p3232 = scmp.lt.s32.totalorder %s22, 1
        %s3233 = scalar_select %p3232, %s22, 1
        %s3234 = smul.addr %s3233, 8
        %s3235 = smul.addr %s3234, 4
        %s3236 = scalar_lea.vmem %s8, %s3235
      $region68: #{tpu_custom_call.1} parent=63 // pred_fallthru
        _
      // Predicated region
      $region69: #{tpu_custom_call.1} parent=63 // pred_check
        %p3237 = pneg %p249
      $region70: #{tpu_custom_call.1} parent=63 // pred_check_branch
        %3239 = sbr.rel (%p3237) target = $region72
      $region71: #{tpu_custom_call.1} parent=63 // pred_region
        %p3240 = scmp.lt.s32.totalorder %s22, 1
        %s3241 = scalar_select %p3240, %s22, 1
        %s3242 = smul.addr %s3241, 16
        %s3243 = smul.addr %s3242, 4
        %s3244 = scalar_lea.vmem %s9, %s3243
      $region72: #{tpu_custom_call.1} parent=63 // pred_fallthru
        _
    $region64: #{tpu_custom_call.1} parent=5 // pred_fallthru
      _
  $region6: #{tpu_custom_call.1} parent=0 // loop_footer
    %s20 = sadd.s32 1, %s16
  $region7: #{tpu_custom_call.1} parent=0 // loop_footer_branch
    %15 = sbr.rel target = $region3
  $region8: #{tpu_custom_call.1} parent=0 // loop_exit
    _

</llo_original>
